<compile_context>
chip_gen: v5e
topology: v5e:2x2
jax: 0.10.0
libtpu: 0.0.40
codegen_flags: <defaults>
</compile_context>

<pallas_src>
import functools
import math

import jax
import jax.numpy as jnp
from jax.experimental import pallas as pl
from jax.experimental.pallas import tpu as pltpu

DROPOUT = 0.1
FFN_DIM = 2048
EPS = 1e-5                       # PyTorch LayerNorm default
NEG_INF = -1e30                  # finite "masked" value (avoids NaN on fully-masked rows)


def _vmem_limit_bytes():
    cap = 64 * 1024 * 1024
    try:
        cap = int(getattr(pltpu.get_tpu_info(), "vmem_capacity_bytes", cap))
    except Exception:
        pass
    if cap <= 0:
        cap = 64 * 1024 * 1024
    return int(max(32 * 1024 * 1024, min(cap * 3 // 4, 100 * 1024 * 1024)))


VMEM_LIMIT_BYTES = _vmem_limit_bytes()


def _ceil_to(x, m):
    return -(-x // m) * m


def _block(dim, tile):
    """(block, padded_dim): use the full dim when it fits one tile (no pad, allowed by the
    'full array dim' rule); otherwise tile (128-aligned) and pad dim to a multiple of it."""
    if dim <= tile:
        return dim, dim
    return tile, _ceil_to(dim, tile)


def _cparams(sem):
    return pltpu.CompilerParams(dimension_semantics=sem,
                                vmem_limit_bytes=VMEM_LIMIT_BYTES)


def _ln_math(x, g, b):
    x = x.astype(jnp.float32)
    mean = jnp.mean(x, axis=-1, keepdims=True)
    var = jnp.mean(jnp.square(x - mean), axis=-1, keepdims=True)
    return (x - mean) * jax.lax.rsqrt(var + EPS) * g + b


# --------------------------------------------------------------------------
# Plain tiled linear (x @ w + b) : bf16 operands, f32 VMEM accumulator
# --------------------------------------------------------------------------
def _linear_kernel(x_ref, w_ref, b_ref, o_ref, acc_ref):
    @pl.when(pl.program_id(2) == 0)
    def _init():
        acc_ref[...] = jnp.zeros_like(acc_ref)

    acc_ref[...] += jnp.dot(x_ref[...], w_ref[...],
                            preferred_element_type=jnp.float32)

    @pl.when(pl.program_id(2) == pl.num_programs(2) - 1)
    def _finalize():
        o_ref[...] = (acc_ref[...] + b_ref[...]).astype(o_ref.dtype)


def linear(x2d, w, b, out_dtype=jnp.bfloat16, tm=512, tn=512, tk=512):
    """x2d: (M, K) bf16, w: (K, N) bf16, b: (N,) f32 -> (M, N) out_dtype."""
    M, K = x2d.shape
    N = w.shape[1]
    bm, Mp = _block(M, tm)
    bn, Np = _block(N, tn)
    bk, Kp = _block(K, tk)
    xp = x2d if (Mp == M and Kp == K) else jnp.pad(x2d, ((0, Mp - M), (0, Kp - K)))
    wp = w if (Kp == K and Np == N) else jnp.pad(w, ((0, Kp - K), (0, Np - N)))
    bp = b if Np == N else jnp.pad(b, (0, Np - N))
    out = pl.pallas_call(
        _linear_kernel,
        out_shape=jax.ShapeDtypeStruct((Mp, Np), out_dtype),
        grid=(Mp // bm, Np // bn, Kp // bk),
        in_specs=[
            pl.BlockSpec((bm, bk), lambda i, j, k: (i, k)),
            pl.BlockSpec((bk, bn), lambda i, j, k: (k, j)),
            pl.BlockSpec((1, bn), lambda i, j, k: (0, j)),
        ],
        out_specs=pl.BlockSpec((bm, bn), lambda i, j, k: (i, j)),
        scratch_shapes=[pltpu.VMEM((bm, bn), jnp.float32)],
        compiler_params=_cparams(("parallel", "parallel", "arbitrary")),
    )(xp, wp, bp.reshape(1, Np))
    if Mp != M or Np != N:
        out = out[:M, :N]
    return out


# --------------------------------------------------------------------------
# Fused linear + bias + residual-add + LayerNorm (N = E untiled; K reduction)
# --------------------------------------------------------------------------
def _linear_res_ln_kernel(x_ref, w_ref, b_ref, r_ref, g_ref, bb_ref, o_ref, acc_ref):
    @pl.when(pl.program_id(1) == 0)
    def _init():
        acc_ref[...] = jnp.zeros_like(acc_ref)

    acc_ref[...] += jnp.dot(x_ref[...], w_ref[...],
                            preferred_element_type=jnp.float32)

    @pl.when(pl.program_id(1) == pl.num_programs(1) - 1)
    def _finalize():
        y = acc_ref[...] + b_ref[...] + r_ref[...].astype(jnp.float32)
        o_ref[...] = _ln_math(y, g_ref[...], bb_ref[...]).astype(o_ref.dtype)


def linear_residual_ln(x2d, w, b, res2d, gamma, beta, tm=512, tk=512):
    """LayerNorm(res + x @ w + b) -> (M, E) bf16."""
    M, K = x2d.shape
    E = w.shape[1]
    bm, Mp = _block(M, tm)
    bk, Kp = _block(K, tk)
    xp = x2d if (Mp == M and Kp == K) else jnp.pad(x2d, ((0, Mp - M), (0, Kp - K)))
    wp = w if Kp == K else jnp.pad(w, ((0, Kp - K), (0, 0)))
    rp = res2d if Mp == M else jnp.pad(res2d, ((0, Mp - M), (0, 0)))
    out = pl.pallas_call(
        _linear_res_ln_kernel,
        out_shape=jax.ShapeDtypeStruct((Mp, E), jnp.bfloat16),
        grid=(Mp // bm, Kp // bk),
        in_specs=[
            pl.BlockSpec((bm, bk), lambda i, k: (i, k)),
            pl.BlockSpec((bk, E), lambda i, k: (k, 0)),
            pl.BlockSpec((1, E), lambda i, k: (0, 0)),
            pl.BlockSpec((bm, E), lambda i, k: (i, 0)),
            pl.BlockSpec((1, E), lambda i, k: (0, 0)),
            pl.BlockSpec((1, E), lambda i, k: (0, 0)),
        ],
        out_specs=pl.BlockSpec((bm, E), lambda i, k: (i, 0)),
        scratch_shapes=[pltpu.VMEM((bm, E), jnp.float32)],
        compiler_params=_cparams(("parallel", "arbitrary")),
    )(xp, wp, b.reshape(1, E), rp, gamma.reshape(1, E), beta.reshape(1, E))
    return out[:M] if Mp != M else out


# --------------------------------------------------------------------------
# Fused FFN: LayerNorm(x + relu(x @ w1 + b1) @ w2 + b2), F-tiled reduction so
# the (rows, F) intermediate and resident weight blocks stay bounded (v7x 64 MiB).
# --------------------------------------------------------------------------
def _ffn_res_ln_kernel(x_ref, w1_ref, b1_ref, w2_ref, b2_ref, g_ref, bb_ref,
                       o_ref, acc_ref):
    @pl.when(pl.program_id(1) == 0)
    def _init():
        acc_ref[...] = jnp.zeros_like(acc_ref)

    h = jnp.dot(x_ref[...], w1_ref[...], preferred_element_type=jnp.float32) + b1_ref[...]
    h = jnp.maximum(h, 0.0).astype(jnp.bfloat16)
    acc_ref[...] += jnp.dot(h, w2_ref[...], preferred_element_type=jnp.float32)

    @pl.when(pl.program_id(1) == pl.num_programs(1) - 1)
    def _finalize():
        y = acc_ref[...] + b2_ref[...] + x_ref[...].astype(jnp.float32)   # residual == x
        o_ref[...] = _ln_math(y, g_ref[...], bb_ref[...]).astype(o_ref.dtype)


def ffn_residual_ln(x, p, gamma, beta, tm=256, tf=512):
    B, L, E = x.shape
    F = p["w1"].shape[1]
    M = B * L
    bm, Mp = _block(M, tm)
    bf, Fp = _block(F, tf)
    x2 = x.reshape(M, E)
    xp = x2 if Mp == M else jnp.pad(x2, ((0, Mp - M), (0, 0)))
    w1 = p["w1"] if Fp == F else jnp.pad(p["w1"], ((0, 0), (0, Fp - F)))
    b1 = p["b1"] if Fp == F else jnp.pad(p["b1"], (0, Fp - F))
    w2 = p["w2"] if Fp == F else jnp.pad(p["w2"], ((0, Fp - F), (0, 0)))
    out = pl.pallas_call(
        _ffn_res_ln_kernel,
        out_shape=jax.ShapeDtypeStruct((Mp, E), jnp.bfloat16),
        grid=(Mp // bm, Fp // bf),
        in_specs=[
            pl.BlockSpec((bm, E), lambda i, f: (i, 0)),
            pl.BlockSpec((E, bf), lambda i, f: (0, f)),
            pl.BlockSpec((1, bf), lambda i, f: (0, f)),
            pl.BlockSpec((bf, E), lambda i, f: (f, 0)),
            pl.BlockSpec((1, E), lambda i, f: (0, 0)),
            pl.BlockSpec((1, E), lambda i, f: (0, 0)),
            pl.BlockSpec((1, E), lambda i, f: (0, 0)),
        ],
        out_specs=pl.BlockSpec((bm, E), lambda i, f: (i, 0)),
        scratch_shapes=[pltpu.VMEM((bm, E), jnp.float32)],
        compiler_params=_cparams(("parallel", "arbitrary")),
    )(xp, w1, b1.reshape(1, Fp), w2, p["b2"].reshape(1, E),
      gamma.reshape(1, E), beta.reshape(1, E))
    out = out[:M] if Mp != M else out
    return out.reshape(B, L, E)


# --------------------------------------------------------------------------
# Standalone LayerNorm (final encoder/decoder norms), row-tiled, bf16 in/out
# --------------------------------------------------------------------------
def _ln_kernel(x_ref, g_ref, b_ref, o_ref):
    o_ref[...] = _ln_math(x_ref[...], g_ref[...], b_ref[...]).astype(o_ref.dtype)


def layer_norm(x, gamma, beta, row_tile=512):
    B, L, E = x.shape
    M = B * L
    bm, Mp = _block(M, row_tile)
    x2 = x.reshape(M, E)
    xp = x2 if Mp == M else jnp.pad(x2, ((0, Mp - M), (0, 0)))
    out = pl.pallas_call(
        _ln_kernel,
        out_shape=jax.ShapeDtypeStruct((Mp, E), jnp.bfloat16),
        grid=(Mp // bm,),
        in_specs=[
            pl.BlockSpec((bm, E), lambda i: (i, 0)),
            pl.BlockSpec((1, E), lambda i: (0, 0)),
            pl.BlockSpec((1, E), lambda i: (0, 0)),
        ],
        out_specs=pl.BlockSpec((bm, E), lambda i: (i, 0)),
        compiler_params=_cparams(("parallel",)),
    )(xp, gamma.reshape(1, E), beta.reshape(1, E))
    out = out[:M] if Mp != M else out
    return out.reshape(B, L, E)


# --------------------------------------------------------------------------
# Flash-style attention: head-major (B, H, L, dh), all heads batched per step,
# online-softmax f32 accumulators, Lk tiled on the last ("arbitrary") grid axis.
# 1/sqrt(dh) is pre-folded into the q projection weights.
# --------------------------------------------------------------------------
def _flash_attn_kernel(q_ref, k_ref, v_ref, am_ref, kpm_ref, o_ref,
                       m_sc, l_sc, acc_sc):
    ki = pl.program_id(2)

    @pl.when(ki == 0)
    def _init():
        m_sc[...] = jnp.full_like(m_sc, NEG_INF)
        l_sc[...] = jnp.zeros_like(l_sc)
        acc_sc[...] = jnp.zeros_like(acc_sc)

    q = q_ref[0]                        # (H, tq, dh) bf16 (already scaled)
    k = k_ref[0]                        # (H, tk, dh)
    v = v_ref[0]                        # (H, tk, dh)
    mask = am_ref[...] + kpm_ref[0]     # (tq, tk) + (1, tk) additive f32

    s = jax.lax.dot_general(q, k, (((2,), (2,)), ((0,), (0,))),
                            preferred_element_type=jnp.float32)     # (H, tq, tk)
    s = s + mask[None, :, :]

    m_prev = m_sc[...]
    m_new = jnp.maximum(m_prev, jnp.max(s, axis=-1, keepdims=True))
    alpha = jnp.exp(m_prev - m_new)
    p = jnp.exp(s - m_new)
    l_sc[...] = alpha * l_sc[...] + jnp.sum(p, axis=-1, keepdims=True)
    acc_sc[...] = alpha * acc_sc[...] + jax.lax.dot_general(
        p.astype(jnp.bfloat16), v, (((2,), (1,)), ((0,), (0,))),
        preferred_element_type=jnp.float32)
    m_sc[...] = m_new

    @pl.when(ki == pl.num_programs(2) - 1)
    def _finalize():
        inv = pl.reciprocal(l_sc[...], approx=True)
        o_ref[0] = (acc_sc[...] * inv).astype(o_ref.dtype)


def sdpa(q, k, v, attn_mask, kpm_add, tq=256, tk=512):
    """q/k/v: head-major (B, H, L, dh) bf16; attn_mask: (Lq, Lk) additive f32 or None;
    kpm_add: (B, 1, Lk) additive f32 or None.  Returns (B, H, Lq, dh) bf16."""
    B, H, Lq, dh = q.shape
    Lk = k.shape[2]
    if attn_mask is None:
        attn_mask = jnp.zeros((Lq, Lk), jnp.float32)
    else:
        attn_mask = jnp.maximum(attn_mask.astype(jnp.float32), NEG_INF)   # clamp -inf
    if kpm_add is None:
        kpm_add = jnp.zeros((B, 1, Lk), jnp.float32)

    bq, Lqp = _block(Lq, tq)
    bk, Lkp = _block(Lk, tk)
    if Lqp != Lq or Lkp != Lk:
        q = jnp.pad(q, ((0, 0), (0, 0), (0, Lqp - Lq), (0, 0)))
        k = jnp.pad(k, ((0, 0), (0, 0), (0, Lkp - Lk), (0, 0)))
        v = jnp.pad(v, ((0, 0), (0, 0), (0, Lkp - Lk), (0, 0)))
        attn_mask = jnp.pad(attn_mask, ((0, Lqp - Lq), (0, Lkp - Lk)),
                            constant_values=NEG_INF)
        kpm_add = jnp.pad(kpm_add, ((0, 0), (0, 0), (0, Lkp - Lk)),
                          constant_values=NEG_INF)

    out = pl.pallas_call(
        _flash_attn_kernel,
        out_shape=jax.ShapeDtypeStruct((B, H, Lqp, dh), jnp.bfloat16),
        grid=(B, Lqp // bq, Lkp // bk),
        in_specs=[
            pl.BlockSpec((1, H, bq, dh), lambda b, qi, ki: (b, 0, qi, 0)),
            pl.BlockSpec((1, H, bk, dh), lambda b, qi, ki: (b, 0, ki, 0)),
            pl.BlockSpec((1, H, bk, dh), lambda b, qi, ki: (b, 0, ki, 0)),
            pl.BlockSpec((bq, bk), lambda b, qi, ki: (qi, ki)),
            pl.BlockSpec((1, 1, bk), lambda b, qi, ki: (b, 0, ki)),
        ],
        out_specs=pl.BlockSpec((1, H, bq, dh), lambda b, qi, ki: (b, 0, qi, 0)),
        scratch_shapes=[
            pltpu.VMEM((H, bq, 1), jnp.float32),
            pltpu.VMEM((H, bq, 1), jnp.float32),
            pltpu.VMEM((H, bq, dh), jnp.float32),
        ],
        compiler_params=_cparams(("parallel", "parallel", "arbitrary")),
    )(q, k, v, attn_mask, kpm_add)
    if Lqp != Lq:
        out = out[:, :, :Lq]
    return out


# --------------------------------------------------------------------------
# Transformer building blocks (plain-JAX glue around the Pallas kernels)
# --------------------------------------------------------------------------
def _split_heads(x2d, B, L, H, dh):
    return jnp.transpose(x2d.reshape(B, L, H, dh), (0, 2, 1, 3))   # (B, H, L, dh)


def _merge_heads(x):
    B, H, L, dh = x.shape
    return jnp.transpose(x, (0, 2, 1, 3)).reshape(B * L, H * dh)


def self_attention_block(x, p, attn_mask, kpm_add, nhead, gamma, beta):
    B, L, E = x.shape
    dh = E // nhead
    x2 = x.reshape(B * L, E)
    qkv = linear(x2, p["w_qkv"], p["b_qkv"])                    # fused QKV, (M, 3E) bf16
    q = _split_heads(qkv[:, :E], B, L, nhead, dh)
    k = _split_heads(qkv[:, E:2 * E], B, L, nhead, dh)
    v = _split_heads(qkv[:, 2 * E:], B, L, nhead, dh)
    o2 = _merge_heads(sdpa(q, k, v, attn_mask, kpm_add))
    y = linear_residual_ln(o2, p["wo"], p["bo"], x2, gamma, beta)   # proj+res+LN fused
    return y.reshape(B, L, E)


def cross_attention_block(x, mem, p, attn_mask, kpm_add, nhead, gamma, beta):
    B, Lq, E = x.shape
    Lk = mem.shape[1]
    dh = E // nhead
    x2 = x.reshape(B * Lq, E)
    m2 = mem.reshape(B * Lk, E)
    q = _split_heads(linear(x2, p["w_q"], p["b_q"]), B, Lq, nhead, dh)
    kv = linear(m2, p["w_kv"], p["b_kv"])                        # fused KV, (Mk, 2E) bf16
    k = _split_heads(kv[:, :E], B, Lk, nhead, dh)
    v = _split_heads(kv[:, E:], B, Lk, nhead, dh)
    o2 = _merge_heads(sdpa(q, k, v, attn_mask, kpm_add))
    y = linear_residual_ln(o2, p["wo"], p["bo"], x2, gamma, beta)
    return y.reshape(B, Lq, E)


def encoder_layer(x, p, src_mask, src_kpm_add, nhead):
    x = self_attention_block(x, p["self_attn"], src_mask, src_kpm_add, nhead,
                             p["norm1_g"], p["norm1_b"])
    x = ffn_residual_ln(x, p["ffn"], p["norm2_g"], p["norm2_b"])
    return x


def decoder_layer(x, mem, p, tgt_mask, memory_mask, tgt_kpm_add, mem_kpm_add, nhead):
    x = self_attention_block(x, p["self_attn"], tgt_mask, tgt_kpm_add, nhead,
                             p["norm1_g"], p["norm1_b"])
    x = cross_attention_block(x, mem, p["cross_attn"], memory_mask, mem_kpm_add, nhead,
                              p["norm2_g"], p["norm2_b"])
    x = ffn_residual_ln(x, p["ffn"], p["norm3_g"], p["norm3_b"])
    return x


def _kpm_additive(kpm):
    if kpm is None:
        return None
    return jnp.where(kpm, NEG_INF, 0.0).astype(jnp.float32)[:, None, :]   # (B, 1, Lk)


def seq2seq_transformer_forward(params, src, tgt, src_mask, tgt_mask, memory_mask,
                                src_kpm, tgt_kpm, mem_kpm, nhead):
    # embeddings (glue: gather), residual stream kept bf16 between kernels
    src_emb = jnp.take(params["text_embedding"], src, axis=0).astype(jnp.bfloat16)
    tgt_emb = jnp.take(params["unit_embedding"], tgt, axis=0).astype(jnp.bfloat16)

    src_kpm_add = _kpm_additive(src_kpm)
    tgt_kpm_add = _kpm_additive(tgt_kpm)
    mem_kpm_add = _kpm_additive(mem_kpm)

    mem = src_emb
    for lp in params["encoder_layers"]:
        mem = encoder_layer(mem, lp, src_mask, src_kpm_add, nhead)
    mem = layer_norm(mem, params["enc_norm_g"], params["enc_norm_b"])

    x = tgt_emb
    for lp in params["decoder_layers"]:
        x = decoder_layer(x, mem, lp, tgt_mask, memory_mask, tgt_kpm_add, mem_kpm_add, nhead)
    x = layer_norm(x, params["dec_norm_g"], params["dec_norm_b"])

    B, Lt, E = x.shape
    out = linear(x.reshape(B * Lt, E), params["fc_out_w"], params["fc_out_b"],
                 out_dtype=jnp.float32, tn=1024)
    return out.reshape(B, Lt, -1)


# --------------------------------------------------------------------------
# Deterministic parameter init (synthetic; shapes follow the module __init__).
# Matmul weights bf16 (MXU operands); biases / LN params / embeddings f32.
# Softmax scale 1/sqrt(dh) folded into the q projection weights/bias.
# --------------------------------------------------------------------------
def init_params(seed, num_text_tokens, num_unit_tokens, emb_size, nhead,
                num_encoder_layers, num_decoder_layers):
    key = jax.random.PRNGKey(seed)
    counter = [0]

    def nxt():
        counter[0] += 1
        return jax.random.fold_in(key, counter[0])

    def dense(shape, scale=0.02):
        return jax.random.normal(nxt(), shape, jnp.float32) * scale

    bf16 = jnp.bfloat16
    q_scale = 1.0 / math.sqrt(emb_size // nhead)

    def mha_self():
        w_qkv = dense((emb_size, 3 * emb_size))
        b_qkv = dense((3 * emb_size,))
        w_qkv = w_qkv.at[:, :emb_size].multiply(q_scale)   # fold softmax scale into q proj
        b_qkv = b_qkv.at[:emb_size].multiply(q_scale)
        return {"w_qkv": w_qkv.astype(bf16), "b_qkv": b_qkv,
                "wo": dense((emb_size, emb_size)).astype(bf16), "bo": dense((emb_size,))}

    def mha_cross():
        return {"w_q": (dense((emb_size, emb_size)) * q_scale).astype(bf16),
                "b_q": dense((emb_size,)) * q_scale,
                "w_kv": dense((emb_size, 2 * emb_size)).astype(bf16),
                "b_kv": dense((2 * emb_size,)),
                "wo": dense((emb_size, emb_size)).astype(bf16), "bo": dense((emb_size,))}

    def ffn_p():
        return {"w1": dense((emb_size, FFN_DIM)).astype(bf16), "b1": dense((FFN_DIM,)),
                "w2": dense((FFN_DIM, emb_size)).astype(bf16), "b2": dense((emb_size,))}

    ones = jnp.ones((emb_size,), jnp.float32)
    zeros = jnp.zeros((emb_size,), jnp.float32)

    enc_layers = []
    for _ in range(num_encoder_layers):
        enc_layers.append({
            "self_attn": mha_self(), "ffn": ffn_p(),
            "norm1_g": ones, "norm1_b": zeros,
            "norm2_g": ones, "norm2_b": zeros,
        })
    dec_layers = []
    for _ in range(num_decoder_layers):
        dec_layers.append({
            "self_attn": mha_self(), "cross_attn": mha_cross(), "ffn": ffn_p(),
            "norm1_g": ones, "norm1_b": zeros,
            "norm2_g": ones, "norm2_b": zeros,
            "norm3_g": ones, "norm3_b": zeros,
        })

    return {
        "text_embedding": dense((num_text_tokens, emb_size), scale=1.0),
        "unit_embedding": dense((num_unit_tokens, emb_size), scale=1.0),
        "encoder_layers": enc_layers,
        "decoder_layers": dec_layers,
        "enc_norm_g": ones, "enc_norm_b": zeros,
        "dec_norm_g": ones, "dec_norm_b": zeros,
        "fc_out_w": dense((emb_size, num_unit_tokens)).astype(bf16),
        "fc_out_b": dense((num_unit_tokens,)),
    }


# --------------------------------------------------------------------------
if __name__ == "__main__":
    B, Ls, Lt = 2, 8, 8
    num_text_tokens, num_unit_tokens = 50, 60
    emb_size, nhead = 32, 4
    num_encoder_layers, num_decoder_layers = 2, 2

    params = init_params(0, num_text_tokens, num_unit_tokens, emb_size, nhead,
                         num_encoder_layers, num_decoder_layers)

    key = jax.random.PRNGKey(0)
    k_src, k_tgt = jax.random.split(key)
    src = jax.random.randint(k_src, (B, Ls), 0, num_text_tokens, dtype=jnp.int32)
    tgt = jax.random.randint(k_tgt, (B, Lt), 0, num_unit_tokens, dtype=jnp.int32)

    # additive float attention masks (PyTorch convention)
    src_mask = jnp.zeros((Ls, Ls), jnp.float32)
    causal = jnp.triu(jnp.ones((Lt, Lt), jnp.float32), k=1)
    tgt_mask = jnp.where(causal == 1.0, -jnp.inf, 0.0).astype(jnp.float32)
    memory_mask = jnp.zeros((Lt, Ls), jnp.float32)

    # boolean key padding masks (True = padded); keep leading positions unpadded
    src_kpm = jnp.zeros((B, Ls), bool).at[1, -2:].set(True)
    tgt_kpm = jnp.zeros((B, Lt), bool).at[1, -1:].set(True)
    mem_kpm = src_kpm

    fwd = jax.jit(functools.partial(seq2seq_transformer_forward, nhead=nhead))
    out = fwd(params, src, tgt, src_mask, tgt_mask, memory_mask,
              src_kpm, tgt_kpm, mem_kpm)
    out = jax.block_until_ready(out)

    assert out.shape == (B, Lt, num_unit_tokens), out.shape
    assert out.dtype == jnp.float32
    assert bool(jnp.all(jnp.isfinite(out)))
    print("KERNEL_OK")
</pallas_src>

<mosaic_0001>
module attributes {stable_mosaic.version = 11 : i64} {
  func.func @_linear_kernel(%arg0: i32, %arg1: i32, %arg2: i32, %arg3: memref<16x32xbf16, #tpu.memory_space<vmem>>, %arg4: memref<32x96xbf16, #tpu.memory_space<vmem>>, %arg5: memref<1x96xf32, #tpu.memory_space<vmem>>, %arg6: memref<16x96xbf16, #tpu.memory_space<vmem>>, %arg7: memref<16x96xf32, #tpu.memory_space<vmem>>) attributes {dimension_semantics = [#tpu.dimension_semantics<parallel>, #tpu.dimension_semantics<parallel>, #tpu.dimension_semantics<arbitrary>], iteration_bounds = array<i64: 1, 1, 1>, scalar_prefetch = 0 : i64, scratch_operands = 1 : i64, tpu.core_type = #tpu.core_type<tc>, window_params = [{transform_indices = @transform_0, window_bounds = array<i64: 16, 32>}, {transform_indices = @transform_1, window_bounds = array<i64: 32, 96>}, {transform_indices = @transform_2, window_bounds = array<i64: 1, 96>}, {transform_indices = @transform_3, window_bounds = array<i64: 16, 96>}]} {
    %c0_i32 = arith.constant 0 : i32
    %0 = arith.cmpi eq, %arg2, %c0_i32 : i32
    %1 = arith.extui %0 : i1 to i32
    %c0_i32_0 = arith.constant 0 : i32
    %2 = arith.cmpi ne, %1, %c0_i32_0 : i32
    scf.if %2 {
      %cst_10 = arith.constant 0.000000e+00 : f32
      %12 = vector.broadcast %cst_10 : f32 to vector<16x96xf32>
      %c0_11 = arith.constant 0 : index
      %c0_12 = arith.constant 0 : index
      %13 = vector.load %arg7[%c0_11, %c0_12] : memref<16x96xf32, #tpu.memory_space<vmem>>, vector<16x96xf32>
      tpu.vector_store %arg7[%c0_11, %c0_12], %12 {strides = array<i32>} : memref<16x96xf32, #tpu.memory_space<vmem>>, vector<16x96xf32>,
    } else {
    }
    %c0 = arith.constant 0 : index
    %c0_1 = arith.constant 0 : index
    %3 = vector.load %arg7[%c0, %c0_1] : memref<16x96xf32, #tpu.memory_space<vmem>>, vector<16x96xf32>
    %c0_2 = arith.constant 0 : index
    %c0_3 = arith.constant 0 : index
    %4 = vector.load %arg3[%c0_2, %c0_3] : memref<16x32xbf16, #tpu.memory_space<vmem>>, vector<16x32xbf16>
    %c0_4 = arith.constant 0 : index
    %c0_5 = arith.constant 0 : index
    %5 = vector.load %arg4[%c0_4, %c0_5] : memref<32x96xbf16, #tpu.memory_space<vmem>>, vector<32x96xbf16>
    %cst = arith.constant dense<0.000000e+00> : vector<16x96xf32>
    %6 = tpu.matmul %4, %5, %cst {dimension_numbers = #tpu.dot_dimension_numbers<[1], [0], [0], [1], [0, 0, 1, 1], [], []>} : vector<16x32xbf16>, vector<32x96xbf16>, vector<16x96xf32> -> vector<16x96xf32>
    %7 = arith.addf %3, %6 : vector<16x96xf32>
    %c0_6 = arith.constant 0 : index
    %c0_7 = arith.constant 0 : index
    %8 = vector.load %arg7[%c0_6, %c0_7] : memref<16x96xf32, #tpu.memory_space<vmem>>, vector<16x96xf32>
    tpu.vector_store %arg7[%c0_6, %c0_7], %7 {strides = array<i32>} : memref<16x96xf32, #tpu.memory_space<vmem>>, vector<16x96xf32>,
    %c0_i32_8 = arith.constant 0 : i32
    %9 = arith.cmpi eq, %arg2, %c0_i32_8 : i32
    %10 = arith.extui %9 : i1 to i32
    %c0_i32_9 = arith.constant 0 : i32
    %11 = arith.cmpi ne, %10, %c0_i32_9 : i32
    scf.if %11 {
      %c0_10 = arith.constant 0 : index
      %c0_11 = arith.constant 0 : index
      %12 = vector.load %arg7[%c0_10, %c0_11] : memref<16x96xf32, #tpu.memory_space<vmem>>, vector<16x96xf32>
      %c0_12 = arith.constant 0 : index
      %c0_13 = arith.constant 0 : index
      %13 = vector.load %arg5[%c0_12, %c0_13] : memref<1x96xf32, #tpu.memory_space<vmem>>, vector<1x96xf32>
      %14 = vector.broadcast %13 : vector<1x96xf32> to vector<16x96xf32>
      %15 = arith.addf %12, %14 : vector<16x96xf32>
      %16 = arith.truncf %15 : vector<16x96xf32> to vector<16x96xbf16>
      %c0_14 = arith.constant 0 : index
      %c0_15 = arith.constant 0 : index
      %17 = vector.load %arg6[%c0_14, %c0_15] : memref<16x96xbf16, #tpu.memory_space<vmem>>, vector<16x96xbf16>
      tpu.vector_store %arg6[%c0_14, %c0_15], %16 {strides = array<i32>} : memref<16x96xbf16, #tpu.memory_space<vmem>>, vector<16x96xbf16>,
    } else {
    }
    return
  }
  func.func @transform_0(%arg0: i32, %arg1: i32, %arg2: i32) -> (i32, i32) {
    %c0_i32 = arith.constant 0 : i32
    return %arg0, %arg2 : i32, i32
  }
  func.func @transform_1(%arg0: i32, %arg1: i32, %arg2: i32) -> (i32, i32) {
    %c0_i32 = arith.constant 0 : i32
    return %arg2, %arg1 : i32, i32
  }
  func.func @transform_2(%arg0: i32, %arg1: i32, %arg2: i32) -> (i32, i32) {
    %c0_i32 = arith.constant 0 : i32
    %c0_i32_0 = arith.constant 0 : i32
    return %c0_i32, %arg1 : i32, i32
  }
  func.func @transform_3(%arg0: i32, %arg1: i32, %arg2: i32) -> (i32, i32) {
    %c0_i32 = arith.constant 0 : i32
    return %arg0, %arg1 : i32, i32
  }
}

module attributes {stable_mosaic.version = 11 : i64} {
  func.func @_linear_res_ln_kernel(%arg0: i32, %arg1: i32, %arg2: memref<16x32xbf16, #tpu.memory_space<vmem>>, %arg3: memref<32x32xbf16, #tpu.memory_space<vmem>>, %arg4: memref<1x32xf32, #tpu.memory_space<vmem>>, %arg5: memref<16x32xbf16, #tpu.memory_space<vmem>>, %arg6: memref<1x32xf32, #tpu.memory_space<vmem>>, %arg7: memref<1x32xf32, #tpu.memory_space<vmem>>, %arg8: memref<16x32xbf16, #tpu.memory_space<vmem>>, %arg9: memref<16x32xf32, #tpu.memory_space<vmem>>) attributes {dimension_semantics = [#tpu.dimension_semantics<parallel>, #tpu.dimension_semantics<arbitrary>], iteration_bounds = array<i64: 1, 1>, scalar_prefetch = 0 : i64, scratch_operands = 1 : i64, tpu.core_type = #tpu.core_type<tc>, window_params = [{transform_indices = @transform_0, window_bounds = array<i64: 16, 32>}, {transform_indices = @transform_1, window_bounds = array<i64: 32, 32>}, {pipeline_mode = #tpu.pipeline_mode<synchronous>, transform_indices = @transform_2, window_bounds = array<i64: 1, 32>}, {transform_indices = @transform_3, window_bounds = array<i64: 16, 32>}, {pipeline_mode = #tpu.pipeline_mode<synchronous>, transform_indices = @transform_4, window_bounds = array<i64: 1, 32>}, {pipeline_mode = #tpu.pipeline_mode<synchronous>, transform_indices = @transform_5, window_bounds = array<i64: 1, 32>}, {transform_indices = @transform_6, window_bounds = array<i64: 16, 32>}]} {
    %c0_i32 = arith.constant 0 : i32
    %0 = arith.cmpi eq, %arg1, %c0_i32 : i32
    %1 = arith.extui %0 : i1 to i32
    %c0_i32_0 = arith.constant 0 : i32
    %2 = arith.cmpi ne, %1, %c0_i32_0 : i32
    scf.if %2 {
      %cst_10 = arith.constant 0.000000e+00 : f32
      %12 = vector.broadcast %cst_10 : f32 to vector<16x32xf32>
      %c0_11 = arith.constant 0 : index
      %c0_12 = arith.constant 0 : index
      %13 = vector.load %arg9[%c0_11, %c0_12] : memref<16x32xf32, #tpu.memory_space<vmem>>, vector<16x32xf32>
      tpu.vector_store %arg9[%c0_11, %c0_12], %12 {strides = array<i32>} : memref<16x32xf32, #tpu.memory_space<vmem>>, vector<16x32xf32>,
    } else {
    }
    %c0 = arith.constant 0 : index
    %c0_1 = arith.constant 0 : index
    %3 = vector.load %arg9[%c0, %c0_1] : memref<16x32xf32, #tpu.memory_space<vmem>>, vector<16x32xf32>
    %c0_2 = arith.constant 0 : index
    %c0_3 = arith.constant 0 : index
    %4 = vector.load %arg2[%c0_2, %c0_3] : memref<16x32xbf16, #tpu.memory_space<vmem>>, vector<16x32xbf16>
    %c0_4 = arith.constant 0 : index
    %c0_5 = arith.constant 0 : index
    %5 = vector.load %arg3[%c0_4, %c0_5] : memref<32x32xbf16, #tpu.memory_space<vmem>>, vector<32x32xbf16>
    %cst = arith.constant dense<0.000000e+00> : vector<16x32xf32>
    %6 = tpu.matmul %4, %5, %cst {dimension_numbers = #tpu.dot_dimension_numbers<[1], [0], [0], [1], [0, 0, 1, 1], [], []>} : vector<16x32xbf16>, vector<32x32xbf16>, vector<16x32xf32> -> vector<16x32xf32>
    %7 = arith.addf %3, %6 : vector<16x32xf32>
    %c0_6 = arith.constant 0 : index
    %c0_7 = arith.constant 0 : index
    %8 = vector.load %arg9[%c0_6, %c0_7] : memref<16x32xf32, #tpu.memory_space<vmem>>, vector<16x32xf32>
    tpu.vector_store %arg9[%c0_6, %c0_7], %7 {strides = array<i32>} : memref<16x32xf32, #tpu.memory_space<vmem>>, vector<16x32xf32>,
    %c0_i32_8 = arith.constant 0 : i32
    %9 = arith.cmpi eq, %arg1, %c0_i32_8 : i32
    %10 = arith.extui %9 : i1 to i32
    %c0_i32_9 = arith.constant 0 : i32
    %11 = arith.cmpi ne, %10, %c0_i32_9 : i32
    scf.if %11 {
      %c0_10 = arith.constant 0 : index
      %c0_11 = arith.constant 0 : index
      %12 = vector.load %arg9[%c0_10, %c0_11] : memref<16x32xf32, #tpu.memory_space<vmem>>, vector<16x32xf32>
      %c0_12 = arith.constant 0 : index
      %c0_13 = arith.constant 0 : index
      %13 = vector.load %arg4[%c0_12, %c0_13] : memref<1x32xf32, #tpu.memory_space<vmem>>, vector<1x32xf32>
      %14 = vector.broadcast %13 : vector<1x32xf32> to vector<16x32xf32>
      %15 = arith.addf %12, %14 : vector<16x32xf32>
      %c0_14 = arith.constant 0 : index
      %c0_15 = arith.constant 0 : index
      %16 = vector.load %arg5[%c0_14, %c0_15] : memref<16x32xbf16, #tpu.memory_space<vmem>>, vector<16x32xbf16>
      %17 = arith.extf %16 : vector<16x32xbf16> to vector<16x32xf32>
      %18 = arith.addf %15, %17 : vector<16x32xf32>
      %c0_16 = arith.constant 0 : index
      %c0_17 = arith.constant 0 : index
      %19 = vector.load %arg6[%c0_16, %c0_17] : memref<1x32xf32, #tpu.memory_space<vmem>>, vector<1x32xf32>
      %c0_18 = arith.constant 0 : index
      %c0_19 = arith.constant 0 : index
      %20 = vector.load %arg7[%c0_18, %c0_19] : memref<1x32xf32, #tpu.memory_space<vmem>>, vector<1x32xf32>
      %cst_20 = arith.constant dense<0.000000e+00> : vector<16xf32>
      %21 = vector.multi_reduction <add>, %18, %cst_20 [1] : vector<16x32xf32> to vector<16xf32>
      %22 = vector.shape_cast %21 : vector<16xf32> to vector<16x1xf32>
      %cst_21 = arith.constant 3.200000e+01 : f32
      %23 = vector.broadcast %cst_21 : f32 to vector<16x1xf32>
      %24 = arith.divf %22, %23 : vector<16x1xf32>
      %25 = vector.broadcast %24 : vector<16x1xf32> to vector<16x32xf32>
      %26 = arith.subf %18, %25 : vector<16x32xf32>
      %27 = arith.mulf %26, %26 : vector<16x32xf32>
      %cst_22 = arith.constant dense<0.000000e+00> : vector<16xf32>
      %28 = vector.multi_reduction <add>, %27, %cst_22 [1] : vector<16x32xf32> to vector<16xf32>
      %29 = vector.shape_cast %28 : vector<16xf32> to vector<16x1xf32>
      %cst_23 = arith.constant 3.200000e+01 : f32
      %30 = vector.broadcast %cst_23 : f32 to vector<16x1xf32>
      %31 = arith.divf %29, %30 : vector<16x1xf32>
      %32 = vector.broadcast %24 : vector<16x1xf32> to vector<16x32xf32>
      %33 = arith.subf %18, %32 : vector<16x32xf32>
      %cst_24 = arith.constant 9.99999974E-6 : f32
      %34 = vector.broadcast %cst_24 : f32 to vector<16x1xf32>
      %35 = arith.addf %31, %34 : vector<16x1xf32>
      %36 = math.rsqrt %35 : vector<16x1xf32>
      %37 = vector.broadcast %36 : vector<16x1xf32> to vector<16x32xf32>
      %38 = arith.mulf %33, %37 : vector<16x32xf32>
      %39 = vector.broadcast %19 : vector<1x32xf32> to vector<16x32xf32>
      %40 = arith.mulf %38, %39 : vector<16x32xf32>
      %41 = vector.broadcast %20 : vector<1x32xf32> to vector<16x32xf32>
      %42 = arith.addf %40, %41 : vector<16x32xf32>
      %43 = arith.truncf %42 : vector<16x32xf32> to vector<16x32xbf16>
      %c0_25 = arith.constant 0 : index
      %c0_26 = arith.constant 0 : index
      %44 = vector.load %arg8[%c0_25, %c0_26] : memref<16x32xbf16, #tpu.memory_space<vmem>>, vector<16x32xbf16>
      tpu.vector_store %arg8[%c0_25, %c0_26], %43 {strides = array<i32>} : memref<16x32xbf16, #tpu.memory_space<vmem>>, vector<16x32xbf16>,
    } else {
    }
    return
  }
  func.func @transform_0(%arg0: i32, %arg1: i32) -> (i32, i32) {
    %c0_i32 = arith.constant 0 : i32
    return %arg0, %arg1 : i32, i32
  }
  func.func @transform_1(%arg0: i32, %arg1: i32) -> (i32, i32) {
    %c0_i32 = arith.constant 0 : i32
    %c0_i32_0 = arith.constant 0 : i32
    return %arg1, %c0_i32 : i32, i32
  }
  func.func @transform_2(%arg0: i32, %arg1: i32) -> (i32, i32) {
    %c0_i32 = arith.constant 0 : i32
    %c0_i32_0 = arith.constant 0 : i32
    %c0_i32_1 = arith.constant 0 : i32
    return %c0_i32, %c0_i32_0 : i32, i32
  }
  func.func @transform_3(%arg0: i32, %arg1: i32) -> (i32, i32) {
    %c0_i32 = arith.constant 0 : i32
    %c0_i32_0 = arith.constant 0 : i32
    return %arg0, %c0_i32 : i32, i32
  }
  func.func @transform_4(%arg0: i32, %arg1: i32) -> (i32, i32) {
    %c0_i32 = arith.constant 0 : i32
    %c0_i32_0 = arith.constant 0 : i32
    %c0_i32_1 = arith.constant 0 : i32
    return %c0_i32, %c0_i32_0 : i32, i32
  }
  func.func @transform_5(%arg0: i32, %arg1: i32) -> (i32, i32) {
    %c0_i32 = arith.constant 0 : i32
    %c0_i32_0 = arith.constant 0 : i32
    %c0_i32_1 = arith.constant 0 : i32
    return %c0_i32, %c0_i32_0 : i32, i32
  }
  func.func @transform_6(%arg0: i32, %arg1: i32) -> (i32, i32) {
    %c0_i32 = arith.constant 0 : i32
    %c0_i32_0 = arith.constant 0 : i32
    return %arg0, %c0_i32 : i32, i32
  }
}

module attributes {stable_mosaic.version = 11 : i64} {
  func.func @_flash_attn_kernel(%arg0: i32, %arg1: i32, %arg2: i32, %arg3: memref<1x4x8x8xbf16, #tpu.memory_space<vmem>>, %arg4: memref<1x4x8x8xbf16, #tpu.memory_space<vmem>>, %arg5: memref<1x4x8x8xbf16, #tpu.memory_space<vmem>>, %arg6: memref<8x8xf32, #tpu.memory_space<vmem>>, %arg7: memref<1x1x8xf32, #tpu.memory_space<vmem>>, %arg8: memref<1x4x8x8xbf16, #tpu.memory_space<vmem>>, %arg9: memref<4x8x1xf32, #tpu.memory_space<vmem>>, %arg10: memref<4x8x1xf32, #tpu.memory_space<vmem>>, %arg11: memref<4x8x8xf32, #tpu.memory_space<vmem>>) attributes {dimension_semantics = [#tpu.dimension_semantics<parallel>, #tpu.dimension_semantics<parallel>, #tpu.dimension_semantics<arbitrary>], iteration_bounds = array<i64: 2, 1, 1>, scalar_prefetch = 0 : i64, scratch_operands = 3 : i64, tpu.core_type = #tpu.core_type<tc>, window_params = [{transform_indices = @transform_0, window_bounds = array<i64: 1, 4, 8, 8>}, {transform_indices = @transform_1, window_bounds = array<i64: 1, 4, 8, 8>}, {transform_indices = @transform_2, window_bounds = array<i64: 1, 4, 8, 8>}, {transform_indices = @transform_3, window_bounds = array<i64: 8, 8>}, {transform_indices = @transform_4, window_bounds = array<i64: 1, 1, 8>}, {transform_indices = @transform_5, window_bounds = array<i64: 1, 4, 8, 8>}]} {
    %c0_i32 = arith.constant 0 : i32
    %0 = arith.cmpi eq, %arg2, %c0_i32 : i32
    %1 = arith.extui %0 : i1 to i32
    %c0_i32_0 = arith.constant 0 : i32
    %2 = arith.cmpi ne, %1, %c0_i32_0 : i32
    scf.if %2 {
      %cst_40 = arith.constant -1.000000e+30 : f32
      %44 = vector.broadcast %cst_40 : f32 to vector<4x8x1xf32>
      %c0_41 = arith.constant 0 : index
      %c0_42 = arith.constant 0 : index
      %c0_43 = arith.constant 0 : index
      %45 = vector.load %arg9[%c0_41, %c0_42, %c0_43] : memref<4x8x1xf32, #tpu.memory_space<vmem>>, vector<4x8x1xf32>
      tpu.vector_store %arg9[%c0_41, %c0_42, %c0_43], %44 {strides = array<i32>} : memref<4x8x1xf32, #tpu.memory_space<vmem>>, vector<4x8x1xf32>,
      %cst_44 = arith.constant 0.000000e+00 : f32
      %46 = vector.broadcast %cst_44 : f32 to vector<4x8x1xf32>
      %c0_45 = arith.constant 0 : index
      %c0_46 = arith.constant 0 : index
      %c0_47 = arith.constant 0 : index
      %47 = vector.load %arg10[%c0_45, %c0_46, %c0_47] : memref<4x8x1xf32, #tpu.memory_space<vmem>>, vector<4x8x1xf32>
      tpu.vector_store %arg10[%c0_45, %c0_46, %c0_47], %46 {strides = array<i32>} : memref<4x8x1xf32, #tpu.memory_space<vmem>>, vector<4x8x1xf32>,
      %cst_48 = arith.constant 0.000000e+00 : f32
      %48 = vector.broadcast %cst_48 : f32 to vector<4x8x8xf32>
      %c0_49 = arith.constant 0 : index
      %c0_50 = arith.constant 0 : index
      %c0_51 = arith.constant 0 : index
      %49 = vector.load %arg11[%c0_49, %c0_50, %c0_51] : memref<4x8x8xf32, #tpu.memory_space<vmem>>, vector<4x8x8xf32>
      tpu.vector_store %arg11[%c0_49, %c0_50, %c0_51], %48 {strides = array<i32>} : memref<4x8x8xf32, #tpu.memory_space<vmem>>, vector<4x8x8xf32>,
    } else {
    }
    %c0 = arith.constant 0 : index
    %c0_1 = arith.constant 0 : index
    %c0_2 = arith.constant 0 : index
    %c0_3 = arith.constant 0 : index
    %3 = vector.load %arg3[%c0, %c0_1, %c0_2, %c0_3] : memref<1x4x8x8xbf16, #tpu.memory_space<vmem>>, vector<1x4x8x8xbf16>
    %4 = vector.shape_cast %3 : vector<1x4x8x8xbf16> to vector<4x8x8xbf16>
    %c0_4 = arith.constant 0 : index
    %c0_5 = arith.constant 0 : index
    %c0_6 = arith.constant 0 : index
    %c0_7 = arith.constant 0 : index
    %5 = vector.load %arg4[%c0_4, %c0_5, %c0_6, %c0_7] : memref<1x4x8x8xbf16, #tpu.memory_space<vmem>>, vector<1x4x8x8xbf16>
    %6 = vector.shape_cast %5 : vector<1x4x8x8xbf16> to vector<4x8x8xbf16>
    %c0_8 = arith.constant 0 : index
    %c0_9 = arith.constant 0 : index
    %c0_10 = arith.constant 0 : index
    %c0_11 = arith.constant 0 : index
    %7 = vector.load %arg5[%c0_8, %c0_9, %c0_10, %c0_11] : memref<1x4x8x8xbf16, #tpu.memory_space<vmem>>, vector<1x4x8x8xbf16>
    %8 = vector.shape_cast %7 : vector<1x4x8x8xbf16> to vector<4x8x8xbf16>
    %c0_12 = arith.constant 0 : index
    %c0_13 = arith.constant 0 : index
    %9 = vector.load %arg6[%c0_12, %c0_13] : memref<8x8xf32, #tpu.memory_space<vmem>>, vector<8x8xf32>
    %c0_14 = arith.constant 0 : index
    %c0_15 = arith.constant 0 : index
    %c0_16 = arith.constant 0 : index
    %10 = vector.load %arg7[%c0_14, %c0_15, %c0_16] : memref<1x1x8xf32, #tpu.memory_space<vmem>>, vector<1x1x8xf32>
    %11 = vector.shape_cast %10 : vector<1x1x8xf32> to vector<1x8xf32>
    %12 = vector.broadcast %11 : vector<1x8xf32> to vector<8x8xf32>
    %13 = arith.addf %9, %12 : vector<8x8xf32>
    %cst = arith.constant dense<0.000000e+00> : vector<4x8x8xf32>
    %14 = tpu.matmul %4, %6, %cst {dimension_numbers = #tpu.dot_dimension_numbers<[2], [2], [1], [1], [0, 0, 0, 1, 1, 1], [0], [0]>} : vector<4x8x8xbf16>, vector<4x8x8xbf16>, vector<4x8x8xf32> -> vector<4x8x8xf32>
    %15 = vector.shape_cast %13 : vector<8x8xf32> to vector<1x8x8xf32>
    %16 = vector.broadcast %15 : vector<1x8x8xf32> to vector<4x8x8xf32>
    %17 = arith.addf %14, %16 : vector<4x8x8xf32>
    %c0_17 = arith.constant 0 : index
    %c0_18 = arith.constant 0 : index
    %c0_19 = arith.constant 0 : index
    %18 = vector.load %arg9[%c0_17, %c0_18, %c0_19] : memref<4x8x1xf32, #tpu.memory_space<vmem>>, vector<4x8x1xf32>
    %cst_20 = arith.constant dense<0xFF800000> : vector<4x8xf32>
    %19 = vector.multi_reduction <maximumf>, %17, %cst_20 [2] : vector<4x8x8xf32> to vector<4x8xf32>
    %20 = vector.shape_cast %19 : vector<4x8xf32> to vector<4x8x1xf32>
    %21 = arith.maximumf %18, %20 : vector<4x8x1xf32>
    %22 = arith.subf %18, %21 : vector<4x8x1xf32>
    %23 = math.exp %22 : vector<4x8x1xf32>
    %24 = vector.broadcast %21 : vector<4x8x1xf32> to vector<4x8x8xf32>
    %25 = arith.subf %17, %24 : vector<4x8x8xf32>
    %26 = math.exp %25 : vector<4x8x8xf32>
    %c0_21 = arith.constant 0 : index
    %c0_22 = arith.constant 0 : index
    %c0_23 = arith.constant 0 : index
    %27 = vector.load %arg10[%c0_21, %c0_22, %c0_23] : memref<4x8x1xf32, #tpu.memory_space<vmem>>, vector<4x8x1xf32>
    %28 = arith.mulf %23, %27 : vector<4x8x1xf32>
    %cst_24 = arith.constant dense<0.000000e+00> : vector<4x8xf32>
    %29 = vector.multi_reduction <add>, %26, %cst_24 [2] : vector<4x8x8xf32> to vector<4x8xf32>
    %30 = vector.shape_cast %29 : vector<4x8xf32> to vector<4x8x1xf32>
    %31 = arith.addf %28, %30 : vector<4x8x1xf32>
    %c0_25 = arith.constant 0 : index
    %c0_26 = arith.constant 0 : index
    %c0_27 = arith.constant 0 : index
    %32 = vector.load %arg10[%c0_25, %c0_26, %c0_27] : memref<4x8x1xf32, #tpu.memory_space<vmem>>, vector<4x8x1xf32>
    tpu.vector_store %arg10[%c0_25, %c0_26, %c0_27], %31 {strides = array<i32>} : memref<4x8x1xf32, #tpu.memory_space<vmem>>, vector<4x8x1xf32>,
    %c0_28 = arith.constant 0 : index
    %c0_29 = arith.constant 0 : index
    %c0_30 = arith.constant 0 : index
    %33 = vector.load %arg11[%c0_28, %c0_29, %c0_30] : memref<4x8x8xf32, #tpu.memory_space<vmem>>, vector<4x8x8xf32>
    %34 = vector.broadcast %23 : vector<4x8x1xf32> to vector<4x8x8xf32>
    %35 = arith.mulf %34, %33 : vector<4x8x8xf32>
    %36 = arith.truncf %26 : vector<4x8x8xf32> to vector<4x8x8xbf16>
    %cst_31 = arith.constant dense<0.000000e+00> : vector<4x8x8xf32>
    %37 = tpu.matmul %36, %8, %cst_31 {dimension_numbers = #tpu.dot_dimension_numbers<[2], [1], [1], [2], [0, 0, 0, 1, 1, 2], [0], [0]>} : vector<4x8x8xbf16>, vector<4x8x8xbf16>, vector<4x8x8xf32> -> vector<4x8x8xf32>
    %38 = arith.addf %35, %37 : vector<4x8x8xf32>
    %c0_32 = arith.constant 0 : index
    %c0_33 = arith.constant 0 : index
    %c0_34 = arith.constant 0 : index
    %39 = vector.load %arg11[%c0_32, %c0_33, %c0_34] : memref<4x8x8xf32, #tpu.memory_space<vmem>>, vector<4x8x8xf32>
    tpu.vector_store %arg11[%c0_32, %c0_33, %c0_34], %38 {strides = array<i32>} : memref<4x8x8xf32, #tpu.memory_space<vmem>>, vector<4x8x8xf32>,
    %c0_35 = arith.constant 0 : index
    %c0_36 = arith.constant 0 : index
    %c0_37 = arith.constant 0 : index
    %40 = vector.load %arg9[%c0_35, %c0_36, %c0_37] : memref<4x8x1xf32, #tpu.memory_space<vmem>>, vector<4x8x1xf32>
    tpu.vector_store %arg9[%c0_35, %c0_36, %c0_37], %21 {strides = array<i32>} : memref<4x8x1xf32, #tpu.memory_space<vmem>>, vector<4x8x1xf32>,
    %c0_i32_38 = arith.constant 0 : i32
    %41 = arith.cmpi eq, %arg2, %c0_i32_38 : i32
    %42 = arith.extui %41 : i1 to i32
    %c0_i32_39 = arith.constant 0 : i32
    %43 = arith.cmpi ne, %42, %c0_i32_39 : i32
    scf.if %43 {
      %c0_40 = arith.constant 0 : index
      %c0_41 = arith.constant 0 : index
      %c0_42 = arith.constant 0 : index
      %44 = vector.load %arg10[%c0_40, %c0_41, %c0_42] : memref<4x8x1xf32, #tpu.memory_space<vmem>>, vector<4x8x1xf32>
      %45 = tpu.reciprocal %44 {approx = true} : vector<4x8x1xf32> -> vector<4x8x1xf32>
      %c0_43 = arith.constant 0 : index
      %c0_44 = arith.constant 0 : index
      %c0_45 = arith.constant 0 : index
      %46 = vector.load %arg11[%c0_43, %c0_44, %c0_45] : memref<4x8x8xf32, #tpu.memory_space<vmem>>, vector<4x8x8xf32>
      %47 = vector.broadcast %45 : vector<4x8x1xf32> to vector<4x8x8xf32>
      %48 = arith.mulf %46, %47 : vector<4x8x8xf32>
      %49 = arith.truncf %48 : vector<4x8x8xf32> to vector<4x8x8xbf16>
      %c0_46 = arith.constant 0 : index
      %c0_47 = arith.constant 0 : index
      %c0_48 = arith.constant 0 : index
      %c0_49 = arith.constant 0 : index
      %50 = vector.load %arg8[%c0_46, %c0_47, %c0_48, %c0_49] : memref<1x4x8x8xbf16, #tpu.memory_space<vmem>>, vector<1x4x8x8xbf16>
      %51 = vector.shape_cast %50 : vector<1x4x8x8xbf16> to vector<4x8x8xbf16>
      %52 = vector.shape_cast %49 : vector<4x8x8xbf16> to vector<1x4x8x8xbf16>
      tpu.vector_store %arg8[%c0_46, %c0_47, %c0_48, %c0_49], %52 {strides = array<i32>} : memref<1x4x8x8xbf16, #tpu.memory_space<vmem>>, vector<1x4x8x8xbf16>,
    } else {
    }
    return
  }
  func.func @transform_0(%arg0: i32, %arg1: i32, %arg2: i32) -> (i32, i32, i32, i32) {
    %c0_i32 = arith.constant 0 : i32
    %c0_i32_0 = arith.constant 0 : i32
    %c0_i32_1 = arith.constant 0 : i32
    return %arg0, %c0_i32, %arg1, %c0_i32_0 : i32, i32, i32, i32
  }
  func.func @transform_1(%arg0: i32, %arg1: i32, %arg2: i32) -> (i32, i32, i32, i32) {
    %c0_i32 = arith.constant 0 : i32
    %c0_i32_0 = arith.constant 0 : i32
    %c0_i32_1 = arith.constant 0 : i32
    return %arg0, %c0_i32, %arg2, %c0_i32_0 : i32, i32, i32, i32
  }
  func.func @transform_2(%arg0: i32, %arg1: i32, %arg2: i32) -> (i32, i32, i32, i32) {
    %c0_i32 = arith.constant 0 : i32
    %c0_i32_0 = arith.constant 0 : i32
    %c0_i32_1 = arith.constant 0 : i32
    return %arg0, %c0_i32, %arg2, %c0_i32_0 : i32, i32, i32, i32
  }
  func.func @transform_3(%arg0: i32, %arg1: i32, %arg2: i32) -> (i32, i32) {
    %c0_i32 = arith.constant 0 : i32
    return %arg1, %arg2 : i32, i32
  }
  func.func @transform_4(%arg0: i32, %arg1: i32, %arg2: i32) -> (i32, i32, i32) {
    %c0_i32 = arith.constant 0 : i32
    %c0_i32_0 = arith.constant 0 : i32
    return %arg0, %c0_i32, %arg2 : i32, i32, i32
  }
  func.func @transform_5(%arg0: i32, %arg1: i32, %arg2: i32) -> (i32, i32, i32, i32) {
    %c0_i32 = arith.constant 0 : i32
    %c0_i32_0 = arith.constant 0 : i32
    %c0_i32_1 = arith.constant 0 : i32
    return %arg0, %c0_i32, %arg1, %c0_i32_0 : i32, i32, i32, i32
  }
}

module attributes {stable_mosaic.version = 11 : i64} {
  func.func @_ffn_res_ln_kernel(%arg0: i32, %arg1: i32, %arg2: memref<16x32xbf16, #tpu.memory_space<vmem>>, %arg3: memref<32x512xbf16, #tpu.memory_space<vmem>>, %arg4: memref<1x512xf32, #tpu.memory_space<vmem>>, %arg5: memref<512x32xbf16, #tpu.memory_space<vmem>>, %arg6: memref<1x32xf32, #tpu.memory_space<vmem>>, %arg7: memref<1x32xf32, #tpu.memory_space<vmem>>, %arg8: memref<1x32xf32, #tpu.memory_space<vmem>>, %arg9: memref<16x32xbf16, #tpu.memory_space<vmem>>, %arg10: memref<16x32xf32, #tpu.memory_space<vmem>>) attributes {dimension_semantics = [#tpu.dimension_semantics<parallel>, #tpu.dimension_semantics<arbitrary>], iteration_bounds = array<i64: 1, 4>, scalar_prefetch = 0 : i64, scratch_operands = 1 : i64, tpu.core_type = #tpu.core_type<tc>, window_params = [{transform_indices = @transform_0, window_bounds = array<i64: 16, 32>}, {transform_indices = @transform_1, window_bounds = array<i64: 32, 512>}, {transform_indices = @transform_2, window_bounds = array<i64: 1, 512>}, {transform_indices = @transform_3, window_bounds = array<i64: 512, 32>}, {pipeline_mode = #tpu.pipeline_mode<synchronous>, transform_indices = @transform_4, window_bounds = array<i64: 1, 32>}, {pipeline_mode = #tpu.pipeline_mode<synchronous>, transform_indices = @transform_5, window_bounds = array<i64: 1, 32>}, {pipeline_mode = #tpu.pipeline_mode<synchronous>, transform_indices = @transform_6, window_bounds = array<i64: 1, 32>}, {transform_indices = @transform_7, window_bounds = array<i64: 16, 32>}]} {
    %c0_i32 = arith.constant 0 : i32
    %0 = arith.cmpi eq, %arg1, %c0_i32 : i32
    %1 = arith.extui %0 : i1 to i32
    %c0_i32_0 = arith.constant 0 : i32
    %2 = arith.cmpi ne, %1, %c0_i32_0 : i32
    scf.if %2 {
      %cst_15 = arith.constant 0.000000e+00 : f32
      %20 = vector.broadcast %cst_15 : f32 to vector<16x32xf32>
      %c0_16 = arith.constant 0 : index
      %c0_17 = arith.constant 0 : index
      %21 = vector.load %arg10[%c0_16, %c0_17] : memref<16x32xf32, #tpu.memory_space<vmem>>, vector<16x32xf32>
      tpu.vector_store %arg10[%c0_16, %c0_17], %20 {strides = array<i32>} : memref<16x32xf32, #tpu.memory_space<vmem>>, vector<16x32xf32>,
    } else {
    }
    %c0 = arith.constant 0 : index
    %c0_1 = arith.constant 0 : index
    %3 = vector.load %arg2[%c0, %c0_1] : memref<16x32xbf16, #tpu.memory_space<vmem>>, vector<16x32xbf16>
    %c0_2 = arith.constant 0 : index
    %c0_3 = arith.constant 0 : index
    %4 = vector.load %arg3[%c0_2, %c0_3] : memref<32x512xbf16, #tpu.memory_space<vmem>>, vector<32x512xbf16>
    %cst = arith.constant dense<0.000000e+00> : vector<16x512xf32>
    %5 = tpu.matmul %3, %4, %cst {dimension_numbers = #tpu.dot_dimension_numbers<[1], [0], [0], [1], [0, 0, 1, 1], [], []>} : vector<16x32xbf16>, vector<32x512xbf16>, vector<16x512xf32> -> vector<16x512xf32>
    %c0_4 = arith.constant 0 : index
    %c0_5 = arith.constant 0 : index
    %6 = vector.load %arg4[%c0_4, %c0_5] : memref<1x512xf32, #tpu.memory_space<vmem>>, vector<1x512xf32>
    %7 = vector.broadcast %6 : vector<1x512xf32> to vector<16x512xf32>
    %8 = arith.addf %5, %7 : vector<16x512xf32>
    %cst_6 = arith.constant 0.000000e+00 : f32
    %9 = vector.broadcast %cst_6 : f32 to vector<16x512xf32>
    %10 = arith.maximumf %8, %9 : vector<16x512xf32>
    %11 = arith.truncf %10 : vector<16x512xf32> to vector<16x512xbf16>
    %c0_7 = arith.constant 0 : index
    %c0_8 = arith.constant 0 : index
    %12 = vector.load %arg10[%c0_7, %c0_8] : memref<16x32xf32, #tpu.memory_space<vmem>>, vector<16x32xf32>
    %c0_9 = arith.constant 0 : index
    %c0_10 = arith.constant 0 : index
    %13 = vector.load %arg5[%c0_9, %c0_10] : memref<512x32xbf16, #tpu.memory_space<vmem>>, vector<512x32xbf16>
    %cst_11 = arith.constant dense<0.000000e+00> : vector<16x32xf32>
    %14 = tpu.matmul %11, %13, %cst_11 {dimension_numbers = #tpu.dot_dimension_numbers<[1], [0], [0], [1], [0, 0, 1, 1], [], []>} : vector<16x512xbf16>, vector<512x32xbf16>, vector<16x32xf32> -> vector<16x32xf32>
    %15 = arith.addf %12, %14 : vector<16x32xf32>
    %c0_12 = arith.constant 0 : index
    %c0_13 = arith.constant 0 : index
    %16 = vector.load %arg10[%c0_12, %c0_13] : memref<16x32xf32, #tpu.memory_space<vmem>>, vector<16x32xf32>
    tpu.vector_store %arg10[%c0_12, %c0_13], %15 {strides = array<i32>} : memref<16x32xf32, #tpu.memory_space<vmem>>, vector<16x32xf32>,
    %c3_i32 = arith.constant 3 : i32
    %17 = arith.cmpi eq, %arg1, %c3_i32 : i32
    %18 = arith.extui %17 : i1 to i32
    %c0_i32_14 = arith.constant 0 : i32
    %19 = arith.cmpi ne, %18, %c0_i32_14 : i32
    scf.if %19 {
      %c0_15 = arith.constant 0 : index
      %c0_16 = arith.constant 0 : index
      %20 = vector.load %arg10[%c0_15, %c0_16] : memref<16x32xf32, #tpu.memory_space<vmem>>, vector<16x32xf32>
      %c0_17 = arith.constant 0 : index
      %c0_18 = arith.constant 0 : index
      %21 = vector.load %arg6[%c0_17, %c0_18] : memref<1x32xf32, #tpu.memory_space<vmem>>, vector<1x32xf32>
      %22 = vector.broadcast %21 : vector<1x32xf32> to vector<16x32xf32>
      %23 = arith.addf %20, %22 : vector<16x32xf32>
      %c0_19 = arith.constant 0 : index
      %c0_20 = arith.constant 0 : index
      %24 = vector.load %arg2[%c0_19, %c0_20] : memref<16x32xbf16, #tpu.memory_space<vmem>>, vector<16x32xbf16>
      %25 = arith.extf %24 : vector<16x32xbf16> to vector<16x32xf32>
      %26 = arith.addf %23, %25 : vector<16x32xf32>
      %c0_21 = arith.constant 0 : index
      %c0_22 = arith.constant 0 : index
      %27 = vector.load %arg7[%c0_21, %c0_22] : memref<1x32xf32, #tpu.memory_space<vmem>>, vector<1x32xf32>
      %c0_23 = arith.constant 0 : index
      %c0_24 = arith.constant 0 : index
      %28 = vector.load %arg8[%c0_23, %c0_24] : memref<1x32xf32, #tpu.memory_space<vmem>>, vector<1x32xf32>
      %cst_25 = arith.constant dense<0.000000e+00> : vector<16xf32>
      %29 = vector.multi_reduction <add>, %26, %cst_25 [1] : vector<16x32xf32> to vector<16xf32>
      %30 = vector.shape_cast %29 : vector<16xf32> to vector<16x1xf32>
      %cst_26 = arith.constant 3.200000e+01 : f32
      %31 = vector.broadcast %cst_26 : f32 to vector<16x1xf32>
      %32 = arith.divf %30, %31 : vector<16x1xf32>
      %33 = vector.broadcast %32 : vector<16x1xf32> to vector<16x32xf32>
      %34 = arith.subf %26, %33 : vector<16x32xf32>
      %35 = arith.mulf %34, %34 : vector<16x32xf32>
      %cst_27 = arith.constant dense<0.000000e+00> : vector<16xf32>
      %36 = vector.multi_reduction <add>, %35, %cst_27 [1] : vector<16x32xf32> to vector<16xf32>
      %37 = vector.shape_cast %36 : vector<16xf32> to vector<16x1xf32>
      %cst_28 = arith.constant 3.200000e+01 : f32
      %38 = vector.broadcast %cst_28 : f32 to vector<16x1xf32>
      %39 = arith.divf %37, %38 : vector<16x1xf32>
      %40 = vector.broadcast %32 : vector<16x1xf32> to vector<16x32xf32>
      %41 = arith.subf %26, %40 : vector<16x32xf32>
      %cst_29 = arith.constant 9.99999974E-6 : f32
      %42 = vector.broadcast %cst_29 : f32 to vector<16x1xf32>
      %43 = arith.addf %39, %42 : vector<16x1xf32>
      %44 = math.rsqrt %43 : vector<16x1xf32>
      %45 = vector.broadcast %44 : vector<16x1xf32> to vector<16x32xf32>
      %46 = arith.mulf %41, %45 : vector<16x32xf32>
      %47 = vector.broadcast %27 : vector<1x32xf32> to vector<16x32xf32>
      %48 = arith.mulf %46, %47 : vector<16x32xf32>
      %49 = vector.broadcast %28 : vector<1x32xf32> to vector<16x32xf32>
      %50 = arith.addf %48, %49 : vector<16x32xf32>
      %51 = arith.truncf %50 : vector<16x32xf32> to vector<16x32xbf16>
      %c0_30 = arith.constant 0 : index
      %c0_31 = arith.constant 0 : index
      %52 = vector.load %arg9[%c0_30, %c0_31] : memref<16x32xbf16, #tpu.memory_space<vmem>>, vector<16x32xbf16>
      tpu.vector_store %arg9[%c0_30, %c0_31], %51 {strides = array<i32>} : memref<16x32xbf16, #tpu.memory_space<vmem>>, vector<16x32xbf16>,
    } else {
    }
    return
  }
  func.func @transform_0(%arg0: i32, %arg1: i32) -> (i32, i32) {
    %c0_i32 = arith.constant 0 : i32
    %c0_i32_0 = arith.constant 0 : i32
    return %arg0, %c0_i32 : i32, i32
  }
  func.func @transform_1(%arg0: i32, %arg1: i32) -> (i32, i32) {
    %c0_i32 = arith.constant 0 : i32
    %c0_i32_0 = arith.constant 0 : i32
    return %c0_i32, %arg1 : i32, i32
  }
  func.func @transform_2(%arg0: i32, %arg1: i32) -> (i32, i32) {
    %c0_i32 = arith.constant 0 : i32
    %c0_i32_0 = arith.constant 0 : i32
    return %c0_i32, %arg1 : i32, i32
  }
  func.func @transform_3(%arg0: i32, %arg1: i32) -> (i32, i32) {
    %c0_i32 = arith.constant 0 : i32
    %c0_i32_0 = arith.constant 0 : i32
    return %arg1, %c0_i32 : i32, i32
  }
  func.func @transform_4(%arg0: i32, %arg1: i32) -> (i32, i32) {
    %c0_i32 = arith.constant 0 : i32
    %c0_i32_0 = arith.constant 0 : i32
    %c0_i32_1 = arith.constant 0 : i32
    return %c0_i32, %c0_i32_0 : i32, i32
  }
  func.func @transform_5(%arg0: i32, %arg1: i32) -> (i32, i32) {
    %c0_i32 = arith.constant 0 : i32
    %c0_i32_0 = arith.constant 0 : i32
    %c0_i32_1 = arith.constant 0 : i32
    return %c0_i32, %c0_i32_0 : i32, i32
  }
  func.func @transform_6(%arg0: i32, %arg1: i32) -> (i32, i32) {
    %c0_i32 = arith.constant 0 : i32
    %c0_i32_0 = arith.constant 0 : i32
    %c0_i32_1 = arith.constant 0 : i32
    return %c0_i32, %c0_i32_0 : i32, i32
  }
  func.func @transform_7(%arg0: i32, %arg1: i32) -> (i32, i32) {
    %c0_i32 = arith.constant 0 : i32
    %c0_i32_0 = arith.constant 0 : i32
    return %arg0, %c0_i32 : i32, i32
  }
}

module attributes {stable_mosaic.version = 11 : i64} {
  func.func @_ln_kernel(%arg0: i32, %arg1: memref<16x32xbf16, #tpu.memory_space<vmem>>, %arg2: memref<1x32xf32, #tpu.memory_space<vmem>>, %arg3: memref<1x32xf32, #tpu.memory_space<vmem>>, %arg4: memref<16x32xbf16, #tpu.memory_space<vmem>>) attributes {dimension_semantics = [#tpu.dimension_semantics<parallel>], iteration_bounds = array<i64: 1>, scalar_prefetch = 0 : i64, scratch_operands = 0 : i64, tpu.core_type = #tpu.core_type<tc>, window_params = [{transform_indices = @transform_0, window_bounds = array<i64: 16, 32>}, {pipeline_mode = #tpu.pipeline_mode<synchronous>, transform_indices = @transform_1, window_bounds = array<i64: 1, 32>}, {pipeline_mode = #tpu.pipeline_mode<synchronous>, transform_indices = @transform_2, window_bounds = array<i64: 1, 32>}, {transform_indices = @transform_3, window_bounds = array<i64: 16, 32>}]} {
    %c0 = arith.constant 0 : index
    %c0_0 = arith.constant 0 : index
    %0 = vector.load %arg1[%c0, %c0_0] : memref<16x32xbf16, #tpu.memory_space<vmem>>, vector<16x32xbf16>
    %c0_1 = arith.constant 0 : index
    %c0_2 = arith.constant 0 : index
    %1 = vector.load %arg2[%c0_1, %c0_2] : memref<1x32xf32, #tpu.memory_space<vmem>>, vector<1x32xf32>
    %c0_3 = arith.constant 0 : index
    %c0_4 = arith.constant 0 : index
    %2 = vector.load %arg3[%c0_3, %c0_4] : memref<1x32xf32, #tpu.memory_space<vmem>>, vector<1x32xf32>
    %3 = arith.extf %0 : vector<16x32xbf16> to vector<16x32xf32>
    %cst = arith.constant dense<0.000000e+00> : vector<16xf32>
    %4 = vector.multi_reduction <add>, %3, %cst [1] : vector<16x32xf32> to vector<16xf32>
    %5 = vector.shape_cast %4 : vector<16xf32> to vector<16x1xf32>
    %cst_5 = arith.constant 3.200000e+01 : f32
    %6 = vector.broadcast %cst_5 : f32 to vector<16x1xf32>
    %7 = arith.divf %5, %6 : vector<16x1xf32>
    %8 = vector.broadcast %7 : vector<16x1xf32> to vector<16x32xf32>
    %9 = arith.subf %3, %8 : vector<16x32xf32>
    %10 = arith.mulf %9, %9 : vector<16x32xf32>
    %cst_6 = arith.constant dense<0.000000e+00> : vector<16xf32>
    %11 = vector.multi_reduction <add>, %10, %cst_6 [1] : vector<16x32xf32> to vector<16xf32>
    %12 = vector.shape_cast %11 : vector<16xf32> to vector<16x1xf32>
    %cst_7 = arith.constant 3.200000e+01 : f32
    %13 = vector.broadcast %cst_7 : f32 to vector<16x1xf32>
    %14 = arith.divf %12, %13 : vector<16x1xf32>
    %15 = vector.broadcast %7 : vector<16x1xf32> to vector<16x32xf32>
    %16 = arith.subf %3, %15 : vector<16x32xf32>
    %cst_8 = arith.constant 9.99999974E-6 : f32
    %17 = vector.broadcast %cst_8 : f32 to vector<16x1xf32>
    %18 = arith.addf %14, %17 : vector<16x1xf32>
    %19 = math.rsqrt %18 : vector<16x1xf32>
    %20 = vector.broadcast %19 : vector<16x1xf32> to vector<16x32xf32>
    %21 = arith.mulf %16, %20 : vector<16x32xf32>
    %22 = vector.broadcast %1 : vector<1x32xf32> to vector<16x32xf32>
    %23 = arith.mulf %21, %22 : vector<16x32xf32>
    %24 = vector.broadcast %2 : vector<1x32xf32> to vector<16x32xf32>
    %25 = arith.addf %23, %24 : vector<16x32xf32>
    %26 = arith.truncf %25 : vector<16x32xf32> to vector<16x32xbf16>
    %c0_9 = arith.constant 0 : index
    %c0_10 = arith.constant 0 : index
    %27 = vector.load %arg4[%c0_9, %c0_10] : memref<16x32xbf16, #tpu.memory_space<vmem>>, vector<16x32xbf16>
    tpu.vector_store %arg4[%c0_9, %c0_10], %26 {strides = array<i32>} : memref<16x32xbf16, #tpu.memory_space<vmem>>, vector<16x32xbf16>,
    return
  }
  func.func @transform_0(%arg0: i32) -> (i32, i32) {
    %c0_i32 = arith.constant 0 : i32
    %c0_i32_0 = arith.constant 0 : i32
    return %arg0, %c0_i32 : i32, i32
  }
  func.func @transform_1(%arg0: i32) -> (i32, i32) {
    %c0_i32 = arith.constant 0 : i32
    %c0_i32_0 = arith.constant 0 : i32
    %c0_i32_1 = arith.constant 0 : i32
    return %c0_i32, %c0_i32_0 : i32, i32
  }
  func.func @transform_2(%arg0: i32) -> (i32, i32) {
    %c0_i32 = arith.constant 0 : i32
    %c0_i32_0 = arith.constant 0 : i32
    %c0_i32_1 = arith.constant 0 : i32
    return %c0_i32, %c0_i32_0 : i32, i32
  }
  func.func @transform_3(%arg0: i32) -> (i32, i32) {
    %c0_i32 = arith.constant 0 : i32
    %c0_i32_0 = arith.constant 0 : i32
    return %arg0, %c0_i32 : i32, i32
  }
}

module attributes {stable_mosaic.version = 11 : i64} {
  func.func @_linear_kernel(%arg0: i32, %arg1: i32, %arg2: i32, %arg3: memref<16x32xbf16, #tpu.memory_space<vmem>>, %arg4: memref<32x64xbf16, #tpu.memory_space<vmem>>, %arg5: memref<1x64xf32, #tpu.memory_space<vmem>>, %arg6: memref<16x64xbf16, #tpu.memory_space<vmem>>, %arg7: memref<16x64xf32, #tpu.memory_space<vmem>>) attributes {dimension_semantics = [#tpu.dimension_semantics<parallel>, #tpu.dimension_semantics<parallel>, #tpu.dimension_semantics<arbitrary>], iteration_bounds = array<i64: 1, 1, 1>, scalar_prefetch = 0 : i64, scratch_operands = 1 : i64, tpu.core_type = #tpu.core_type<tc>, window_params = [{transform_indices = @transform_0, window_bounds = array<i64: 16, 32>}, {transform_indices = @transform_1, window_bounds = array<i64: 32, 64>}, {transform_indices = @transform_2, window_bounds = array<i64: 1, 64>}, {transform_indices = @transform_3, window_bounds = array<i64: 16, 64>}]} {
    %c0_i32 = arith.constant 0 : i32
    %0 = arith.cmpi eq, %arg2, %c0_i32 : i32
    %1 = arith.extui %0 : i1 to i32
    %c0_i32_0 = arith.constant 0 : i32
    %2 = arith.cmpi ne, %1, %c0_i32_0 : i32
    scf.if %2 {
      %cst_10 = arith.constant 0.000000e+00 : f32
      %12 = vector.broadcast %cst_10 : f32 to vector<16x64xf32>
      %c0_11 = arith.constant 0 : index
      %c0_12 = arith.constant 0 : index
      %13 = vector.load %arg7[%c0_11, %c0_12] : memref<16x64xf32, #tpu.memory_space<vmem>>, vector<16x64xf32>
      tpu.vector_store %arg7[%c0_11, %c0_12], %12 {strides = array<i32>} : memref<16x64xf32, #tpu.memory_space<vmem>>, vector<16x64xf32>,
    } else {
    }
    %c0 = arith.constant 0 : index
    %c0_1 = arith.constant 0 : index
    %3 = vector.load %arg7[%c0, %c0_1] : memref<16x64xf32, #tpu.memory_space<vmem>>, vector<16x64xf32>
    %c0_2 = arith.constant 0 : index
    %c0_3 = arith.constant 0 : index
    %4 = vector.load %arg3[%c0_2, %c0_3] : memref<16x32xbf16, #tpu.memory_space<vmem>>, vector<16x32xbf16>
    %c0_4 = arith.constant 0 : index
    %c0_5 = arith.constant 0 : index
    %5 = vector.load %arg4[%c0_4, %c0_5] : memref<32x64xbf16, #tpu.memory_space<vmem>>, vector<32x64xbf16>
    %cst = arith.constant dense<0.000000e+00> : vector<16x64xf32>
    %6 = tpu.matmul %4, %5, %cst {dimension_numbers = #tpu.dot_dimension_numbers<[1], [0], [0], [1], [0, 0, 1, 1], [], []>} : vector<16x32xbf16>, vector<32x64xbf16>, vector<16x64xf32> -> vector<16x64xf32>
    %7 = arith.addf %3, %6 : vector<16x64xf32>
    %c0_6 = arith.constant 0 : index
    %c0_7 = arith.constant 0 : index
    %8 = vector.load %arg7[%c0_6, %c0_7] : memref<16x64xf32, #tpu.memory_space<vmem>>, vector<16x64xf32>
    tpu.vector_store %arg7[%c0_6, %c0_7], %7 {strides = array<i32>} : memref<16x64xf32, #tpu.memory_space<vmem>>, vector<16x64xf32>,
    %c0_i32_8 = arith.constant 0 : i32
    %9 = arith.cmpi eq, %arg2, %c0_i32_8 : i32
    %10 = arith.extui %9 : i1 to i32
    %c0_i32_9 = arith.constant 0 : i32
    %11 = arith.cmpi ne, %10, %c0_i32_9 : i32
    scf.if %11 {
      %c0_10 = arith.constant 0 : index
      %c0_11 = arith.constant 0 : index
      %12 = vector.load %arg7[%c0_10, %c0_11] : memref<16x64xf32, #tpu.memory_space<vmem>>, vector<16x64xf32>
      %c0_12 = arith.constant 0 : index
      %c0_13 = arith.constant 0 : index
      %13 = vector.load %arg5[%c0_12, %c0_13] : memref<1x64xf32, #tpu.memory_space<vmem>>, vector<1x64xf32>
      %14 = vector.broadcast %13 : vector<1x64xf32> to vector<16x64xf32>
      %15 = arith.addf %12, %14 : vector<16x64xf32>
      %16 = arith.truncf %15 : vector<16x64xf32> to vector<16x64xbf16>
      %c0_14 = arith.constant 0 : index
      %c0_15 = arith.constant 0 : index
      %17 = vector.load %arg6[%c0_14, %c0_15] : memref<16x64xbf16, #tpu.memory_space<vmem>>, vector<16x64xbf16>
      tpu.vector_store %arg6[%c0_14, %c0_15], %16 {strides = array<i32>} : memref<16x64xbf16, #tpu.memory_space<vmem>>, vector<16x64xbf16>,
    } else {
    }
    return
  }
  func.func @transform_0(%arg0: i32, %arg1: i32, %arg2: i32) -> (i32, i32) {
    %c0_i32 = arith.constant 0 : i32
    return %arg0, %arg2 : i32, i32
  }
  func.func @transform_1(%arg0: i32, %arg1: i32, %arg2: i32) -> (i32, i32) {
    %c0_i32 = arith.constant 0 : i32
    return %arg2, %arg1 : i32, i32
  }
  func.func @transform_2(%arg0: i32, %arg1: i32, %arg2: i32) -> (i32, i32) {
    %c0_i32 = arith.constant 0 : i32
    %c0_i32_0 = arith.constant 0 : i32
    return %c0_i32, %arg1 : i32, i32
  }
  func.func @transform_3(%arg0: i32, %arg1: i32, %arg2: i32) -> (i32, i32) {
    %c0_i32 = arith.constant 0 : i32
    return %arg0, %arg1 : i32, i32
  }
}

module attributes {stable_mosaic.version = 11 : i64} {
  func.func @_linear_kernel(%arg0: i32, %arg1: i32, %arg2: i32, %arg3: memref<16x32xbf16, #tpu.memory_space<vmem>>, %arg4: memref<32x32xbf16, #tpu.memory_space<vmem>>, %arg5: memref<1x32xf32, #tpu.memory_space<vmem>>, %arg6: memref<16x32xbf16, #tpu.memory_space<vmem>>, %arg7: memref<16x32xf32, #tpu.memory_space<vmem>>) attributes {dimension_semantics = [#tpu.dimension_semantics<parallel>, #tpu.dimension_semantics<parallel>, #tpu.dimension_semantics<arbitrary>], iteration_bounds = array<i64: 1, 1, 1>, scalar_prefetch = 0 : i64, scratch_operands = 1 : i64, tpu.core_type = #tpu.core_type<tc>, window_params = [{transform_indices = @transform_0, window_bounds = array<i64: 16, 32>}, {transform_indices = @transform_1, window_bounds = array<i64: 32, 32>}, {transform_indices = @transform_2, window_bounds = array<i64: 1, 32>}, {transform_indices = @transform_3, window_bounds = array<i64: 16, 32>}]} {
    %c0_i32 = arith.constant 0 : i32
    %0 = arith.cmpi eq, %arg2, %c0_i32 : i32
    %1 = arith.extui %0 : i1 to i32
    %c0_i32_0 = arith.constant 0 : i32
    %2 = arith.cmpi ne, %1, %c0_i32_0 : i32
    scf.if %2 {
      %cst_10 = arith.constant 0.000000e+00 : f32
      %12 = vector.broadcast %cst_10 : f32 to vector<16x32xf32>
      %c0_11 = arith.constant 0 : index
      %c0_12 = arith.constant 0 : index
      %13 = vector.load %arg7[%c0_11, %c0_12] : memref<16x32xf32, #tpu.memory_space<vmem>>, vector<16x32xf32>
      tpu.vector_store %arg7[%c0_11, %c0_12], %12 {strides = array<i32>} : memref<16x32xf32, #tpu.memory_space<vmem>>, vector<16x32xf32>,
    } else {
    }
    %c0 = arith.constant 0 : index
    %c0_1 = arith.constant 0 : index
    %3 = vector.load %arg7[%c0, %c0_1] : memref<16x32xf32, #tpu.memory_space<vmem>>, vector<16x32xf32>
    %c0_2 = arith.constant 0 : index
    %c0_3 = arith.constant 0 : index
    %4 = vector.load %arg3[%c0_2, %c0_3] : memref<16x32xbf16, #tpu.memory_space<vmem>>, vector<16x32xbf16>
    %c0_4 = arith.constant 0 : index
    %c0_5 = arith.constant 0 : index
    %5 = vector.load %arg4[%c0_4, %c0_5] : memref<32x32xbf16, #tpu.memory_space<vmem>>, vector<32x32xbf16>
    %cst = arith.constant dense<0.000000e+00> : vector<16x32xf32>
    %6 = tpu.matmul %4, %5, %cst {dimension_numbers = #tpu.dot_dimension_numbers<[1], [0], [0], [1], [0, 0, 1, 1], [], []>} : vector<16x32xbf16>, vector<32x32xbf16>, vector<16x32xf32> -> vector<16x32xf32>
    %7 = arith.addf %3, %6 : vector<16x32xf32>
    %c0_6 = arith.constant 0 : index
    %c0_7 = arith.constant 0 : index
    %8 = vector.load %arg7[%c0_6, %c0_7] : memref<16x32xf32, #tpu.memory_space<vmem>>, vector<16x32xf32>
    tpu.vector_store %arg7[%c0_6, %c0_7], %7 {strides = array<i32>} : memref<16x32xf32, #tpu.memory_space<vmem>>, vector<16x32xf32>,
    %c0_i32_8 = arith.constant 0 : i32
    %9 = arith.cmpi eq, %arg2, %c0_i32_8 : i32
    %10 = arith.extui %9 : i1 to i32
    %c0_i32_9 = arith.constant 0 : i32
    %11 = arith.cmpi ne, %10, %c0_i32_9 : i32
    scf.if %11 {
      %c0_10 = arith.constant 0 : index
      %c0_11 = arith.constant 0 : index
      %12 = vector.load %arg7[%c0_10, %c0_11] : memref<16x32xf32, #tpu.memory_space<vmem>>, vector<16x32xf32>
      %c0_12 = arith.constant 0 : index
      %c0_13 = arith.constant 0 : index
      %13 = vector.load %arg5[%c0_12, %c0_13] : memref<1x32xf32, #tpu.memory_space<vmem>>, vector<1x32xf32>
      %14 = vector.broadcast %13 : vector<1x32xf32> to vector<16x32xf32>
      %15 = arith.addf %12, %14 : vector<16x32xf32>
      %16 = arith.truncf %15 : vector<16x32xf32> to vector<16x32xbf16>
      %c0_14 = arith.constant 0 : index
      %c0_15 = arith.constant 0 : index
      %17 = vector.load %arg6[%c0_14, %c0_15] : memref<16x32xbf16, #tpu.memory_space<vmem>>, vector<16x32xbf16>
      tpu.vector_store %arg6[%c0_14, %c0_15], %16 {strides = array<i32>} : memref<16x32xbf16, #tpu.memory_space<vmem>>, vector<16x32xbf16>,
    } else {
    }
    return
  }
  func.func @transform_0(%arg0: i32, %arg1: i32, %arg2: i32) -> (i32, i32) {
    %c0_i32 = arith.constant 0 : i32
    return %arg0, %arg2 : i32, i32
  }
  func.func @transform_1(%arg0: i32, %arg1: i32, %arg2: i32) -> (i32, i32) {
    %c0_i32 = arith.constant 0 : i32
    return %arg2, %arg1 : i32, i32
  }
  func.func @transform_2(%arg0: i32, %arg1: i32, %arg2: i32) -> (i32, i32) {
    %c0_i32 = arith.constant 0 : i32
    %c0_i32_0 = arith.constant 0 : i32
    return %c0_i32, %arg1 : i32, i32
  }
  func.func @transform_3(%arg0: i32, %arg1: i32, %arg2: i32) -> (i32, i32) {
    %c0_i32 = arith.constant 0 : i32
    return %arg0, %arg1 : i32, i32
  }
}

module attributes {stable_mosaic.version = 11 : i64} {
  func.func @_linear_kernel(%arg0: i32, %arg1: i32, %arg2: i32, %arg3: memref<16x32xbf16, #tpu.memory_space<vmem>>, %arg4: memref<32x60xbf16, #tpu.memory_space<vmem>>, %arg5: memref<1x60xf32, #tpu.memory_space<vmem>>, %arg6: memref<16x60xf32, #tpu.memory_space<vmem>>, %arg7: memref<16x60xf32, #tpu.memory_space<vmem>>) attributes {dimension_semantics = [#tpu.dimension_semantics<parallel>, #tpu.dimension_semantics<parallel>, #tpu.dimension_semantics<arbitrary>], iteration_bounds = array<i64: 1, 1, 1>, scalar_prefetch = 0 : i64, scratch_operands = 1 : i64, tpu.core_type = #tpu.core_type<tc>, window_params = [{transform_indices = @transform_0, window_bounds = array<i64: 16, 32>}, {transform_indices = @transform_1, window_bounds = array<i64: 32, 60>}, {transform_indices = @transform_2, window_bounds = array<i64: 1, 60>}, {transform_indices = @transform_3, window_bounds = array<i64: 16, 60>}]} {
    %c0_i32 = arith.constant 0 : i32
    %0 = arith.cmpi eq, %arg2, %c0_i32 : i32
    %1 = arith.extui %0 : i1 to i32
    %c0_i32_0 = arith.constant 0 : i32
    %2 = arith.cmpi ne, %1, %c0_i32_0 : i32
    scf.if %2 {
      %cst_10 = arith.constant 0.000000e+00 : f32
      %12 = vector.broadcast %cst_10 : f32 to vector<16x60xf32>
      %c0_11 = arith.constant 0 : index
      %c0_12 = arith.constant 0 : index
      %13 = vector.load %arg7[%c0_11, %c0_12] : memref<16x60xf32, #tpu.memory_space<vmem>>, vector<16x60xf32>
      tpu.vector_store %arg7[%c0_11, %c0_12], %12 {strides = array<i32>} : memref<16x60xf32, #tpu.memory_space<vmem>>, vector<16x60xf32>,
    } else {
    }
    %c0 = arith.constant 0 : index
    %c0_1 = arith.constant 0 : index
    %3 = vector.load %arg7[%c0, %c0_1] : memref<16x60xf32, #tpu.memory_space<vmem>>, vector<16x60xf32>
    %c0_2 = arith.constant 0 : index
    %c0_3 = arith.constant 0 : index
    %4 = vector.load %arg3[%c0_2, %c0_3] : memref<16x32xbf16, #tpu.memory_space<vmem>>, vector<16x32xbf16>
    %c0_4 = arith.constant 0 : index
    %c0_5 = arith.constant 0 : index
    %5 = vector.load %arg4[%c0_4, %c0_5] : memref<32x60xbf16, #tpu.memory_space<vmem>>, vector<32x60xbf16>
    %cst = arith.constant dense<0.000000e+00> : vector<16x60xf32>
    %6 = tpu.matmul %4, %5, %cst {dimension_numbers = #tpu.dot_dimension_numbers<[1], [0], [0], [1], [0, 0, 1, 1], [], []>} : vector<16x32xbf16>, vector<32x60xbf16>, vector<16x60xf32> -> vector<16x60xf32>
    %7 = arith.addf %3, %6 : vector<16x60xf32>
    %c0_6 = arith.constant 0 : index
    %c0_7 = arith.constant 0 : index
    %8 = vector.load %arg7[%c0_6, %c0_7] : memref<16x60xf32, #tpu.memory_space<vmem>>, vector<16x60xf32>
    tpu.vector_store %arg7[%c0_6, %c0_7], %7 {strides = array<i32>} : memref<16x60xf32, #tpu.memory_space<vmem>>, vector<16x60xf32>,
    %c0_i32_8 = arith.constant 0 : i32
    %9 = arith.cmpi eq, %arg2, %c0_i32_8 : i32
    %10 = arith.extui %9 : i1 to i32
    %c0_i32_9 = arith.constant 0 : i32
    %11 = arith.cmpi ne, %10, %c0_i32_9 : i32
    scf.if %11 {
      %c0_10 = arith.constant 0 : index
      %c0_11 = arith.constant 0 : index
      %12 = vector.load %arg7[%c0_10, %c0_11] : memref<16x60xf32, #tpu.memory_space<vmem>>, vector<16x60xf32>
      %c0_12 = arith.constant 0 : index
      %c0_13 = arith.constant 0 : index
      %13 = vector.load %arg5[%c0_12, %c0_13] : memref<1x60xf32, #tpu.memory_space<vmem>>, vector<1x60xf32>
      %14 = vector.broadcast %13 : vector<1x60xf32> to vector<16x60xf32>
      %15 = arith.addf %12, %14 : vector<16x60xf32>
      %c0_14 = arith.constant 0 : index
      %c0_15 = arith.constant 0 : index
      %16 = vector.load %arg6[%c0_14, %c0_15] : memref<16x60xf32, #tpu.memory_space<vmem>>, vector<16x60xf32>
      tpu.vector_store %arg6[%c0_14, %c0_15], %15 {strides = array<i32>} : memref<16x60xf32, #tpu.memory_space<vmem>>, vector<16x60xf32>,
    } else {
    }
    return
  }
  func.func @transform_0(%arg0: i32, %arg1: i32, %arg2: i32) -> (i32, i32) {
    %c0_i32 = arith.constant 0 : i32
    return %arg0, %arg2 : i32, i32
  }
  func.func @transform_1(%arg0: i32, %arg1: i32, %arg2: i32) -> (i32, i32) {
    %c0_i32 = arith.constant 0 : i32
    return %arg2, %arg1 : i32, i32
  }
  func.func @transform_2(%arg0: i32, %arg1: i32, %arg2: i32) -> (i32, i32) {
    %c0_i32 = arith.constant 0 : i32
    %c0_i32_0 = arith.constant 0 : i32
    return %c0_i32, %arg1 : i32, i32
  }
  func.func @transform_3(%arg0: i32, %arg1: i32, %arg2: i32) -> (i32, i32) {
    %c0_i32 = arith.constant 0 : i32
    return %arg0, %arg1 : i32, i32
  }
}

</mosaic_0001>

<llo_original>
// kernel: seq2seq_transformer_forward.27
$region0: #{seq2seq_transformer_forward.27}
  #allocation0 [shape = 'u32[]', space=smem, size = 0x4, offset = 0x4, fixed_abs, tag = 'smem constant byte address 0x4 - core index']
  #allocation1 [shape = 'u32[72,128]{1,0:T(1,128)}', space=vmem, size = 0x9000, scoped, tag = 'internal scratch']
  #allocation2 [shape = 'f32[16,96]{1,0:T(8,128)}', space=vmem, size = 0x2000, scoped, tag = 'scratch operand']
  %s0 = inlined_call_operand.vmem [shape: bf16[16,32], index: 0, kind: input, shape index: {}]
  %s1 = inlined_call_operand.vmem [shape: bf16[32,96], index: 1, kind: input, shape index: {}]
  %s2 = inlined_call_operand.vmem [shape: f32[1,96], index: 2, kind: input, shape index: {}]
  %s3 = inlined_call_operand.vmem [shape: bf16[16,96], index: 3, kind: output, shape index: {}]
  %s4 = sld [smem:[#allocation0]]
  $region30: #{seq2seq_transformer_forward.27} parent=0
    _
  %s6 = ssub.s32 1, %s4
  %s7 = scalar_select 0, %s6, %s4
  // Predicated region
  $region2: #{seq2seq_transformer_forward.27} parent=0 // pred_check
    _
  $region3: #{seq2seq_transformer_forward.27} parent=0 // pred_check_branch
    %9 = sbr.rel (0) target = $region5
  $region4: #{seq2seq_transformer_forward.27} parent=0 // pred_region
    _
  $region5: #{seq2seq_transformer_forward.27} parent=0 // pred_fallthru
    _
  // Predicated region
  $region6: #{seq2seq_transformer_forward.27} parent=0 // pred_check
    _
  $region7: #{seq2seq_transformer_forward.27} parent=0 // pred_check_branch
    %11 = sbr.rel (0) target = $region9
  $region8: #{seq2seq_transformer_forward.27} parent=0 // pred_region
    _
  $region9: #{seq2seq_transformer_forward.27} parent=0 // pred_fallthru
    _
  // Predicated region
  $region10: #{seq2seq_transformer_forward.27} parent=0 // pred_check
    _
  $region11: #{seq2seq_transformer_forward.27} parent=0 // pred_check_branch
    %13 = sbr.rel (0) target = $region13
  $region12: #{seq2seq_transformer_forward.27} parent=0 // pred_region
    _
  $region13: #{seq2seq_transformer_forward.27} parent=0 // pred_fallthru
    _
  %p15 = scmp.eq.s32.totalorder 0, 0
  // Predicated region
  $region14: #{seq2seq_transformer_forward.27} parent=0 // pred_check
    %p16 = pneg %p15
  $region15: #{seq2seq_transformer_forward.27} parent=0 // pred_check_branch
    %18 = sbr.rel (%p16) target = $region17
  $region16: #{seq2seq_transformer_forward.27} parent=0 // pred_region
    %vm19 = vcmask 785408
    %20 = vst.msk [vmem:[#allocation2] sm:$0xff] %vm19, 0.0
    %21 = vst.msk [vmem:[#allocation2 + $0x8] sm:$0xff] %vm19, 0.0
  $region17: #{seq2seq_transformer_forward.27} parent=0 // pred_fallthru
    _
  %v22 = vld [vmem:[#allocation2] sm:$0xff]
  %v23 = vld [vmem:[#allocation2 + $0x8] sm:$0xff]
  %v24 = vld [vmem:[%s0] sm:$0xf]
  %v25 = vld [vmem:[%s0 + $0x4] sm:$0xf]
  %v26 = vld [vmem:[%s1] sm:$0xf]
  %v27 = vld [vmem:[%s1 + $0x4] sm:$0xf]
  %v28 = vld [vmem:[%s1 + $0x8] sm:$0xf]
  %v29 = vld [vmem:[%s1 + $0xc] sm:$0xf]
  %v32 = vunpack.c.l.b16 %v24
  %v33 = vunpack.c.l.b16 %v25
  %v34 = vpack.c.b16 %v33, %v32
  %v39 = vunpack.c.l.b16 %v26
  %v40 = vunpack.c.l.b16 %v27
  %v41 = vunpack.c.l.b16 %v28
  %v42 = vunpack.c.l.b16 %v29
  %v43 = vpack.c.b16 %v40, %v39
  %v44 = vpack.c.b16 %v42, %v41
  %vm47 = vcmask 261120
  %v49 = vsel %vm47, %v34, 0
  %51 = vmatpush.bf16.msra.mxu0 0
  %52 = vmatpush.bf16.msra.mxu0 0
  %53 = vmatpush.bf16.msra.mxu0 0
  %54 = vmatpush.bf16.msra.mxu0 0
  %55 = vmatpush.bf16.msra.mxu0 0
  %56 = vmatpush.bf16.msra.mxu0 0
  %57 = vmatpush.bf16.msra.mxu0 %v44
  %58 = vmatpush.bf16.msra.mxu0 %v43
  %59 = vmatmul.bf16.gmra.mxu0 %v49
  %v60 = vpop.f32.mrf.mxu0
  %v61 = vadd.f32 0.0, %v60
  %v62 = vpop.f32.mrf.mxu0
  %v63 = vadd.f32 0.0, %v62
  %64 = vdwg.mxu0
  %v65 = vadd.f32 %v22, %v61
  %v66 = vadd.f32 %v23, %v63
  %vm67 = vcmask 785408
  %68 = vst.msk [vmem:[#allocation2] sm:$0xff] %vm67, %v65
  %69 = vst.msk [vmem:[#allocation2 + $0x8] sm:$0xff] %vm67, %v66
  // Predicated region
  $region18: #{seq2seq_transformer_forward.27} parent=0 // pred_check
    %p70 = pneg %p15
  $region19: #{seq2seq_transformer_forward.27} parent=0 // pred_check_branch
    %72 = sbr.rel (%p70) target = $region21
  $region20: #{seq2seq_transformer_forward.27} parent=0 // pred_region
    %v73 = vld [vmem:[#allocation2] sm:$0xff]
    %v74 = vld [vmem:[#allocation2 + $0x8] sm:$0xff]
    %v75 = vld [vmem:[%s2] sm:$0x1]
    %v77 = vperm.slane %v75, 0
    %v79 = vadd.f32 %v73, %v77
    %v80 = vadd.f32 %v74, %v77
    %v81 = vpack.c.bf16 %v79, %v79
    %v82 = vpack.c.bf16 %v80, %v80
    %vm83 = vcmask 781312
    %84 = vst.msk [vmem:[%s3] sm:$0xf] %vm83, %v81
    %85 = vst.msk [vmem:[%s3 + $0x4] sm:$0xf] %vm83, %v82
  $region21: #{seq2seq_transformer_forward.27} parent=0 // pred_fallthru
    _
  // Predicated region
  $region22: #{seq2seq_transformer_forward.27} parent=0 // pred_check
    _
  $region23: #{seq2seq_transformer_forward.27} parent=0 // pred_check_branch
    %87 = sbr.rel (0) target = $region25
  $region24: #{seq2seq_transformer_forward.27} parent=0 // pred_region
    _
  $region25: #{seq2seq_transformer_forward.27} parent=0 // pred_fallthru
    _
  // Predicated region
  $region26: #{seq2seq_transformer_forward.27} parent=0 // pred_check
    _
  $region27: #{seq2seq_transformer_forward.27} parent=0 // pred_check_branch
    %89 = sbr.rel (0) target = $region29
  $region28: #{seq2seq_transformer_forward.27} parent=0 // pred_region
    _
  $region29: #{seq2seq_transformer_forward.27} parent=0 // pred_fallthru
    _

// kernel: seq2seq_transformer_forward.29
$region0: #{seq2seq_transformer_forward.29}
  #allocation0 [shape = 'u32[]', space=smem, size = 0x4, offset = 0x4, fixed_abs, tag = 'smem constant byte address 0x4 - core index']
  #allocation1 [shape = 'u32[72,128]{1,0:T(1,128)}', space=vmem, size = 0x9000, scoped, tag = 'internal scratch']
  #allocation2 [shape = 'f32[16,32]{1,0:T(8,128)}', space=vmem, size = 0x2000, scoped, tag = 'scratch operand']
  %s0 = inlined_call_operand.vmem [shape: bf16[16,32], index: 0, kind: input, shape index: {}]
  %s1 = inlined_call_operand.vmem [shape: bf16[32,32], index: 1, kind: input, shape index: {}]
  %s2 = inlined_call_operand.vmem [shape: f32[1,32], index: 2, kind: input, shape index: {}]
  %s3 = inlined_call_operand.vmem [shape: bf16[16,32], index: 3, kind: input, shape index: {}]
  %s4 = inlined_call_operand.vmem [shape: f32[1,32], index: 4, kind: input, shape index: {}]
  %s5 = inlined_call_operand.vmem [shape: f32[1,32], index: 5, kind: input, shape index: {}]
  %s6 = inlined_call_operand.vmem [shape: bf16[16,32], index: 6, kind: output, shape index: {}]
  %s7 = sld [smem:[#allocation0]]
  $region42: #{seq2seq_transformer_forward.29} parent=0
    _
  %s9 = ssub.s32 1, %s7
  %s10 = scalar_select 0, %s9, %s7
  // Predicated region
  $region2: #{seq2seq_transformer_forward.29} parent=0 // pred_check
    _
  $region3: #{seq2seq_transformer_forward.29} parent=0 // pred_check_branch
    %12 = sbr.rel (0) target = $region5
  $region4: #{seq2seq_transformer_forward.29} parent=0 // pred_region
    _
  $region5: #{seq2seq_transformer_forward.29} parent=0 // pred_fallthru
    _
  // Predicated region
  $region6: #{seq2seq_transformer_forward.29} parent=0 // pred_check
    _
  $region7: #{seq2seq_transformer_forward.29} parent=0 // pred_check_branch
    %14 = sbr.rel (0) target = $region9
  $region8: #{seq2seq_transformer_forward.29} parent=0 // pred_region
    _
  $region9: #{seq2seq_transformer_forward.29} parent=0 // pred_fallthru
    _
  // Predicated region
  $region10: #{seq2seq_transformer_forward.29} parent=0 // pred_check
    _
  $region11: #{seq2seq_transformer_forward.29} parent=0 // pred_check_branch
    %16 = sbr.rel (0) target = $region13
  $region12: #{seq2seq_transformer_forward.29} parent=0 // pred_region
    _
  $region13: #{seq2seq_transformer_forward.29} parent=0 // pred_fallthru
    _
  // Predicated region
  $region14: #{seq2seq_transformer_forward.29} parent=0 // pred_check
    _
  $region15: #{seq2seq_transformer_forward.29} parent=0 // pred_check_branch
    %18 = sbr.rel (0) target = $region17
  $region16: #{seq2seq_transformer_forward.29} parent=0 // pred_region
    _
  $region17: #{seq2seq_transformer_forward.29} parent=0 // pred_fallthru
    _
  // Predicated region
  $region18: #{seq2seq_transformer_forward.29} parent=0 // pred_check
    _
  $region19: #{seq2seq_transformer_forward.29} parent=0 // pred_check_branch
    %20 = sbr.rel (0) target = $region21
  $region20: #{seq2seq_transformer_forward.29} parent=0 // pred_region
    _
  $region21: #{seq2seq_transformer_forward.29} parent=0 // pred_fallthru
    _
  // Predicated region
  $region22: #{seq2seq_transformer_forward.29} parent=0 // pred_check
    _
  $region23: #{seq2seq_transformer_forward.29} parent=0 // pred_check_branch
    %22 = sbr.rel (0) target = $region25
  $region24: #{seq2seq_transformer_forward.29} parent=0 // pred_region
    _
  $region25: #{seq2seq_transformer_forward.29} parent=0 // pred_fallthru
    _
  %p24 = scmp.eq.s32.totalorder 0, 0
  // Predicated region
  $region26: #{seq2seq_transformer_forward.29} parent=0 // pred_check
    %p25 = pneg %p24
  $region27: #{seq2seq_transformer_forward.29} parent=0 // pred_check_branch
    %27 = sbr.rel (%p25) target = $region29
  $region28: #{seq2seq_transformer_forward.29} parent=0 // pred_region
    %vm28 = vcmask 261120
    %29 = vst.msk [vmem:[#allocation2] sm:$0xff] %vm28, 0.0
    %30 = vst.msk [vmem:[#allocation2 + $0x8] sm:$0xff] %vm28, 0.0
  $region29: #{seq2seq_transformer_forward.29} parent=0 // pred_fallthru
    _
  %v31 = vld [vmem:[#allocation2] sm:$0xff]
  %v32 = vld [vmem:[#allocation2 + $0x8] sm:$0xff]
  %v33 = vld [vmem:[%s0] sm:$0xf]
  %v34 = vld [vmem:[%s0 + $0x4] sm:$0xf]
  %v35 = vld [vmem:[%s1] sm:$0xf]
  %v36 = vld [vmem:[%s1 + $0x4] sm:$0xf]
  %v37 = vld [vmem:[%s1 + $0x8] sm:$0xf]
  %v38 = vld [vmem:[%s1 + $0xc] sm:$0xf]
  %v41 = vunpack.c.l.b16 %v33
  %v42 = vunpack.c.l.b16 %v34
  %v43 = vpack.c.b16 %v42, %v41
  %v48 = vunpack.c.l.b16 %v35
  %v49 = vunpack.c.l.b16 %v36
  %v50 = vunpack.c.l.b16 %v37
  %v51 = vunpack.c.l.b16 %v38
  %v52 = vpack.c.b16 %v49, %v48
  %v53 = vpack.c.b16 %v51, %v50
  %vm56 = vcmask 261120
  %v58 = vsel %vm56, %v43, 0
  %60 = vmatpush.bf16.msra.mxu0 0
  %61 = vmatpush.bf16.msra.mxu0 0
  %62 = vmatpush.bf16.msra.mxu0 0
  %63 = vmatpush.bf16.msra.mxu0 0
  %64 = vmatpush.bf16.msra.mxu0 0
  %65 = vmatpush.bf16.msra.mxu0 0
  %66 = vmatpush.bf16.msra.mxu0 %v53
  %67 = vmatpush.bf16.msra.mxu0 %v52
  %68 = vmatmul.bf16.gmra.mxu0 %v58
  %v69 = vpop.f32.mrf.mxu0
  %v70 = vadd.f32 0.0, %v69
  %v71 = vpop.f32.mrf.mxu0
  %v72 = vadd.f32 0.0, %v71
  %73 = vdwg.mxu0
  %v74 = vadd.f32 %v31, %v70
  %v75 = vadd.f32 %v32, %v72
  %76 = vst.msk [vmem:[#allocation2] sm:$0xff] %vm56, %v74
  %77 = vst.msk [vmem:[#allocation2 + $0x8] sm:$0xff] %vm56, %v75
  // Predicated region
  $region30: #{seq2seq_transformer_forward.29} parent=0 // pred_check
    %p78 = pneg %p24
  $region31: #{seq2seq_transformer_forward.29} parent=0 // pred_check_branch
    %80 = sbr.rel (%p78) target = $region33
  $region32: #{seq2seq_transformer_forward.29} parent=0 // pred_region
    %v81 = vld [vmem:[#allocation2] sm:$0xff]
    %v82 = vld [vmem:[#allocation2 + $0x8] sm:$0xff]
    %v83 = vld [vmem:[%s2] sm:$0x1]
    %v85 = vperm.slane %v83, 0
    %v87 = vadd.f32 %v81, %v85
    %v88 = vadd.f32 %v82, %v85
    %v89 = vld [vmem:[%s3] sm:$0xf]
    %v90 = vld [vmem:[%s3 + $0x4] sm:$0xf]
    %v91 = vunpack.c.l.bf16 %v89
    %v92 = vunpack.c.l.bf16 %v90
    %v93 = vadd.f32 %v87, %v91
    %v94 = vadd.f32 %v88, %v92
    %v95 = vld [vmem:[%s4] sm:$0x1]
    %v96 = vld [vmem:[%s5] sm:$0x1]
    %v97 = vsel %vm56, %v93, 0.0
    %98 = vadd.xlane.f32.xlu0 %v97
    %v99 = vpop.xlane.xlu0 %98
    %v100 = vsel %vm56, %v94, 0.0
    %101 = vadd.xlane.f32.xlu0 %v100
    %v102 = vpop.xlane.xlu0 %101
    %v103 = vrcp.pop 32.0
    %v104 = vmul.f32 32.0, %v103
    %v105 = vsub.f32 1.0, %v104
    %v106 = vmul.f32 %v103, %v105
    %v107 = vadd.f32 %v103, %v106
    %vm108 = vweird.f32 %v103
    %v109 = vsel %vm108, %v103, %v107
    %v110 = vmul.f32 %v99, %v109
    %v111 = vmul.f32 %v102, %v109
    %v112 = vsub.f32 %v93, %v110
    %v113 = vsub.f32 %v94, %v111
    %v114 = vmul.f32 %v112, %v112
    %v115 = vmul.f32 %v113, %v113
    %v116 = vsel %vm56, %v114, 0.0
    %117 = vadd.xlane.f32.xlu0 %v116
    %v118 = vpop.xlane.xlu0 %117
    %v119 = vsel %vm56, %v115, 0.0
    %120 = vadd.xlane.f32.xlu0 %v119
    %v121 = vpop.xlane.xlu0 %120
    %v122 = vmul.f32 %v118, %v109
    %v123 = vmul.f32 %v121, %v109
    %v124 = vadd.f32 %v122, 1e-05
    %v125 = vadd.f32 %v123, 1e-05
    %v126 = vrsqrt.pop %v124
    %v127 = vmul.f32 %v126, %v124
    %v128 = vmul.f32 %v127, %v126
    %v129 = vmul.f32 0.5, %v128
    %v130 = vsub.f32 1.5, %v129
    %v131 = vmul.f32 %v126, %v130
    %vm132 = vweird.f32 %v124
    %vm133 = vweird.f32 %v126
    %vm134 = vmor %vm132, %vm133
    %v135 = vsel %vm134, %v126, %v131
    %v136 = vrsqrt.pop %v125
    %v137 = vmul.f32 %v136, %v125
    %v138 = vmul.f32 %v137, %v136
    %v139 = vmul.f32 0.5, %v138
    %v140 = vsub.f32 1.5, %v139
    %v141 = vmul.f32 %v136, %v140
    %vm142 = vweird.f32 %v125
    %vm143 = vweird.f32 %v136
    %vm144 = vmor %vm142, %vm143
    %v145 = vsel %vm144, %v136, %v141
    %v146 = vmul.f32 %v112, %v135
    %v147 = vmul.f32 %v113, %v145
    %v149 = vperm.slane %v95, 0
    %v151 = vmul.f32 %v146, %v149
    %v152 = vmul.f32 %v147, %v149
    %v154 = vperm.slane %v96, 0
    %v156 = vadd.f32 %v151, %v154
    %v157 = vadd.f32 %v152, %v154
    %v158 = vpack.c.bf16 %v156, %v156
    %v159 = vpack.c.bf16 %v157, %v157
    %vm160 = vcmask 257024
    %161 = vst.msk [vmem:[%s6] sm:$0xf] %vm160, %v158
    %162 = vst.msk [vmem:[%s6 + $0x4] sm:$0xf] %vm160, %v159
  $region33: #{seq2seq_transformer_forward.29} parent=0 // pred_fallthru
    _
  // Predicated region
  $region34: #{seq2seq_transformer_forward.29} parent=0 // pred_check
    _
  $region35: #{seq2seq_transformer_forward.29} parent=0 // pred_check_branch
    %164 = sbr.rel (0) target = $region37
  $region36: #{seq2seq_transformer_forward.29} parent=0 // pred_region
    _
  $region37: #{seq2seq_transformer_forward.29} parent=0 // pred_fallthru
    _
  // Predicated region
  $region38: #{seq2seq_transformer_forward.29} parent=0 // pred_check
    _
  $region39: #{seq2seq_transformer_forward.29} parent=0 // pred_check_branch
    %166 = sbr.rel (0) target = $region41
  $region40: #{seq2seq_transformer_forward.29} parent=0 // pred_region
    _
  $region41: #{seq2seq_transformer_forward.29} parent=0 // pred_fallthru
    _

// kernel: seq2seq_transformer_forward.28
$region0: #{seq2seq_transformer_forward.28}
  #allocation0 [shape = 'u32[]', space=smem, size = 0x4, offset = 0x4, fixed_abs, tag = 'smem constant byte address 0x4 - core index']
  #allocation1 [shape = 'u32[72,128]{1,0:T(1,128)}', space=vmem, size = 0x9000, scoped, tag = 'internal scratch']
  #allocation2 [shape = 'f32[4,8,1]{2,1,0:T(8,128)}', space=vmem, size = 0x4000, scoped, tag = 'scratch operand']
  #allocation3 [shape = 'f32[4,8,1]{2,1,0:T(8,128)}', space=vmem, size = 0x4000, scoped, tag = 'scratch operand']
  #allocation4 [shape = 'f32[4,8,8]{2,1,0:T(8,128)}', space=vmem, size = 0x4000, scoped, tag = 'scratch operand']
  %s0 = inlined_call_operand.vmem [shape: bf16[2,4,8,8], index: 0, kind: input, shape index: {}]
  %s1 = inlined_call_operand.vmem [shape: bf16[2,4,8,8], index: 1, kind: input, shape index: {}]
  %s2 = inlined_call_operand.vmem [shape: bf16[2,4,8,8], index: 2, kind: input, shape index: {}]
  %s3 = inlined_call_operand.vmem [shape: f32[8,8], index: 3, kind: input, shape index: {}]
  %s4 = inlined_call_operand.vmem [shape: f32[2,1,8], index: 4, kind: input, shape index: {}]
  %s5 = inlined_call_operand.vmem [shape: bf16[2,4,8,8], index: 5, kind: output, shape index: {}]
  %s6 = sld [smem:[#allocation0]]
  $region61: #{seq2seq_transformer_forward.28} parent=0
    _
  %s8 = ssub.s32 1, %s6
  %s9 = scalar_select 0, %s8, %s6
  loop: start=0, step=1, limit=4
  $region2: #{seq2seq_transformer_forward.28} parent=0 // loop_pre_header
    _
  $region3: #{seq2seq_transformer_forward.28} parent=0 // loop_header
    %s11 = sphi 0, %s15
    %p12 = scmp.ge.s32.totalorder %s11, 4
    %s18 = sphi 0, %s37
    %s19 = sphi 0, %s33
    %s20 = sphi 0, %s29
    %s21 = sphi 0, %s18
    %s22 = sphi 0, %s19
    %s23 = sphi 0, %s20
    %s24 = sphi 0, %s21
    %s25 = sphi 0, %s22
    %s26 = sphi 0, %s23
    %s42 = sphi 0, %s44
    %s45 = sphi 0, %s42
    %s46 = sphi 0, %s45
    %s62 = sphi 0, %s46
    %s70 = sphi 0, %s72
    %s73 = sphi 0, %s70
    %s74 = sphi 0, %s73
    %s90 = sphi 0, %s74
    %s98 = sphi 0, %s100
    %s101 = sphi 0, %s98
    %s102 = sphi 0, %s101
    %s118 = sphi 0, %s102
    %s126 = sphi 0, %s128
    %s129 = sphi 0, %s126
    %s130 = sphi 0, %s129
    %s146 = sphi 0, %s130
    %s154 = sphi 0, %s156
    %s157 = sphi 0, %s154
    %s158 = sphi 0, %s157
    %s174 = sphi 0, %s158
    %s182 = sphi 0, %s184
    %s185 = sphi 0, %s182
    %s186 = sphi 0, %s185
    %s202 = sphi 0, %s186
  $region4: #{seq2seq_transformer_forward.28} parent=0 // loop_header_branch
    %14 = sbr.rel (%p12) target = $region8
  $region5: #{seq2seq_transformer_forward.28} parent=0 // loop_body
    %s16 = ssub.s32 %s11, 1
    %s17 = ssub.s32 %s11, 2
    %s27 = sadd.s32 1, %s20
    %p28 = scmp.ge.s32.totalorder %s27, 1
    %s29 = scalar_select %p28, 0, %s27
    %s30 = sadd.s32 1, %s19
    %s31 = scalar_select %p28, %s30, %s19
    %p32 = scmp.ge.s32.totalorder %s31, 1
    %s33 = scalar_select %p32, 0, %s31
    %s34 = sadd.s32 1, %s18
    %s35 = scalar_select %p32, %s34, %s18
    %p36 = scmp.ge.s32.totalorder %s35, 2
    %s37 = scalar_select %p36, 0, %s35
    %s38 = ssub.s32 %s18, %s37
    %s39 = ssub.s32 %s19, %s33
    %s40 = sor.u32 %s38, %s39
    %p41 = scmp.eq.s32.totalorder %s40, 0
    %s43 = sadd.s32 %s42, 1
    %s44 = scalar_select %p41, %s42, %s43
    %p47 = pneg %p41
    %p48 = scmp.eq.s32.totalorder %s11, 1
    %p49 = por %p47, %p48
    %p50 = scmp.ne.s32.totalorder %s42, %s45
    %p51 = scmp.eq.s32.totalorder %s11, 0
    %p52 = por %p50, %p51
    %p53 = scmp.ne.s32.totalorder %s42, %s45
    %p54 = scmp.eq.s32.totalorder %s16, 1
    %p55 = por %p53, %p54
    %p56 = scmp.ne.s32.totalorder %s45, %s46
    %p57 = scmp.eq.s32.totalorder %s16, 0
    %p58 = por %p56, %p57
    %p59 = scmp.ne.s32.totalorder %s45, %s46
    %p60 = scmp.eq.s32.totalorder %s17, 1
    %p61 = por %p59, %p60
    %p63 = scmp.ne.s32.totalorder %s46, %s62
    %p64 = scmp.eq.s32.totalorder %s17, 0
    %p65 = por %p63, %p64
    %s66 = ssub.s32 %s18, %s37
    %s67 = ssub.s32 %s20, %s29
    %s68 = sor.u32 %s66, %s67
    %p69 = scmp.eq.s32.totalorder %s68, 0
    %s71 = sadd.s32 %s70, 1
    %s72 = scalar_select %p69, %s70, %s71
    %p75 = pneg %p69
    %p76 = scmp.eq.s32.totalorder %s11, 1
    %p77 = por %p75, %p76
    %p78 = scmp.ne.s32.totalorder %s70, %s73
    %p79 = scmp.eq.s32.totalorder %s11, 0
    %p80 = por %p78, %p79
    %p81 = scmp.ne.s32.totalorder %s70, %s73
    %p82 = scmp.eq.s32.totalorder %s16, 1
    %p83 = por %p81, %p82
    %p84 = scmp.ne.s32.totalorder %s73, %s74
    %p85 = scmp.eq.s32.totalorder %s16, 0
    %p86 = por %p84, %p85
    %p87 = scmp.ne.s32.totalorder %s73, %s74
    %p88 = scmp.eq.s32.totalorder %s17, 1
    %p89 = por %p87, %p88
    %p91 = scmp.ne.s32.totalorder %s74, %s90
    %p92 = scmp.eq.s32.totalorder %s17, 0
    %p93 = por %p91, %p92
    %s94 = ssub.s32 %s18, %s37
    %s95 = ssub.s32 %s20, %s29
    %s96 = sor.u32 %s94, %s95
    %p97 = scmp.eq.s32.totalorder %s96, 0
    %s99 = sadd.s32 %s98, 1
    %s100 = scalar_select %p97, %s98, %s99
    %p103 = pneg %p97
    %p104 = scmp.eq.s32.totalorder %s11, 1
    %p105 = por %p103, %p104
    %p106 = scmp.ne.s32.totalorder %s98, %s101
    %p107 = scmp.eq.s32.totalorder %s11, 0
    %p108 = por %p106, %p107
    %p109 = scmp.ne.s32.totalorder %s98, %s101
    %p110 = scmp.eq.s32.totalorder %s16, 1
    %p111 = por %p109, %p110
    %p112 = scmp.ne.s32.totalorder %s101, %s102
    %p113 = scmp.eq.s32.totalorder %s16, 0
    %p114 = por %p112, %p113
    %p115 = scmp.ne.s32.totalorder %s101, %s102
    %p116 = scmp.eq.s32.totalorder %s17, 1
    %p117 = por %p115, %p116
    %p119 = scmp.ne.s32.totalorder %s102, %s118
    %p120 = scmp.eq.s32.totalorder %s17, 0
    %p121 = por %p119, %p120
    %s122 = ssub.s32 %s19, %s33
    %s123 = ssub.s32 %s20, %s29
    %s124 = sor.u32 %s122, %s123
    %p125 = scmp.eq.s32.totalorder %s124, 0
    %s127 = sadd.s32 %s126, 1
    %s128 = scalar_select %p125, %s126, %s127
    %p131 = pneg %p125
    %p132 = scmp.eq.s32.totalorder %s11, 1
    %p133 = por %p131, %p132
    %p134 = scmp.ne.s32.totalorder %s126, %s129
    %p135 = scmp.eq.s32.totalorder %s11, 0
    %p136 = por %p134, %p135
    %p137 = scmp.ne.s32.totalorder %s126, %s129
    %p138 = scmp.eq.s32.totalorder %s16, 1
    %p139 = por %p137, %p138
    %p140 = scmp.ne.s32.totalorder %s129, %s130
    %p141 = scmp.eq.s32.totalorder %s16, 0
    %p142 = por %p140, %p141
    %p143 = scmp.ne.s32.totalorder %s129, %s130
    %p144 = scmp.eq.s32.totalorder %s17, 1
    %p145 = por %p143, %p144
    %p147 = scmp.ne.s32.totalorder %s130, %s146
    %p148 = scmp.eq.s32.totalorder %s17, 0
    %p149 = por %p147, %p148
    %s150 = ssub.s32 %s18, %s37
    %s151 = ssub.s32 %s20, %s29
    %s152 = sor.u32 %s150, %s151
    %p153 = scmp.eq.s32.totalorder %s152, 0
    %s155 = sadd.s32 %s154, 1
    %s156 = scalar_select %p153, %s154, %s155
    %p159 = pneg %p153
    %p160 = scmp.eq.s32.totalorder %s11, 1
    %p161 = por %p159, %p160
    %p162 = scmp.ne.s32.totalorder %s154, %s157
    %p163 = scmp.eq.s32.totalorder %s11, 0
    %p164 = por %p162, %p163
    %p165 = scmp.ne.s32.totalorder %s154, %s157
    %p166 = scmp.eq.s32.totalorder %s16, 1
    %p167 = por %p165, %p166
    %p168 = scmp.ne.s32.totalorder %s157, %s158
    %p169 = scmp.eq.s32.totalorder %s16, 0
    %p170 = por %p168, %p169
    %p171 = scmp.ne.s32.totalorder %s157, %s158
    %p172 = scmp.eq.s32.totalorder %s17, 1
    %p173 = por %p171, %p172
    %p175 = scmp.ne.s32.totalorder %s158, %s174
    %p176 = scmp.eq.s32.totalorder %s17, 0
    %p177 = por %p175, %p176
    %s178 = ssub.s32 %s18, %s37
    %s179 = ssub.s32 %s19, %s33
    %s180 = sor.u32 %s178, %s179
    %p181 = scmp.eq.s32.totalorder %s180, 0
    %s183 = sadd.s32 %s182, 1
    %s184 = scalar_select %p181, %s182, %s183
    %p187 = pneg %p181
    %p188 = scmp.eq.s32.totalorder %s11, 1
    %p189 = por %p187, %p188
    %p190 = scmp.ne.s32.totalorder %s182, %s185
    %p191 = scmp.eq.s32.totalorder %s11, 0
    %p192 = por %p190, %p191
    %p193 = scmp.ne.s32.totalorder %s182, %s185
    %p194 = scmp.eq.s32.totalorder %s16, 1
    %p195 = por %p193, %p194
    %p196 = scmp.ne.s32.totalorder %s185, %s186
    %p197 = scmp.eq.s32.totalorder %s16, 0
    %p198 = por %p196, %p197
    %p199 = scmp.ne.s32.totalorder %s185, %s186
    %p200 = scmp.eq.s32.totalorder %s17, 1
    %p201 = por %p199, %p200
    %p203 = scmp.ne.s32.totalorder %s186, %s202
    %p204 = scmp.eq.s32.totalorder %s17, 0
    %p205 = por %p203, %p204
    %p206 = scmp.le.s32.totalorder 1, %s11
    %p207 = scmp.lt.s32.totalorder %s11, 3
    %p208 = pnand %p206, %p207
    %p209 = pneg %p208
    // Predicated region
    $region9: #{seq2seq_transformer_forward.28} parent=5 // pred_check
      _
    $region10: #{seq2seq_transformer_forward.28} parent=5 // pred_check_branch
      %211 = sbr.rel (%p208) target = $region12
    $region11: #{seq2seq_transformer_forward.28} parent=5 // pred_region
      %s212 = ssub.s32 %s11, 1
      // Predicated region
      $region13: #{seq2seq_transformer_forward.28} parent=11 // pred_check
        %p213 = pneg %p142
      $region14: #{seq2seq_transformer_forward.28} parent=11 // pred_check_branch
        %215 = sbr.rel (%p213) target = $region16
      $region15: #{seq2seq_transformer_forward.28} parent=11 // pred_region
        %p216 = scmp.lt.s32.totalorder %s22, 0
        %s217 = scalar_select %p216, %s22, 0
        %p218 = scmp.lt.s32.totalorder %s23, 0
        %s219 = scalar_select %p218, %s23, 0
        %s220 = sadd.s32 %s219, %s217
        %s221 = smul.addr %s220, 8
        %s222 = scalar_lea.vmem %s3, %s221
      $region16: #{seq2seq_transformer_forward.28} parent=11 // pred_fallthru
        _
    $region12: #{seq2seq_transformer_forward.28} parent=5 // pred_fallthru
      _
    %p223 = scmp.lt.s32.totalorder %s11, 2
    // Predicated region
    $region17: #{seq2seq_transformer_forward.28} parent=5 // pred_check
      %p224 = pneg %p223
    $region18: #{seq2seq_transformer_forward.28} parent=5 // pred_check_branch
      %226 = sbr.rel (%p224) target = $region20
    $region19: #{seq2seq_transformer_forward.28} parent=5 // pred_region
      // Predicated region
      $region21: #{seq2seq_transformer_forward.28} parent=19 // pred_check
        %p227 = pneg %p52
      $region22: #{seq2seq_transformer_forward.28} parent=19 // pred_check_branch
        %229 = sbr.rel (%p227) target = $region24
      $region23: #{seq2seq_transformer_forward.28} parent=19 // pred_region
        %p230 = scmp.lt.s32.totalorder %s18, 1
        %s231 = scalar_select %p230, %s18, 1
        %p232 = scmp.lt.s32.totalorder %s19, 0
        %s233 = scalar_select %p232, %s19, 0
        %s234 = smul.addr %s231, 4
        %s235 = sadd.s32 %s233, %s234
        %s236 = smul.addr %s235, 4
        %s237 = scalar_lea.vmem %s0, %s236
      $region24: #{seq2seq_transformer_forward.28} parent=19 // pred_fallthru
        _
      // Predicated region
      $region25: #{seq2seq_transformer_forward.28} parent=19 // pred_check
        %p238 = pneg %p80
      $region26: #{seq2seq_transformer_forward.28} parent=19 // pred_check_branch
        %240 = sbr.rel (%p238) target = $region28
      $region27: #{seq2seq_transformer_forward.28} parent=19 // pred_region
        %p241 = scmp.lt.s32.totalorder %s18, 1
        %s242 = scalar_select %p241, %s18, 1
        %p243 = scmp.lt.s32.totalorder %s20, 0
        %s244 = scalar_select %p243, %s20, 0
        %s245 = smul.addr %s242, 4
        %s246 = sadd.s32 %s244, %s245
        %s247 = smul.addr %s246, 4
        %s248 = scalar_lea.vmem %s1, %s247
      $region28: #{seq2seq_transformer_forward.28} parent=19 // pred_fallthru
        _
      // Predicated region
      $region29: #{seq2seq_transformer_forward.28} parent=19 // pred_check
        %p249 = pneg %p108
      $region30: #{seq2seq_transformer_forward.28} parent=19 // pred_check_branch
        %251 = sbr.rel (%p249) target = $region32
      $region31: #{seq2seq_transformer_forward.28} parent=19 // pred_region
        %p252 = scmp.lt.s32.totalorder %s18, 1
        %s253 = scalar_select %p252, %s18, 1
        %p254 = scmp.lt.s32.totalorder %s20, 0
        %s255 = scalar_select %p254, %s20, 0
        %s256 = smul.addr %s253, 4
        %s257 = sadd.s32 %s255, %s256
        %s258 = smul.addr %s257, 4
        %s259 = scalar_lea.vmem %s2, %s258
      $region32: #{seq2seq_transformer_forward.28} parent=19 // pred_fallthru
        _
      // Predicated region
      $region33: #{seq2seq_transformer_forward.28} parent=19 // pred_check
        %p260 = pneg %p164
      $region34: #{seq2seq_transformer_forward.28} parent=19 // pred_check_branch
        %262 = sbr.rel (%p260) target = $region36
      $region35: #{seq2seq_transformer_forward.28} parent=19 // pred_region
        %p263 = scmp.lt.s32.totalorder %s18, 1
        %s264 = scalar_select %p263, %s18, 1
        %p265 = scmp.lt.s32.totalorder %s20, 0
        %s266 = scalar_select %p265, %s20, 0
        %s267 = sadd.s32 %s266, %s264
        %s268 = scalar_lea.vmem %s4, %s267
      $region36: #{seq2seq_transformer_forward.28} parent=19 // pred_fallthru
        _
    $region20: #{seq2seq_transformer_forward.28} parent=5 // pred_fallthru
      _
    %p269 = scmp.le.s32.totalorder 1, %s11
    %p270 = scmp.lt.s32.totalorder %s11, 3
    %p271 = pnand %p269, %p270
    %p272 = pneg %p271
    // Predicated region
    $region37: #{seq2seq_transformer_forward.28} parent=5 // pred_check
      _
    $region38: #{seq2seq_transformer_forward.28} parent=5 // pred_check_branch
      %274 = sbr.rel (%p271) target = $region40
    $region39: #{seq2seq_transformer_forward.28} parent=5 // pred_region
      %s275 = ssub.s32 %s11, 1
      %p276 = scmp.lt.s32.totalorder %s21, 1
      %s277 = scalar_select %p276, %s21, 1
      %p278 = scmp.lt.s32.totalorder %s22, 0
      %s279 = scalar_select %p278, %s22, 0
      %s280 = smul.addr %s277, 4
      %s281 = sadd.s32 %s279, %s280
      %s282 = smul.addr %s281, 4
      %s283 = scalar_lea.vmem %s0, %s282
      %p284 = pneg %p58
      %p285 = pneg %p55
      %p286 = scmp.lt.s32.totalorder %s21, 1
      %s287 = scalar_select %p286, %s21, 1
      %p288 = scmp.lt.s32.totalorder %s23, 0
      %s289 = scalar_select %p288, %s23, 0
      %s290 = smul.addr %s287, 4
      %s291 = sadd.s32 %s289, %s290
      %s292 = smul.addr %s291, 4
      %s293 = scalar_lea.vmem %s1, %s292
      %p294 = pneg %p86
      %p295 = pneg %p83
      %p296 = scmp.lt.s32.totalorder %s21, 1
      %s297 = scalar_select %p296, %s21, 1
      %p298 = scmp.lt.s32.totalorder %s23, 0
      %s299 = scalar_select %p298, %s23, 0
      %s300 = smul.addr %s297, 4
      %s301 = sadd.s32 %s299, %s300
      %s302 = smul.addr %s301, 4
      %s303 = scalar_lea.vmem %s2, %s302
      %p304 = pneg %p114
      %p305 = pneg %p111
      %p306 = scmp.lt.s32.totalorder %s22, 0
      %s307 = scalar_select %p306, %s22, 0
      %p308 = scmp.lt.s32.totalorder %s23, 0
      %s309 = scalar_select %p308, %s23, 0
      %s310 = sadd.s32 %s309, %s307
      %s311 = smul.addr %s310, 8
      %s312 = scalar_lea.vmem %s3, %s311
      %p313 = pneg %p142
      %p314 = pneg %p139
      %p315 = scmp.lt.s32.totalorder %s21, 1
      %s316 = scalar_select %p315, %s21, 1
      %p317 = scmp.lt.s32.totalorder %s23, 0
      %s318 = scalar_select %p317, %s23, 0
      %s319 = sadd.s32 %s318, %s316
      %s320 = scalar_lea.vmem %s4, %s319
      %p321 = pneg %p170
      %p322 = pneg %p167
      %p323 = pneg %p198
      %p324 = pneg %p195
      %p325 = scmp.lt.s32.totalorder %s21, 1
      %s326 = scalar_select %p325, %s21, 1
      %p327 = scmp.lt.s32.totalorder %s22, 0
      %s328 = scalar_select %p327, %s22, 0
      %s329 = smul.addr %s326, 4
      %s330 = sadd.s32 %s328, %s329
      %s331 = smul.addr %s330, 4
      %s332 = scalar_lea.vmem %s5, %s331
      %p333 = scmp.lt.s32.totalorder %s21, 1
      %s334 = scalar_select %p333, %s21, 1
      %p335 = scmp.lt.s32.totalorder %s22, 0
      %s336 = scalar_select %p335, %s22, 0
      %s337 = smul.addr %s334, 4
      %s338 = sadd.s32 %s336, %s337
      %s339 = smul.addr %s338, 4
      %s340 = scalar_lea.vmem %s0, %s339
      %p341 = scmp.lt.s32.totalorder %s21, 1
      %s342 = scalar_select %p341, %s21, 1
      %p343 = scmp.lt.s32.totalorder %s23, 0
      %s344 = scalar_select %p343, %s23, 0
      %s345 = smul.addr %s342, 4
      %s346 = sadd.s32 %s344, %s345
      %s347 = smul.addr %s346, 4
      %s348 = scalar_lea.vmem %s1, %s347
      %p349 = scmp.lt.s32.totalorder %s21, 1
      %s350 = scalar_select %p349, %s21, 1
      %p351 = scmp.lt.s32.totalorder %s23, 0
      %s352 = scalar_select %p351, %s23, 0
      %s353 = smul.addr %s350, 4
      %s354 = sadd.s32 %s352, %s353
      %s355 = smul.addr %s354, 4
      %s356 = scalar_lea.vmem %s2, %s355
      %p357 = scmp.lt.s32.totalorder %s22, 0
      %s358 = scalar_select %p357, %s22, 0
      %p359 = scmp.lt.s32.totalorder %s23, 0
      %s360 = scalar_select %p359, %s23, 0
      %s361 = sadd.s32 %s360, %s358
      %s362 = smul.addr %s361, 8
      %s363 = scalar_lea.vmem %s3, %s362
      %p364 = scmp.lt.s32.totalorder %s21, 1
      %s365 = scalar_select %p364, %s21, 1
      %p366 = scmp.lt.s32.totalorder %s23, 0
      %s367 = scalar_select %p366, %s23, 0
      %s368 = sadd.s32 %s367, %s365
      %s369 = scalar_lea.vmem %s4, %s368
      %p370 = scmp.lt.s32.totalorder %s21, 1
      %s371 = scalar_select %p370, %s21, 1
      %p372 = scmp.lt.s32.totalorder %s22, 0
      %s373 = scalar_select %p372, %s22, 0
      %s374 = smul.addr %s371, 4
      %s375 = sadd.s32 %s373, %s374
      %s376 = smul.addr %s375, 4
      %s377 = scalar_lea.vmem %s5, %s376
      %p379 = scmp.eq.s32.totalorder %s23, 0
      // Predicated region
      $region41: #{seq2seq_transformer_forward.28} parent=39 // pred_check
        %p380 = pneg %p379
      $region42: #{seq2seq_transformer_forward.28} parent=39 // pred_check_branch
        %382 = sbr.rel (%p380) target = $region44
      $region43: #{seq2seq_transformer_forward.28} parent=39 // pred_region
        %vm383 = vcmask 7168
        %384 = vst.msk [vmem:[#allocation2] sm:$0xff] %vm383, -1e+30
        %385 = vst.msk [vmem:[#allocation2 + $0x8] sm:$0xff] %vm383, -1e+30
        %386 = vst.msk [vmem:[#allocation2 + $0x10] sm:$0xff] %vm383, -1e+30
        %387 = vst.msk [vmem:[#allocation2 + $0x18] sm:$0xff] %vm383, -1e+30
        %388 = vst.msk [vmem:[#allocation3] sm:$0xff] %vm383, 0.0
        %389 = vst.msk [vmem:[#allocation3 + $0x8] sm:$0xff] %vm383, 0.0
        %390 = vst.msk [vmem:[#allocation3 + $0x10] sm:$0xff] %vm383, 0.0
        %391 = vst.msk [vmem:[#allocation3 + $0x18] sm:$0xff] %vm383, 0.0
        %vm392 = vcmask 64512
        %393 = vst.msk [vmem:[#allocation4] sm:$0xff] %vm392, 0.0
        %394 = vst.msk [vmem:[#allocation4 + $0x8] sm:$0xff] %vm392, 0.0
        %395 = vst.msk [vmem:[#allocation4 + $0x10] sm:$0xff] %vm392, 0.0
        %396 = vst.msk [vmem:[#allocation4 + $0x18] sm:$0xff] %vm392, 0.0
      $region44: #{seq2seq_transformer_forward.28} parent=39 // pred_fallthru
        _
      %v397 = vld [vmem:[%s340] sm:$0xf]
      %v398 = vld [vmem:[%s340 + $0x4] sm:$0xf]
      %v399 = vld [vmem:[%s340 + $0x8] sm:$0xf]
      %v400 = vld [vmem:[%s340 + $0xc] sm:$0xf]
      %v401 = vld [vmem:[%s348] sm:$0xf]
      %v402 = vld [vmem:[%s348 + $0x4] sm:$0xf]
      %v403 = vld [vmem:[%s348 + $0x8] sm:$0xf]
      %v404 = vld [vmem:[%s348 + $0xc] sm:$0xf]
      %v405 = vld [vmem:[%s356] sm:$0xf]
      %v406 = vld [vmem:[%s356 + $0x4] sm:$0xf]
      %v407 = vld [vmem:[%s356 + $0x8] sm:$0xf]
      %v408 = vld [vmem:[%s356 + $0xc] sm:$0xf]
      %v409 = vld [vmem:[%s363] sm:$0xff]
      %v410 = vld [vmem:[%s369] sm:$0x1]
      %v412 = vperm.slane %v410, 0
      %v414 = vadd.f32 %v409, %v412
      %vm415 = vcmask 64512
      %v417 = vsel %vm415, %v397, 0
      %v420 = vsel %vm415, %v401, 0
      %422 = vmatpush.bf16.xpose.msra.mxu0 0
      %423 = vmatpush.bf16.xpose.msra.mxu0 0
      %424 = vmatpush.bf16.xpose.msra.mxu0 0
      %425 = vmatpush.bf16.xpose.msra.mxu0 0
      %426 = vmatpush.bf16.xpose.msra.mxu0 0
      %427 = vmatpush.bf16.xpose.msra.mxu0 0
      %428 = vmatpush.bf16.xpose.msra.mxu0 0
      %429 = vmatpush.bf16.xpose.msra.mxu0 %v420
      %430 = vmatmul.bf16.gmra.mxu0 %v417
      %v431 = vpop.f32.mrf.mxu0
      %v432 = vadd.f32 %v414, %v431
      %v433 = vpop.f32.mrf.mxu0
      %434 = vdwg.mxu0
      %v436 = vsel %vm415, %v398, 0
      %v439 = vsel %vm415, %v402, 0
      %441 = vmatpush.bf16.xpose.msra.mxu0 0
      %442 = vmatpush.bf16.xpose.msra.mxu0 0
      %443 = vmatpush.bf16.xpose.msra.mxu0 0
      %444 = vmatpush.bf16.xpose.msra.mxu0 0
      %445 = vmatpush.bf16.xpose.msra.mxu0 0
      %446 = vmatpush.bf16.xpose.msra.mxu0 0
      %447 = vmatpush.bf16.xpose.msra.mxu0 0
      %448 = vmatpush.bf16.xpose.msra.mxu0 %v439
      %449 = vmatmul.bf16.gmra.mxu0 %v436
      %v450 = vpop.f32.mrf.mxu0
      %v451 = vadd.f32 %v414, %v450
      %v452 = vpop.f32.mrf.mxu0
      %453 = vdwg.mxu0
      %v455 = vsel %vm415, %v399, 0
      %v458 = vsel %vm415, %v403, 0
      %460 = vmatpush.bf16.xpose.msra.mxu0 0
      %461 = vmatpush.bf16.xpose.msra.mxu0 0
      %462 = vmatpush.bf16.xpose.msra.mxu0 0
      %463 = vmatpush.bf16.xpose.msra.mxu0 0
      %464 = vmatpush.bf16.xpose.msra.mxu0 0
      %465 = vmatpush.bf16.xpose.msra.mxu0 0
      %466 = vmatpush.bf16.xpose.msra.mxu0 0
      %467 = vmatpush.bf16.xpose.msra.mxu0 %v458
      %468 = vmatmul.bf16.gmra.mxu0 %v455
      %v469 = vpop.f32.mrf.mxu0
      %v470 = vadd.f32 %v414, %v469
      %v471 = vpop.f32.mrf.mxu0
      %472 = vdwg.mxu0
      %v474 = vsel %vm415, %v400, 0
      %v477 = vsel %vm415, %v404, 0
      %479 = vmatpush.bf16.xpose.msra.mxu0 0
      %480 = vmatpush.bf16.xpose.msra.mxu0 0
      %481 = vmatpush.bf16.xpose.msra.mxu0 0
      %482 = vmatpush.bf16.xpose.msra.mxu0 0
      %483 = vmatpush.bf16.xpose.msra.mxu0 0
      %484 = vmatpush.bf16.xpose.msra.mxu0 0
      %485 = vmatpush.bf16.xpose.msra.mxu0 0
      %486 = vmatpush.bf16.xpose.msra.mxu0 %v477
      %487 = vmatmul.bf16.gmra.mxu0 %v474
      %v488 = vpop.f32.mrf.mxu0
      %v489 = vadd.f32 %v414, %v488
      %v490 = vpop.f32.mrf.mxu0
      %491 = vdwg.mxu0
      %v492 = vld [vmem:[#allocation2] sm:$0xff]
      %v493 = vld [vmem:[#allocation2 + $0x8] sm:$0xff]
      %v494 = vld [vmem:[#allocation2 + $0x10] sm:$0xff]
      %v495 = vld [vmem:[#allocation2 + $0x18] sm:$0xff]
      %v496 = vsel %vm415, %v432, -inf
      %497 = vmax.xlane.f32.xlu0 %v496
      %v498 = vpop.xlane.xlu0 %497
      %v499 = vsel %vm415, %v451, -inf
      %500 = vmax.xlane.f32.xlu0 %v499
      %v501 = vpop.xlane.xlu0 %500
      %v502 = vsel %vm415, %v470, -inf
      %503 = vmax.xlane.f32.xlu0 %v502
      %v504 = vpop.xlane.xlu0 %503
      %v505 = vsel %vm415, %v489, -inf
      %506 = vmax.xlane.f32.xlu0 %v505
      %v507 = vpop.xlane.xlu0 %506
      %v508 = vmax.f32 %v492, %v498
      %v509 = vmax.f32 %v493, %v501
      %v510 = vmax.f32 %v494, %v504
      %v511 = vmax.f32 %v495, %v507
      %v512 = vsub.f32 %v492, %v508
      %v513 = vsub.f32 %v493, %v509
      %v514 = vsub.f32 %v494, %v510
      %v515 = vsub.f32 %v495, %v511
      %v516 = vmul.f32 %v512, 1.442695
      %v517 = vpow.pop %v516
      %v518 = vmul.f32 %v513, 1.442695
      %v519 = vpow.pop %v518
      %v520 = vmul.f32 %v514, 1.442695
      %v521 = vpow.pop %v520
      %v522 = vmul.f32 %v515, 1.442695
      %v523 = vpow.pop %v522
      %525 = vset.pattern.permute.xlu0 0
      %526 = vperm.xlu0 %525, %v508
      %v527 = vpop.permute.xlu0 %526
      %530 = vset.pattern.permute.xlu0 0
      %531 = vperm.xlu0 %530, %v509
      %v532 = vpop.permute.xlu0 %531
      %535 = vset.pattern.permute.xlu0 0
      %536 = vperm.xlu0 %535, %v510
      %v537 = vpop.permute.xlu0 %536
      %540 = vset.pattern.permute.xlu0 0
      %541 = vperm.xlu0 %540, %v511
      %v542 = vpop.permute.xlu0 %541
      %v544 = vsub.f32 %v432, %v527
      %v545 = vsub.f32 %v451, %v532
      %v546 = vsub.f32 %v470, %v537
      %v547 = vsub.f32 %v489, %v542
      %v548 = vmul.f32 %v544, 1.442695
      %v549 = vpow.pop %v548
      %v550 = vmul.f32 %v545, 1.442695
      %v551 = vpow.pop %v550
      %v552 = vmul.f32 %v546, 1.442695
      %v553 = vpow.pop %v552
      %v554 = vmul.f32 %v547, 1.442695
      %v555 = vpow.pop %v554
      %v556 = vld [vmem:[#allocation3] sm:$0xff]
      %v557 = vld [vmem:[#allocation3 + $0x8] sm:$0xff]
      %v558 = vld [vmem:[#allocation3 + $0x10] sm:$0xff]
      %v559 = vld [vmem:[#allocation3 + $0x18] sm:$0xff]
      %v560 = vmul.f32 %v517, %v556
      %v561 = vmul.f32 %v519, %v557
      %v562 = vmul.f32 %v521, %v558
      %v563 = vmul.f32 %v523, %v559
      %v564 = vsel %vm415, %v549, 0.0
      %565 = vadd.xlane.f32.xlu0 %v564
      %v566 = vpop.xlane.xlu0 %565
      %v567 = vsel %vm415, %v551, 0.0
      %568 = vadd.xlane.f32.xlu0 %v567
      %v569 = vpop.xlane.xlu0 %568
      %v570 = vsel %vm415, %v553, 0.0
      %571 = vadd.xlane.f32.xlu0 %v570
      %v572 = vpop.xlane.xlu0 %571
      %v573 = vsel %vm415, %v555, 0.0
      %574 = vadd.xlane.f32.xlu0 %v573
      %v575 = vpop.xlane.xlu0 %574
      %v576 = vadd.f32 %v560, %v566
      %v577 = vadd.f32 %v561, %v569
      %v578 = vadd.f32 %v562, %v572
      %v579 = vadd.f32 %v563, %v575
      %vm580 = vcmask 7168
      %581 = vst.msk [vmem:[#allocation3] sm:$0xff] %vm580, %v576
      %582 = vst.msk [vmem:[#allocation3 + $0x8] sm:$0xff] %vm580, %v577
      %583 = vst.msk [vmem:[#allocation3 + $0x10] sm:$0xff] %vm580, %v578
      %584 = vst.msk [vmem:[#allocation3 + $0x18] sm:$0xff] %vm580, %v579
      %v585 = vld [vmem:[#allocation4] sm:$0xff]
      %v586 = vld [vmem:[#allocation4 + $0x8] sm:$0xff]
      %v587 = vld [vmem:[#allocation4 + $0x10] sm:$0xff]
      %v588 = vld [vmem:[#allocation4 + $0x18] sm:$0xff]
      %590 = vset.pattern.permute.xlu0 0
      %591 = vperm.xlu0 %590, %v517
      %v592 = vpop.permute.xlu0 %591
      %595 = vset.pattern.permute.xlu0 0
      %596 = vperm.xlu0 %595, %v519
      %v597 = vpop.permute.xlu0 %596
      %600 = vset.pattern.permute.xlu0 0
      %601 = vperm.xlu0 %600, %v521
      %v602 = vpop.permute.xlu0 %601
      %605 = vset.pattern.permute.xlu0 0
      %606 = vperm.xlu0 %605, %v523
      %v607 = vpop.permute.xlu0 %606
      %v609 = vmul.f32 %v592, %v585
      %v610 = vmul.f32 %v597, %v586
      %v611 = vmul.f32 %v602, %v587
      %v612 = vmul.f32 %v607, %v588
      %v613 = vpack.c.bf16 %v549, %v549
      %v614 = vpack.c.bf16 %v551, %v551
      %v615 = vpack.c.bf16 %v553, %v553
      %v616 = vpack.c.bf16 %v555, %v555
      %v618 = vsel %vm415, %v613, 0
      %vm620 = vcmask 1043456
      %v622 = vsel %vm620, %v405, 0
      %624 = vmatpush.bf16.msra.mxu0 0
      %625 = vmatpush.bf16.msra.mxu0 0
      %626 = vmatpush.bf16.msra.mxu0 0
      %627 = vmatpush.bf16.msra.mxu0 0
      %628 = vmatpush.bf16.msra.mxu0 0
      %629 = vmatpush.bf16.msra.mxu0 0
      %630 = vmatpush.bf16.msra.mxu0 0
      %631 = vmatpush.bf16.msra.mxu0 %v622
      %632 = vmatmul.bf16.gmra.mxu0 %v618
      %v633 = vpop.f32.mrf.mxu0
      %v634 = vadd.f32 0.0, %v633
      %v635 = vpop.f32.mrf.mxu0
      %636 = vdwg.mxu0
      %v638 = vsel %vm415, %v614, 0
      %v641 = vsel %vm620, %v406, 0
      %643 = vmatpush.bf16.msra.mxu0 0
      %644 = vmatpush.bf16.msra.mxu0 0
      %645 = vmatpush.bf16.msra.mxu0 0
      %646 = vmatpush.bf16.msra.mxu0 0
      %647 = vmatpush.bf16.msra.mxu0 0
      %648 = vmatpush.bf16.msra.mxu0 0
      %649 = vmatpush.bf16.msra.mxu0 0
      %650 = vmatpush.bf16.msra.mxu0 %v641
      %651 = vmatmul.bf16.gmra.mxu0 %v638
      %v652 = vpop.f32.mrf.mxu0
      %v653 = vadd.f32 0.0, %v652
      %v654 = vpop.f32.mrf.mxu0
      %655 = vdwg.mxu0
      %v657 = vsel %vm415, %v615, 0
      %v660 = vsel %vm620, %v407, 0
      %662 = vmatpush.bf16.msra.mxu0 0
      %663 = vmatpush.bf16.msra.mxu0 0
      %664 = vmatpush.bf16.msra.mxu0 0
      %665 = vmatpush.bf16.msra.mxu0 0
      %666 = vmatpush.bf16.msra.mxu0 0
      %667 = vmatpush.bf16.msra.mxu0 0
      %668 = vmatpush.bf16.msra.mxu0 0
      %669 = vmatpush.bf16.msra.mxu0 %v660
      %670 = vmatmul.bf16.gmra.mxu0 %v657
      %v671 = vpop.f32.mrf.mxu0
      %v672 = vadd.f32 0.0, %v671
      %v673 = vpop.f32.mrf.mxu0
      %674 = vdwg.mxu0
      %v676 = vsel %vm415, %v616, 0
      %v679 = vsel %vm620, %v408, 0
      %681 = vmatpush.bf16.msra.mxu0 0
      %682 = vmatpush.bf16.msra.mxu0 0
      %683 = vmatpush.bf16.msra.mxu0 0
      %684 = vmatpush.bf16.msra.mxu0 0
      %685 = vmatpush.bf16.msra.mxu0 0
      %686 = vmatpush.bf16.msra.mxu0 0
      %687 = vmatpush.bf16.msra.mxu0 0
      %688 = vmatpush.bf16.msra.mxu0 %v679
      %689 = vmatmul.bf16.gmra.mxu0 %v676
      %v690 = vpop.f32.mrf.mxu0
      %v691 = vadd.f32 0.0, %v690
      %v692 = vpop.f32.mrf.mxu0
      %693 = vdwg.mxu0
      %v694 = vadd.f32 %v609, %v634
      %v695 = vadd.f32 %v610, %v653
      %v696 = vadd.f32 %v611, %v672
      %v697 = vadd.f32 %v612, %v691
      %698 = vst.msk [vmem:[#allocation4] sm:$0xff] %vm415, %v694
      %699 = vst.msk [vmem:[#allocation4 + $0x8] sm:$0xff] %vm415, %v695
      %700 = vst.msk [vmem:[#allocation4 + $0x10] sm:$0xff] %vm415, %v696
      %701 = vst.msk [vmem:[#allocation4 + $0x18] sm:$0xff] %vm415, %v697
      %702 = vst.msk [vmem:[#allocation2] sm:$0xff] %vm580, %v508
      %703 = vst.msk [vmem:[#allocation2 + $0x8] sm:$0xff] %vm580, %v509
      %704 = vst.msk [vmem:[#allocation2 + $0x10] sm:$0xff] %vm580, %v510
      %705 = vst.msk [vmem:[#allocation2 + $0x18] sm:$0xff] %vm580, %v511
      // Predicated region
      $region45: #{seq2seq_transformer_forward.28} parent=39 // pred_check
        %p706 = pneg %p379
      $region46: #{seq2seq_transformer_forward.28} parent=39 // pred_check_branch
        %708 = sbr.rel (%p706) target = $region48
      $region47: #{seq2seq_transformer_forward.28} parent=39 // pred_region
        %v709 = vld [vmem:[#allocation3] sm:$0xff]
        %v710 = vld [vmem:[#allocation3 + $0x8] sm:$0xff]
        %v711 = vld [vmem:[#allocation3 + $0x10] sm:$0xff]
        %v712 = vld [vmem:[#allocation3 + $0x18] sm:$0xff]
        %v713 = vrcp.pop %v709
        %v714 = vrcp.pop %v710
        %v715 = vrcp.pop %v711
        %v716 = vrcp.pop %v712
        %v717 = vld [vmem:[#allocation4] sm:$0xff]
        %v718 = vld [vmem:[#allocation4 + $0x8] sm:$0xff]
        %v719 = vld [vmem:[#allocation4 + $0x10] sm:$0xff]
        %v720 = vld [vmem:[#allocation4 + $0x18] sm:$0xff]
        %722 = vset.pattern.permute.xlu0 0
        %723 = vperm.xlu0 %722, %v713
        %v724 = vpop.permute.xlu0 %723
        %727 = vset.pattern.permute.xlu0 0
        %728 = vperm.xlu0 %727, %v714
        %v729 = vpop.permute.xlu0 %728
        %732 = vset.pattern.permute.xlu0 0
        %733 = vperm.xlu0 %732, %v715
        %v734 = vpop.permute.xlu0 %733
        %737 = vset.pattern.permute.xlu0 0
        %738 = vperm.xlu0 %737, %v716
        %v739 = vpop.permute.xlu0 %738
        %v741 = vmul.f32 %v717, %v724
        %v742 = vmul.f32 %v718, %v729
        %v743 = vmul.f32 %v719, %v734
        %v744 = vmul.f32 %v720, %v739
        %v745 = vpack.c.bf16 %v741, %v741
        %v746 = vpack.c.bf16 %v742, %v742
        %v747 = vpack.c.bf16 %v743, %v743
        %v748 = vpack.c.bf16 %v744, %v744
        %vm749 = vcmask 60416
        %750 = vst.msk [vmem:[%s377] sm:$0xf] %vm749, %v745
        %751 = vst.msk [vmem:[%s377 + $0x4] sm:$0xf] %vm749, %v746
        %752 = vst.msk [vmem:[%s377 + $0x8] sm:$0xf] %vm749, %v747
        %753 = vst.msk [vmem:[%s377 + $0xc] sm:$0xf] %vm749, %v748
      $region48: #{seq2seq_transformer_forward.28} parent=39 // pred_fallthru
        _
      %p754 = scmp.lt.s32.totalorder %s21, 1
      %s755 = scalar_select %p754, %s21, 1
      %p756 = scmp.lt.s32.totalorder %s22, 0
      %s757 = scalar_select %p756, %s22, 0
      %s758 = smul.addr %s755, 4
      %s759 = sadd.s32 %s757, %s758
      %s760 = smul.addr %s759, 4
      %s761 = scalar_lea.vmem %s5, %s760
      // Predicated region
      $region49: #{seq2seq_transformer_forward.28} parent=39 // pred_check
        %p762 = pneg %p195
      $region50: #{seq2seq_transformer_forward.28} parent=39 // pred_check_branch
        %764 = sbr.rel (%p762) target = $region52
      $region51: #{seq2seq_transformer_forward.28} parent=39 // pred_region
        _
      $region52: #{seq2seq_transformer_forward.28} parent=39 // pred_fallthru
        _
    $region40: #{seq2seq_transformer_forward.28} parent=5 // pred_fallthru
      _
    %p765 = scmp.le.s32.totalorder 2, %s11
    // Predicated region
    $region53: #{seq2seq_transformer_forward.28} parent=5 // pred_check
      %p766 = pneg %p765
    $region54: #{seq2seq_transformer_forward.28} parent=5 // pred_check_branch
      %768 = sbr.rel (%p766) target = $region56
    $region55: #{seq2seq_transformer_forward.28} parent=5 // pred_region
      %s769 = ssub.s32 %s11, 2
      // Predicated region
      $region57: #{seq2seq_transformer_forward.28} parent=55 // pred_check
        %p770 = pneg %p201
      $region58: #{seq2seq_transformer_forward.28} parent=55 // pred_check_branch
        %772 = sbr.rel (%p770) target = $region60
      $region59: #{seq2seq_transformer_forward.28} parent=55 // pred_region
        %p773 = scmp.lt.s32.totalorder %s24, 1
        %s774 = scalar_select %p773, %s24, 1
        %p775 = scmp.lt.s32.totalorder %s25, 0
        %s776 = scalar_select %p775, %s25, 0
        %s777 = smul.addr %s774, 4
        %s778 = sadd.s32 %s776, %s777
        %s779 = smul.addr %s778, 4
        %s780 = scalar_lea.vmem %s5, %s779
      $region60: #{seq2seq_transformer_forward.28} parent=55 // pred_fallthru
        _
    $region56: #{seq2seq_transformer_forward.28} parent=5 // pred_fallthru
      _
  $region6: #{seq2seq_transformer_forward.28} parent=0 // loop_footer
    %s15 = sadd.s32 1, %s11
  $region7: #{seq2seq_transformer_forward.28} parent=0 // loop_footer_branch
    %10 = sbr.rel target = $region3
  $region8: #{seq2seq_transformer_forward.28} parent=0 // loop_exit
    _

// kernel: seq2seq_transformer_forward.35
$region0: #{seq2seq_transformer_forward.35}
  #allocation0 [shape = 'u32[]', space=smem, size = 0x4, offset = 0x4, fixed_abs, tag = 'smem constant byte address 0x4 - core index']
  #allocation1 [shape = 'u32[72,128]{1,0:T(1,128)}', space=vmem, size = 0x9000, scoped, tag = 'internal scratch']
  %s0 = inlined_call_operand.vmem [shape: bf16[16,32], index: 0, kind: input, shape index: {}]
  %s1 = inlined_call_operand.vmem [shape: f32[1,32], index: 1, kind: input, shape index: {}]
  %s2 = inlined_call_operand.vmem [shape: f32[1,32], index: 2, kind: input, shape index: {}]
  %s3 = inlined_call_operand.vmem [shape: bf16[16,32], index: 3, kind: output, shape index: {}]
  %s4 = sld [smem:[#allocation0]]
  $region22: #{seq2seq_transformer_forward.35} parent=0
    _
  %s6 = ssub.s32 1, %s4
  %s7 = scalar_select 0, %s6, %s4
  // Predicated region
  $region2: #{seq2seq_transformer_forward.35} parent=0 // pred_check
    _
  $region3: #{seq2seq_transformer_forward.35} parent=0 // pred_check_branch
    %9 = sbr.rel (0) target = $region5
  $region4: #{seq2seq_transformer_forward.35} parent=0 // pred_region
    _
  $region5: #{seq2seq_transformer_forward.35} parent=0 // pred_fallthru
    _
  // Predicated region
  $region6: #{seq2seq_transformer_forward.35} parent=0 // pred_check
    _
  $region7: #{seq2seq_transformer_forward.35} parent=0 // pred_check_branch
    %11 = sbr.rel (0) target = $region9
  $region8: #{seq2seq_transformer_forward.35} parent=0 // pred_region
    _
  $region9: #{seq2seq_transformer_forward.35} parent=0 // pred_fallthru
    _
  // Predicated region
  $region10: #{seq2seq_transformer_forward.35} parent=0 // pred_check
    _
  $region11: #{seq2seq_transformer_forward.35} parent=0 // pred_check_branch
    %13 = sbr.rel (0) target = $region13
  $region12: #{seq2seq_transformer_forward.35} parent=0 // pred_region
    _
  $region13: #{seq2seq_transformer_forward.35} parent=0 // pred_fallthru
    _
  %v14 = vld [vmem:[%s0] sm:$0xf]
  %v15 = vld [vmem:[%s0 + $0x4] sm:$0xf]
  %v16 = vld [vmem:[%s1] sm:$0x1]
  %v17 = vld [vmem:[%s2] sm:$0x1]
  %v18 = vunpack.c.l.bf16 %v14
  %v19 = vunpack.c.l.bf16 %v15
  %vm20 = vcmask 261120
  %v21 = vsel %vm20, %v18, 0.0
  %22 = vadd.xlane.f32.xlu0 %v21
  %v23 = vpop.xlane.xlu0 %22
  %v24 = vsel %vm20, %v19, 0.0
  %25 = vadd.xlane.f32.xlu0 %v24
  %v26 = vpop.xlane.xlu0 %25
  %v27 = vrcp.pop 32.0
  %v28 = vmul.f32 32.0, %v27
  %v29 = vsub.f32 1.0, %v28
  %v30 = vmul.f32 %v27, %v29
  %v31 = vadd.f32 %v27, %v30
  %vm32 = vweird.f32 %v27
  %v33 = vsel %vm32, %v27, %v31
  %v34 = vmul.f32 %v23, %v33
  %v35 = vmul.f32 %v26, %v33
  %v36 = vsub.f32 %v18, %v34
  %v37 = vsub.f32 %v19, %v35
  %v38 = vmul.f32 %v36, %v36
  %v39 = vmul.f32 %v37, %v37
  %v40 = vsel %vm20, %v38, 0.0
  %41 = vadd.xlane.f32.xlu0 %v40
  %v42 = vpop.xlane.xlu0 %41
  %v43 = vsel %vm20, %v39, 0.0
  %44 = vadd.xlane.f32.xlu0 %v43
  %v45 = vpop.xlane.xlu0 %44
  %v46 = vmul.f32 %v42, %v33
  %v47 = vmul.f32 %v45, %v33
  %v48 = vadd.f32 %v46, 1e-05
  %v49 = vadd.f32 %v47, 1e-05
  %v50 = vrsqrt.pop %v48
  %v51 = vmul.f32 %v50, %v48
  %v52 = vmul.f32 %v51, %v50
  %v53 = vmul.f32 0.5, %v52
  %v54 = vsub.f32 1.5, %v53
  %v55 = vmul.f32 %v50, %v54
  %vm56 = vweird.f32 %v48
  %vm57 = vweird.f32 %v50
  %vm58 = vmor %vm56, %vm57
  %v59 = vsel %vm58, %v50, %v55
  %v60 = vrsqrt.pop %v49
  %v61 = vmul.f32 %v60, %v49
  %v62 = vmul.f32 %v61, %v60
  %v63 = vmul.f32 0.5, %v62
  %v64 = vsub.f32 1.5, %v63
  %v65 = vmul.f32 %v60, %v64
  %vm66 = vweird.f32 %v49
  %vm67 = vweird.f32 %v60
  %vm68 = vmor %vm66, %vm67
  %v69 = vsel %vm68, %v60, %v65
  %v70 = vmul.f32 %v36, %v59
  %v71 = vmul.f32 %v37, %v69
  %v73 = vperm.slane %v16, 0
  %v75 = vmul.f32 %v70, %v73
  %v76 = vmul.f32 %v71, %v73
  %v78 = vperm.slane %v17, 0
  %v80 = vadd.f32 %v75, %v78
  %v81 = vadd.f32 %v76, %v78
  %v82 = vpack.c.bf16 %v80, %v80
  %v83 = vpack.c.bf16 %v81, %v81
  %vm84 = vcmask 257024
  %85 = vst.msk [vmem:[%s3] sm:$0xf] %vm84, %v82
  %86 = vst.msk [vmem:[%s3 + $0x4] sm:$0xf] %vm84, %v83
  // Predicated region
  $region14: #{seq2seq_transformer_forward.35} parent=0 // pred_check
    _
  $region15: #{seq2seq_transformer_forward.35} parent=0 // pred_check_branch
    %88 = sbr.rel (0) target = $region17
  $region16: #{seq2seq_transformer_forward.35} parent=0 // pred_region
    _
  $region17: #{seq2seq_transformer_forward.35} parent=0 // pred_fallthru
    _
  // Predicated region
  $region18: #{seq2seq_transformer_forward.35} parent=0 // pred_check
    _
  $region19: #{seq2seq_transformer_forward.35} parent=0 // pred_check_branch
    %90 = sbr.rel (0) target = $region21
  $region20: #{seq2seq_transformer_forward.35} parent=0 // pred_region
    _
  $region21: #{seq2seq_transformer_forward.35} parent=0 // pred_fallthru
    _

// kernel: seq2seq_transformer_forward.40
$region0: #{seq2seq_transformer_forward.40}
  #allocation0 [shape = 'u32[]', space=smem, size = 0x4, offset = 0x4, fixed_abs, tag = 'smem constant byte address 0x4 - core index']
  #allocation1 [shape = 'u32[72,128]{1,0:T(1,128)}', space=vmem, size = 0x9000, scoped, tag = 'internal scratch']
  #allocation2 [shape = 'f32[16,64]{1,0:T(8,128)}', space=vmem, size = 0x2000, scoped, tag = 'scratch operand']
  %s0 = inlined_call_operand.vmem [shape: bf16[16,32], index: 0, kind: input, shape index: {}]
  %s1 = inlined_call_operand.vmem [shape: bf16[32,64], index: 1, kind: input, shape index: {}]
  %s2 = inlined_call_operand.vmem [shape: f32[1,64], index: 2, kind: input, shape index: {}]
  %s3 = inlined_call_operand.vmem [shape: bf16[16,64], index: 3, kind: output, shape index: {}]
  %s4 = sld [smem:[#allocation0]]
  $region30: #{seq2seq_transformer_forward.40} parent=0
    _
  %s6 = ssub.s32 1, %s4
  %s7 = scalar_select 0, %s6, %s4
  // Predicated region
  $region2: #{seq2seq_transformer_forward.40} parent=0 // pred_check
    _
  $region3: #{seq2seq_transformer_forward.40} parent=0 // pred_check_branch
    %9 = sbr.rel (0) target = $region5
  $region4: #{seq2seq_transformer_forward.40} parent=0 // pred_region
    _
  $region5: #{seq2seq_transformer_forward.40} parent=0 // pred_fallthru
    _
  // Predicated region
  $region6: #{seq2seq_transformer_forward.40} parent=0 // pred_check
    _
  $region7: #{seq2seq_transformer_forward.40} parent=0 // pred_check_branch
    %11 = sbr.rel (0) target = $region9
  $region8: #{seq2seq_transformer_forward.40} parent=0 // pred_region
    _
  $region9: #{seq2seq_transformer_forward.40} parent=0 // pred_fallthru
    _
  // Predicated region
  $region10: #{seq2seq_transformer_forward.40} parent=0 // pred_check
    _
  $region11: #{seq2seq_transformer_forward.40} parent=0 // pred_check_branch
    %13 = sbr.rel (0) target = $region13
  $region12: #{seq2seq_transformer_forward.40} parent=0 // pred_region
    _
  $region13: #{seq2seq_transformer_forward.40} parent=0 // pred_fallthru
    _
  %p15 = scmp.eq.s32.totalorder 0, 0
  // Predicated region
  $region14: #{seq2seq_transformer_forward.40} parent=0 // pred_check
    %p16 = pneg %p15
  $region15: #{seq2seq_transformer_forward.40} parent=0 // pred_check_branch
    %18 = sbr.rel (%p16) target = $region17
  $region16: #{seq2seq_transformer_forward.40} parent=0 // pred_region
    %vm19 = vcmask 523264
    %20 = vst.msk [vmem:[#allocation2] sm:$0xff] %vm19, 0.0
    %21 = vst.msk [vmem:[#allocation2 + $0x8] sm:$0xff] %vm19, 0.0
  $region17: #{seq2seq_transformer_forward.40} parent=0 // pred_fallthru
    _
  %v22 = vld [vmem:[#allocation2] sm:$0xff]
  %v23 = vld [vmem:[#allocation2 + $0x8] sm:$0xff]
  %v24 = vld [vmem:[%s0] sm:$0xf]
  %v25 = vld [vmem:[%s0 + $0x4] sm:$0xf]
  %v26 = vld [vmem:[%s1] sm:$0xf]
  %v27 = vld [vmem:[%s1 + $0x4] sm:$0xf]
  %v28 = vld [vmem:[%s1 + $0x8] sm:$0xf]
  %v29 = vld [vmem:[%s1 + $0xc] sm:$0xf]
  %v32 = vunpack.c.l.b16 %v24
  %v33 = vunpack.c.l.b16 %v25
  %v34 = vpack.c.b16 %v33, %v32
  %v39 = vunpack.c.l.b16 %v26
  %v40 = vunpack.c.l.b16 %v27
  %v41 = vunpack.c.l.b16 %v28
  %v42 = vunpack.c.l.b16 %v29
  %v43 = vpack.c.b16 %v40, %v39
  %v44 = vpack.c.b16 %v42, %v41
  %vm47 = vcmask 261120
  %v49 = vsel %vm47, %v34, 0
  %51 = vmatpush.bf16.msra.mxu0 0
  %52 = vmatpush.bf16.msra.mxu0 0
  %53 = vmatpush.bf16.msra.mxu0 0
  %54 = vmatpush.bf16.msra.mxu0 0
  %55 = vmatpush.bf16.msra.mxu0 0
  %56 = vmatpush.bf16.msra.mxu0 0
  %57 = vmatpush.bf16.msra.mxu0 %v44
  %58 = vmatpush.bf16.msra.mxu0 %v43
  %59 = vmatmul.bf16.gmra.mxu0 %v49
  %v60 = vpop.f32.mrf.mxu0
  %v61 = vadd.f32 0.0, %v60
  %v62 = vpop.f32.mrf.mxu0
  %v63 = vadd.f32 0.0, %v62
  %64 = vdwg.mxu0
  %v65 = vadd.f32 %v22, %v61
  %v66 = vadd.f32 %v23, %v63
  %vm67 = vcmask 523264
  %68 = vst.msk [vmem:[#allocation2] sm:$0xff] %vm67, %v65
  %69 = vst.msk [vmem:[#allocation2 + $0x8] sm:$0xff] %vm67, %v66
  // Predicated region
  $region18: #{seq2seq_transformer_forward.40} parent=0 // pred_check
    %p70 = pneg %p15
  $region19: #{seq2seq_transformer_forward.40} parent=0 // pred_check_branch
    %72 = sbr.rel (%p70) target = $region21
  $region20: #{seq2seq_transformer_forward.40} parent=0 // pred_region
    %v73 = vld [vmem:[#allocation2] sm:$0xff]
    %v74 = vld [vmem:[#allocation2 + $0x8] sm:$0xff]
    %v75 = vld [vmem:[%s2] sm:$0x1]
    %v77 = vperm.slane %v75, 0
    %v79 = vadd.f32 %v73, %v77
    %v80 = vadd.f32 %v74, %v77
    %v81 = vpack.c.bf16 %v79, %v79
    %v82 = vpack.c.bf16 %v80, %v80
    %vm83 = vcmask 519168
    %84 = vst.msk [vmem:[%s3] sm:$0xf] %vm83, %v81
    %85 = vst.msk [vmem:[%s3 + $0x4] sm:$0xf] %vm83, %v82
  $region21: #{seq2seq_transformer_forward.40} parent=0 // pred_fallthru
    _
  // Predicated region
  $region22: #{seq2seq_transformer_forward.40} parent=0 // pred_check
    _
  $region23: #{seq2seq_transformer_forward.40} parent=0 // pred_check_branch
    %87 = sbr.rel (0) target = $region25
  $region24: #{seq2seq_transformer_forward.40} parent=0 // pred_region
    _
  $region25: #{seq2seq_transformer_forward.40} parent=0 // pred_fallthru
    _
  // Predicated region
  $region26: #{seq2seq_transformer_forward.40} parent=0 // pred_check
    _
  $region27: #{seq2seq_transformer_forward.40} parent=0 // pred_check_branch
    %89 = sbr.rel (0) target = $region29
  $region28: #{seq2seq_transformer_forward.40} parent=0 // pred_region
    _
  $region29: #{seq2seq_transformer_forward.40} parent=0 // pred_fallthru
    _

// kernel: seq2seq_transformer_forward.30
$region0: #{seq2seq_transformer_forward.30}
  #allocation0 [shape = 'u32[]', space=smem, size = 0x4, offset = 0x4, fixed_abs, tag = 'smem constant byte address 0x4 - core index']
  #allocation1 [shape = 'u32[72,128]{1,0:T(1,128)}', space=vmem, size = 0x9000, scoped, tag = 'internal scratch']
  #allocation2 [shape = 'f32[16,32]{1,0:T(8,128)}', space=vmem, size = 0x2000, scoped, tag = 'scratch operand']
  %s0 = inlined_call_operand.vmem [shape: bf16[16,32], index: 0, kind: input, shape index: {}]
  %s1 = inlined_call_operand.vmem [shape: bf16[32,2048], index: 1, kind: input, shape index: {}]
  %s2 = inlined_call_operand.vmem [shape: f32[1,2048], index: 2, kind: input, shape index: {}]
  %s3 = inlined_call_operand.vmem [shape: bf16[2048,32], index: 3, kind: input, shape index: {}]
  %s4 = inlined_call_operand.vmem [shape: f32[1,32], index: 4, kind: input, shape index: {}]
  %s5 = inlined_call_operand.vmem [shape: f32[1,32], index: 5, kind: input, shape index: {}]
  %s6 = inlined_call_operand.vmem [shape: f32[1,32], index: 6, kind: input, shape index: {}]
  %s7 = inlined_call_operand.vmem [shape: bf16[16,32], index: 7, kind: output, shape index: {}]
  %s8 = sld [smem:[#allocation0]]
  $region92: #{seq2seq_transformer_forward.30} parent=0
    _
  %s10 = ssub.s32 1, %s8
  %s11 = scalar_select 0, %s10, %s8
  $region1: #{seq2seq_transformer_forward.30} parent=0
    #allocation3 [shape = 'u8[65536]{0}', space=vmem, size = 0x10000, scoped, tag = 'input window, operand 1']
    loop: start=0, step=1, limit=6
    $region2: #{seq2seq_transformer_forward.30} parent=1 // loop_pre_header
      _
    $region3: #{seq2seq_transformer_forward.30} parent=1 // loop_header
      %s13 = sphi 0, %s17
      %p14 = scmp.ge.s32.totalorder %s13, 6
      %s20 = sphi 0, %s32
      %s21 = sphi 0, %s28
      %s22 = sphi 0, %s20
      %s23 = sphi 0, %s21
      %s24 = sphi 0, %s22
      %s25 = sphi 0, %s23
      %s35 = sphi 0, %s37
      %s38 = sphi 0, %s35
      %s39 = sphi 0, %s38
      %s55 = sphi 0, %s39
      %s61 = sphi 0, %s63
      %s64 = sphi 0, %s61
      %s65 = sphi 0, %s64
      %s81 = sphi 0, %s65
      %s87 = sphi 0, %s89
      %s90 = sphi 0, %s87
      %s91 = sphi 0, %s90
      %s107 = sphi 0, %s91
      %s113 = sphi 0, %s115
      %s116 = sphi 0, %s113
      %s117 = sphi 0, %s116
      %s133 = sphi 0, %s117
      %s137 = sphi 0, %s137
      %s139 = sphi 0, %s137
      %s140 = sphi 0, %s139
      %s154 = sphi 0, %s140
      %s158 = sphi 0, %s158
      %s160 = sphi 0, %s158
      %s161 = sphi 0, %s160
      %s175 = sphi 0, %s161
      %s179 = sphi 0, %s179
      %s181 = sphi 0, %s179
      %s182 = sphi 0, %s181
      %s196 = sphi 0, %s182
      %s202 = sphi 0, %s204
      %s205 = sphi 0, %s202
      %s206 = sphi 0, %s205
      %s222 = sphi 0, %s206
    $region4: #{seq2seq_transformer_forward.30} parent=1 // loop_header_branch
      %16 = sbr.rel (%p14) target = $region8
    $region5: #{seq2seq_transformer_forward.30} parent=1 // loop_body
      %s18 = ssub.s32 %s13, 1
      %s19 = ssub.s32 %s13, 2
      %s26 = sadd.s32 1, %s21
      %p27 = scmp.ge.s32.totalorder %s26, 4
      %s28 = scalar_select %p27, 0, %s26
      %s29 = sadd.s32 1, %s20
      %s30 = scalar_select %p27, %s29, %s20
      %p31 = scmp.ge.s32.totalorder %s30, 1
      %s32 = scalar_select %p31, 0, %s30
      %s33 = ssub.s32 %s20, %s32
      %p34 = scmp.eq.s32.totalorder %s33, 0
      %s36 = sadd.s32 %s35, 1
      %s37 = scalar_select %p34, %s35, %s36
      %p40 = pneg %p34
      %p41 = scmp.eq.s32.totalorder %s13, 3
      %p42 = por %p40, %p41
      %p43 = scmp.ne.s32.totalorder %s35, %s38
      %p44 = scmp.eq.s32.totalorder %s13, 0
      %p45 = por %p43, %p44
      %p46 = scmp.ne.s32.totalorder %s35, %s38
      %p47 = scmp.eq.s32.totalorder %s18, 3
      %p48 = por %p46, %p47
      %p49 = scmp.ne.s32.totalorder %s38, %s39
      %p50 = scmp.eq.s32.totalorder %s18, 0
      %p51 = por %p49, %p50
      %p52 = scmp.ne.s32.totalorder %s38, %s39
      %p53 = scmp.eq.s32.totalorder %s19, 3
      %p54 = por %p52, %p53
      %p56 = scmp.ne.s32.totalorder %s39, %s55
      %p57 = scmp.eq.s32.totalorder %s19, 0
      %p58 = por %p56, %p57
      %s59 = ssub.s32 %s21, %s28
      %p60 = scmp.eq.s32.totalorder %s59, 0
      %s62 = sadd.s32 %s61, 1
      %s63 = scalar_select %p60, %s61, %s62
      %p66 = pneg %p60
      %p67 = scmp.eq.s32.totalorder %s13, 3
      %p68 = por %p66, %p67
      %p69 = scmp.ne.s32.totalorder %s61, %s64
      %p70 = scmp.eq.s32.totalorder %s13, 0
      %p71 = por %p69, %p70
      %p72 = scmp.ne.s32.totalorder %s61, %s64
      %p73 = scmp.eq.s32.totalorder %s18, 3
      %p74 = por %p72, %p73
      %p75 = scmp.ne.s32.totalorder %s64, %s65
      %p76 = scmp.eq.s32.totalorder %s18, 0
      %p77 = por %p75, %p76
      %p78 = scmp.ne.s32.totalorder %s64, %s65
      %p79 = scmp.eq.s32.totalorder %s19, 3
      %p80 = por %p78, %p79
      %p82 = scmp.ne.s32.totalorder %s65, %s81
      %p83 = scmp.eq.s32.totalorder %s19, 0
      %p84 = por %p82, %p83
      %s85 = ssub.s32 %s21, %s28
      %p86 = scmp.eq.s32.totalorder %s85, 0
      %s88 = sadd.s32 %s87, 1
      %s89 = scalar_select %p86, %s87, %s88
      %p92 = pneg %p86
      %p93 = scmp.eq.s32.totalorder %s13, 3
      %p94 = por %p92, %p93
      %p95 = scmp.ne.s32.totalorder %s87, %s90
      %p96 = scmp.eq.s32.totalorder %s13, 0
      %p97 = por %p95, %p96
      %p98 = scmp.ne.s32.totalorder %s87, %s90
      %p99 = scmp.eq.s32.totalorder %s18, 3
      %p100 = por %p98, %p99
      %p101 = scmp.ne.s32.totalorder %s90, %s91
      %p102 = scmp.eq.s32.totalorder %s18, 0
      %p103 = por %p101, %p102
      %p104 = scmp.ne.s32.totalorder %s90, %s91
      %p105 = scmp.eq.s32.totalorder %s19, 3
      %p106 = por %p104, %p105
      %p108 = scmp.ne.s32.totalorder %s91, %s107
      %p109 = scmp.eq.s32.totalorder %s19, 0
      %p110 = por %p108, %p109
      %s111 = ssub.s32 %s21, %s28
      %p112 = scmp.eq.s32.totalorder %s111, 0
      %s114 = sadd.s32 %s113, 1
      %s115 = scalar_select %p112, %s113, %s114
      %p118 = pneg %p112
      %p119 = scmp.eq.s32.totalorder %s13, 3
      %p120 = por %p118, %p119
      %p121 = scmp.ne.s32.totalorder %s113, %s116
      %p122 = scmp.eq.s32.totalorder %s13, 0
      %p123 = por %p121, %p122
      %p124 = scmp.ne.s32.totalorder %s113, %s116
      %p125 = scmp.eq.s32.totalorder %s18, 3
      %p126 = por %p124, %p125
      %p127 = scmp.ne.s32.totalorder %s116, %s117
      %p128 = scmp.eq.s32.totalorder %s18, 0
      %p129 = por %p127, %p128
      %p130 = scmp.ne.s32.totalorder %s116, %s117
      %p131 = scmp.eq.s32.totalorder %s19, 3
      %p132 = por %p130, %p131
      %p134 = scmp.ne.s32.totalorder %s117, %s133
      %p135 = scmp.eq.s32.totalorder %s19, 0
      %p136 = por %p134, %p135
      %s138 = sadd.s32 %s137, 1
      %p141 = scmp.eq.s32.totalorder %s13, 3
      %p142 = scmp.ne.s32.totalorder %s137, %s139
      %p143 = scmp.eq.s32.totalorder %s13, 0
      %p144 = por %p142, %p143
      %p145 = scmp.ne.s32.totalorder %s137, %s139
      %p146 = scmp.eq.s32.totalorder %s18, 3
      %p147 = por %p145, %p146
      %p148 = scmp.ne.s32.totalorder %s139, %s140
      %p149 = scmp.eq.s32.totalorder %s18, 0
      %p150 = por %p148, %p149
      %p151 = scmp.ne.s32.totalorder %s139, %s140
      %p152 = scmp.eq.s32.totalorder %s19, 3
      %p153 = por %p151, %p152
      %p155 = scmp.ne.s32.totalorder %s140, %s154
      %p156 = scmp.eq.s32.totalorder %s19, 0
      %p157 = por %p155, %p156
      %s159 = sadd.s32 %s158, 1
      %p162 = scmp.eq.s32.totalorder %s13, 3
      %p163 = scmp.ne.s32.totalorder %s158, %s160
      %p164 = scmp.eq.s32.totalorder %s13, 0
      %p165 = por %p163, %p164
      %p166 = scmp.ne.s32.totalorder %s158, %s160
      %p167 = scmp.eq.s32.totalorder %s18, 3
      %p168 = por %p166, %p167
      %p169 = scmp.ne.s32.totalorder %s160, %s161
      %p170 = scmp.eq.s32.totalorder %s18, 0
      %p171 = por %p169, %p170
      %p172 = scmp.ne.s32.totalorder %s160, %s161
      %p173 = scmp.eq.s32.totalorder %s19, 3
      %p174 = por %p172, %p173
      %p176 = scmp.ne.s32.totalorder %s161, %s175
      %p177 = scmp.eq.s32.totalorder %s19, 0
      %p178 = por %p176, %p177
      %s180 = sadd.s32 %s179, 1
      %p183 = scmp.eq.s32.totalorder %s13, 3
      %p184 = scmp.ne.s32.totalorder %s179, %s181
      %p185 = scmp.eq.s32.totalorder %s13, 0
      %p186 = por %p184, %p185
      %p187 = scmp.ne.s32.totalorder %s179, %s181
      %p188 = scmp.eq.s32.totalorder %s18, 3
      %p189 = por %p187, %p188
      %p190 = scmp.ne.s32.totalorder %s181, %s182
      %p191 = scmp.eq.s32.totalorder %s18, 0
      %p192 = por %p190, %p191
      %p193 = scmp.ne.s32.totalorder %s181, %s182
      %p194 = scmp.eq.s32.totalorder %s19, 3
      %p195 = por %p193, %p194
      %p197 = scmp.ne.s32.totalorder %s182, %s196
      %p198 = scmp.eq.s32.totalorder %s19, 0
      %p199 = por %p197, %p198
      %s200 = ssub.s32 %s20, %s32
      %p201 = scmp.eq.s32.totalorder %s200, 0
      %s203 = sadd.s32 %s202, 1
      %s204 = scalar_select %p201, %s202, %s203
      %p207 = pneg %p201
      %p208 = scmp.eq.s32.totalorder %s13, 3
      %p209 = por %p207, %p208
      %p210 = scmp.ne.s32.totalorder %s202, %s205
      %p211 = scmp.eq.s32.totalorder %s13, 0
      %p212 = por %p210, %p211
      %p213 = scmp.ne.s32.totalorder %s202, %s205
      %p214 = scmp.eq.s32.totalorder %s18, 3
      %p215 = por %p213, %p214
      %p216 = scmp.ne.s32.totalorder %s205, %s206
      %p217 = scmp.eq.s32.totalorder %s18, 0
      %p218 = por %p216, %p217
      %p219 = scmp.ne.s32.totalorder %s205, %s206
      %p220 = scmp.eq.s32.totalorder %s19, 3
      %p221 = por %p219, %p220
      %p223 = scmp.ne.s32.totalorder %s206, %s222
      %p224 = scmp.eq.s32.totalorder %s19, 0
      %p225 = por %p223, %p224
      %p226 = scmp.le.s32.totalorder 1, %s13
      %p227 = scmp.lt.s32.totalorder %s13, 5
      %p228 = pnand %p226, %p227
      %p229 = pneg %p228
      // Predicated region
      $region9: #{seq2seq_transformer_forward.30} parent=5 // pred_check
        _
      $region10: #{seq2seq_transformer_forward.30} parent=5 // pred_check_branch
        %231 = sbr.rel (%p228) target = $region12
      $region11: #{seq2seq_transformer_forward.30} parent=5 // pred_region
        %s232 = ssub.s32 %s13, 1
        // Predicated region
        $region13: #{seq2seq_transformer_forward.30} parent=11 // pred_check
          %p233 = pneg %p51
        $region14: #{seq2seq_transformer_forward.30} parent=11 // pred_check_branch
          %235 = sbr.rel (%p233) target = $region16
        $region15: #{seq2seq_transformer_forward.30} parent=11 // pred_region
          %s236 = smul.u32 2, %s22
          %p237 = scmp.lt.s32.totalorder %s236, 1
          %s238 = scalar_select %p237, %s236, 1
          %s239 = smul.addr %s238, 4
          %s240 = scalar_lea.vmem %s0, %s239
          %s241 = smul.u32 2, %s22
        $region16: #{seq2seq_transformer_forward.30} parent=11 // pred_fallthru
          _
        // Predicated region
        $region17: #{seq2seq_transformer_forward.30} parent=11 // pred_check
          %p242 = pneg %p150
        $region18: #{seq2seq_transformer_forward.30} parent=11 // pred_check_branch
          %244 = sbr.rel (%p242) target = $region20
        $region19: #{seq2seq_transformer_forward.30} parent=11 // pred_region
          _
        $region20: #{seq2seq_transformer_forward.30} parent=11 // pred_fallthru
          _
        // Predicated region
        $region21: #{seq2seq_transformer_forward.30} parent=11 // pred_check
          %p245 = pneg %p171
        $region22: #{seq2seq_transformer_forward.30} parent=11 // pred_check_branch
          %247 = sbr.rel (%p245) target = $region24
        $region23: #{seq2seq_transformer_forward.30} parent=11 // pred_region
          _
        $region24: #{seq2seq_transformer_forward.30} parent=11 // pred_fallthru
          _
        // Predicated region
        $region25: #{seq2seq_transformer_forward.30} parent=11 // pred_check
          %p248 = pneg %p192
        $region26: #{seq2seq_transformer_forward.30} parent=11 // pred_check_branch
          %250 = sbr.rel (%p248) target = $region28
        $region27: #{seq2seq_transformer_forward.30} parent=11 // pred_region
          _
        $region28: #{seq2seq_transformer_forward.30} parent=11 // pred_fallthru
          _
      $region12: #{seq2seq_transformer_forward.30} parent=5 // pred_fallthru
        _
      %p251 = scmp.lt.s32.totalorder %s13, 4
      // Predicated region
      $region29: #{seq2seq_transformer_forward.30} parent=5 // pred_check
        %p252 = pneg %p251
      $region30: #{seq2seq_transformer_forward.30} parent=5 // pred_check_branch
        %254 = sbr.rel (%p252) target = $region32
      $region31: #{seq2seq_transformer_forward.30} parent=5 // pred_region
        // Predicated region
        $region33: #{seq2seq_transformer_forward.30} parent=31 // pred_check
          %p255 = pneg %p71
        $region34: #{seq2seq_transformer_forward.30} parent=31 // pred_check_branch
          %257 = sbr.rel (%p255) target = $region36
        $region35: #{seq2seq_transformer_forward.30} parent=31 // pred_region
          %s258 = sand.u32 %s61, 1
          %s259 = sand.u32 %s61, 1
          %s260 = smul.addr %s259, 64
          %s261 = scalar_lea.vmem [#allocation3], %s260
          %s262 = smul.u32 4, %s21
          %s263 = smul.addr %s262, 4
          %s264 = scalar_lea.vmem %s1, %s263
          // Predicated region
          $region37: #{seq2seq_transformer_forward.30} parent=35 // pred_check
            _
          $region38: #{seq2seq_transformer_forward.30} parent=35 // pred_check_branch
            %266 = sbr.rel (0) target = $region40
          $region39: #{seq2seq_transformer_forward.30} parent=35 // pred_region
            // Predicated region
            $region41: #{seq2seq_transformer_forward.30} parent=39 // pred_check
              _
            $region42: #{seq2seq_transformer_forward.30} parent=39 // pred_check_branch
              %268 = sbr.rel (0) target = $region44
            $region43: #{seq2seq_transformer_forward.30} parent=39 // pred_region
              loop: start=0, step=1, limit=1
              $region45: #{seq2seq_transformer_forward.30} parent=43 // loop_pre_header
                _
              $region46: #{seq2seq_transformer_forward.30} parent=43 // loop_header
                %s270 = sphi 0, %s274
                %p271 = scmp.ge.s32.totalorder %s270, 1
                %s275 = sphi %s264, %s264
                %s276 = sphi %s261, %s261
              $region47: #{seq2seq_transformer_forward.30} parent=43 // loop_header_branch
                %273 = sbr.rel (%p271) target = $region51
              $region48: #{seq2seq_transformer_forward.30} parent=43 // loop_body
                %v277 = vld [vmem:[%s275] sm:$0xff]
                %278 = vst [vmem:[%s276] sm:$0xff] %v277
                %v279 = vld [vmem:[%s275 + $0x8] sm:$0xff]
                %280 = vst [vmem:[%s276 + $0x8] sm:$0xff] %v279
                %v281 = vld [vmem:[%s275 + $0x40] sm:$0xff]
                %282 = vst [vmem:[%s276 + $0x10] sm:$0xff] %v281
                %v283 = vld [vmem:[%s275 + $0x48] sm:$0xff]
                %284 = vst [vmem:[%s276 + $0x18] sm:$0xff] %v283
                %v285 = vld [vmem:[%s275 + $0x80] sm:$0xff]
                %286 = vst [vmem:[%s276 + $0x20] sm:$0xff] %v285
                %v287 = vld [vmem:[%s275 + $0x88] sm:$0xff]
                %288 = vst [vmem:[%s276 + $0x28] sm:$0xff] %v287
                %v289 = vld [vmem:[%s275 + $0xc0] sm:$0xff]
                %290 = vst [vmem:[%s276 + $0x30] sm:$0xff] %v289
                %v291 = vld [vmem:[%s275 + $0xc8] sm:$0xff]
                %292 = vst [vmem:[%s276 + $0x38] sm:$0xff] %v291
              $region49: #{seq2seq_transformer_forward.30} parent=43 // loop_footer
                %s274 = sadd.s32 1, %s270
              $region50: #{seq2seq_transformer_forward.30} parent=43 // loop_footer_branch
                %269 = sbr.rel target = $region46
              $region51: #{seq2seq_transformer_forward.30} parent=43 // loop_exit
                _
            $region44: #{seq2seq_transformer_forward.30} parent=39 // pred_fallthru
              _
            // Predicated region
            $region52: #{seq2seq_transformer_forward.30} parent=39 // pred_check
              _
            $region53: #{seq2seq_transformer_forward.30} parent=39 // pred_check_branch
              %294 = sbr.rel target = $region55
            $region54: #{seq2seq_transformer_forward.30} parent=39 // pred_region
              _
            $region55: #{seq2seq_transformer_forward.30} parent=39 // pred_fallthru
              _
          $region40: #{seq2seq_transformer_forward.30} parent=35 // pred_fallthru
            _
          %295 = vnop
        $region36: #{seq2seq_transformer_forward.30} parent=31 // pred_fallthru
          _
        // Predicated region
        $region56: #{seq2seq_transformer_forward.30} parent=31 // pred_check
          %p296 = pneg %p97
        $region57: #{seq2seq_transformer_forward.30} parent=31 // pred_check_branch
          %298 = sbr.rel (%p296) target = $region59
        $region58: #{seq2seq_transformer_forward.30} parent=31 // pred_region
          %s299 = smul.u32 4, %s21
          %p300 = scmp.lt.s32.totalorder %s299, 15
          %s301 = scalar_select %p300, %s299, 15
          %s302 = scalar_lea.vmem %s2, %s301
          %s303 = smul.u32 4, %s21
        $region59: #{seq2seq_transformer_forward.30} parent=31 // pred_fallthru
          _
        // Predicated region
        $region60: #{seq2seq_transformer_forward.30} parent=31 // pred_check
          %p304 = pneg %p123
        $region61: #{seq2seq_transformer_forward.30} parent=31 // pred_check_branch
          %306 = sbr.rel (%p304) target = $region63
        $region62: #{seq2seq_transformer_forward.30} parent=31 // pred_region
          %s307 = smul.u32 64, %s21
          %p308 = scmp.lt.s32.totalorder %s307, 255
          %s309 = scalar_select %p308, %s307, 255
          %s310 = smul.addr %s309, 4
          %s311 = scalar_lea.vmem %s3, %s310
          %s312 = smul.u32 64, %s21
        $region63: #{seq2seq_transformer_forward.30} parent=31 // pred_fallthru
          _
      $region32: #{seq2seq_transformer_forward.30} parent=5 // pred_fallthru
        _
      %p313 = scmp.le.s32.totalorder 1, %s13
      %p314 = scmp.lt.s32.totalorder %s13, 5
      %p315 = pnand %p313, %p314
      %p316 = pneg %p315
      // Predicated region
      $region64: #{seq2seq_transformer_forward.30} parent=5 // pred_check
        _
      $region65: #{seq2seq_transformer_forward.30} parent=5 // pred_check_branch
        %318 = sbr.rel (%p315) target = $region67
      $region66: #{seq2seq_transformer_forward.30} parent=5 // pred_region
        %s319 = ssub.s32 %s13, 1
        %s320 = sand.u32 %s64, 1
        %s321 = sand.u32 %s64, 1
        %s322 = smul.addr %s321, 64
        %s323 = scalar_lea.vmem [#allocation3], %s322
        // Predicated region
        $region68: #{seq2seq_transformer_forward.30} parent=66 // pred_check
          %p324 = pneg %p77
        $region69: #{seq2seq_transformer_forward.30} parent=66 // pred_check_branch
          %326 = sbr.rel (%p324) target = $region71
        $region70: #{seq2seq_transformer_forward.30} parent=66 // pred_region
          _
        $region71: #{seq2seq_transformer_forward.30} parent=66 // pred_fallthru
          _
        %s327 = smul.u32 2, %s22
        %p328 = scmp.lt.s32.totalorder %s327, 1
        %s329 = scalar_select %p328, %s327, 1
        %s330 = smul.addr %s329, 4
        %s331 = scalar_lea.vmem %s0, %s330
        %p332 = pneg %p51
        %p333 = pneg %p48
        %s334 = sand.u32 %s64, 1
        %s335 = sand.u32 %s64, 1
        %s336 = smul.addr %s335, 64
        %s337 = scalar_lea.vmem [#allocation3], %s336
        %p338 = pneg %p77
        %p339 = pneg %p74
        %s340 = smul.u32 4, %s23
        %p341 = scmp.lt.s32.totalorder %s340, 15
        %s342 = scalar_select %p341, %s340, 15
        %s343 = scalar_lea.vmem %s2, %s342
        %p344 = pneg %p103
        %p345 = pneg %p100
        %s346 = smul.u32 64, %s23
        %p347 = scmp.lt.s32.totalorder %s346, 255
        %s348 = scalar_select %p347, %s346, 255
        %s349 = smul.addr %s348, 4
        %s350 = scalar_lea.vmem %s3, %s349
        %p351 = pneg %p129
        %p352 = pneg %p126
        %p353 = pneg %p150
        %p354 = pneg %p147
        %p355 = pneg %p171
        %p356 = pneg %p168
        %p357 = pneg %p192
        %p358 = pneg %p189
        %p359 = pneg %p218
        %p360 = pneg %p215
        %s361 = smul.u32 2, %s22
        %p362 = scmp.lt.s32.totalorder %s361, 1
        %s363 = scalar_select %p362, %s361, 1
        %s364 = smul.addr %s363, 4
        %s365 = scalar_lea.vmem %s7, %s364
        %s366 = smul.u32 2, %s22
        %p367 = scmp.lt.s32.totalorder %s366, 1
        %s368 = scalar_select %p367, %s366, 1
        %s369 = smul.addr %s368, 4
        %s370 = scalar_lea.vmem %s0, %s369
        %s371 = smul.u32 2, %s22
        %s372 = smul.u32 4, %s23
        %s373 = smul.u32 4, %s23
        %p374 = scmp.lt.s32.totalorder %s373, 15
        %s375 = scalar_select %p374, %s373, 15
        %s376 = scalar_lea.vmem %s2, %s375
        %s377 = smul.u32 4, %s23
        %s378 = smul.u32 64, %s23
        %p379 = scmp.lt.s32.totalorder %s378, 255
        %s380 = scalar_select %p379, %s378, 255
        %s381 = smul.addr %s380, 4
        %s382 = scalar_lea.vmem %s3, %s381
        %s383 = smul.u32 64, %s23
        %s384 = smul.u32 2, %s22
        %p385 = scmp.lt.s32.totalorder %s384, 1
        %s386 = scalar_select %p385, %s384, 1
        %s387 = smul.addr %s386, 4
        %s388 = scalar_lea.vmem %s7, %s387
        %s389 = smul.u32 2, %s22
        %p391 = scmp.eq.s32.totalorder %s23, 0
        // Predicated region
        $region72: #{seq2seq_transformer_forward.30} parent=66 // pred_check
          %p392 = pneg %p391
        $region73: #{seq2seq_transformer_forward.30} parent=66 // pred_check_branch
          %394 = sbr.rel (%p392) target = $region75
        $region74: #{seq2seq_transformer_forward.30} parent=66 // pred_region
          %vm395 = vcmask 261120
          %396 = vst.msk [vmem:[#allocation2] sm:$0xff] %vm395, 0.0
          %397 = vst.msk [vmem:[#allocation2 + $0x8] sm:$0xff] %vm395, 0.0
        $region75: #{seq2seq_transformer_forward.30} parent=66 // pred_fallthru
          _
        %v398 = vld [vmem:[%s370] sm:$0xf]
        %v399 = vld [vmem:[%s370 + $0x4] sm:$0xf]
        %v400 = vld [vmem:[%s323] sm:$0xff]
        %v401 = vld [vmem:[%s323 + $0x8] sm:$0xff]
        %v402 = vld [vmem:[%s323 + $0x10] sm:$0xff]
        %v403 = vld [vmem:[%s323 + $0x18] sm:$0xff]
        %v404 = vld [vmem:[%s323 + $0x20] sm:$0xff]
        %v405 = vld [vmem:[%s323 + $0x28] sm:$0xff]
        %v406 = vld [vmem:[%s323 + $0x30] sm:$0xff]
        %v407 = vld [vmem:[%s323 + $0x38] sm:$0xff]
        %v408 = vld [vmem:[%s376] sm:$0xf]
        %v410 = vperm.slane %v408, 0
        %v411 = vperm.slane %v408, 1
        %v412 = vperm.slane %v408, 2
        %v413 = vperm.slane %v408, 3
        %v420 = vunpack.c.l.b16 %v398
        %v421 = vunpack.c.l.b16 %v399
        %v422 = vpack.c.b16 %v421, %v420
        %v431 = vunpack.c.l.b16 %v400
        %v432 = vunpack.c.h.b16 %v400
        %v433 = vunpack.c.l.b16 %v401
        %v434 = vunpack.c.h.b16 %v401
        %v435 = vunpack.c.l.b16 %v402
        %v436 = vunpack.c.h.b16 %v402
        %v437 = vunpack.c.l.b16 %v403
        %v438 = vunpack.c.h.b16 %v403
        %v439 = vunpack.c.l.b16 %v404
        %v440 = vunpack.c.h.b16 %v404
        %v441 = vunpack.c.l.b16 %v405
        %v442 = vunpack.c.h.b16 %v405
        %v443 = vunpack.c.l.b16 %v406
        %v444 = vunpack.c.h.b16 %v406
        %v445 = vunpack.c.l.b16 %v407
        %v446 = vunpack.c.h.b16 %v407
        %v447 = vpack.c.b16 %v435, %v431
        %v448 = vpack.c.b16 %v436, %v432
        %v449 = vpack.c.b16 %v437, %v433
        %v450 = vpack.c.b16 %v438, %v434
        %v451 = vpack.c.b16 %v443, %v439
        %v452 = vpack.c.b16 %v444, %v440
        %v453 = vpack.c.b16 %v445, %v441
        %v454 = vpack.c.b16 %v446, %v442
        %vm463 = vcmask 261120
        %v465 = vsel %vm463, %v422, 0
        %467 = vmatpush.bf16.msra.mxu0 0
        %468 = vmatpush.bf16.msra.mxu0 0
        %469 = vmatpush.bf16.msra.mxu0 0
        %470 = vmatpush.bf16.msra.mxu0 0
        %471 = vmatpush.bf16.msra.mxu0 0
        %472 = vmatpush.bf16.msra.mxu0 0
        %473 = vmatpush.bf16.msra.mxu0 %v451
        %474 = vmatpush.bf16.msra.mxu0 %v447
        %475 = vmatmul.bf16.gmra.mxu0 %v465
        %v476 = vpop.f32.mrf.mxu0
        %v477 = vadd.f32 %v410, %v476
        %v478 = vpop.f32.mrf.mxu0
        %v479 = vadd.f32 %v410, %v478
        %480 = vdwg.mxu0
        %481 = vmatpush.bf16.msra.mxu0 0
        %482 = vmatpush.bf16.msra.mxu0 0
        %483 = vmatpush.bf16.msra.mxu0 0
        %484 = vmatpush.bf16.msra.mxu0 0
        %485 = vmatpush.bf16.msra.mxu0 0
        %486 = vmatpush.bf16.msra.mxu0 0
        %487 = vmatpush.bf16.msra.mxu0 %v452
        %488 = vmatpush.bf16.msra.mxu0 %v448
        %489 = vmatmul.bf16.gmra.mxu0 %v465
        %v490 = vpop.f32.mrf.mxu0
        %v491 = vadd.f32 %v411, %v490
        %v492 = vpop.f32.mrf.mxu0
        %v493 = vadd.f32 %v411, %v492
        %494 = vdwg.mxu0
        %495 = vmatpush.bf16.msra.mxu0 0
        %496 = vmatpush.bf16.msra.mxu0 0
        %497 = vmatpush.bf16.msra.mxu0 0
        %498 = vmatpush.bf16.msra.mxu0 0
        %499 = vmatpush.bf16.msra.mxu0 0
        %500 = vmatpush.bf16.msra.mxu0 0
        %501 = vmatpush.bf16.msra.mxu0 %v453
        %502 = vmatpush.bf16.msra.mxu0 %v449
        %503 = vmatmul.bf16.gmra.mxu0 %v465
        %v504 = vpop.f32.mrf.mxu0
        %v505 = vadd.f32 %v412, %v504
        %v506 = vpop.f32.mrf.mxu0
        %v507 = vadd.f32 %v412, %v506
        %508 = vdwg.mxu0
        %509 = vmatpush.bf16.msra.mxu0 0
        %510 = vmatpush.bf16.msra.mxu0 0
        %511 = vmatpush.bf16.msra.mxu0 0
        %512 = vmatpush.bf16.msra.mxu0 0
        %513 = vmatpush.bf16.msra.mxu0 0
        %514 = vmatpush.bf16.msra.mxu0 0
        %515 = vmatpush.bf16.msra.mxu0 %v454
        %516 = vmatpush.bf16.msra.mxu0 %v450
        %517 = vmatmul.bf16.gmra.mxu0 %v465
        %v518 = vpop.f32.mrf.mxu0
        %v519 = vadd.f32 %v413, %v518
        %v520 = vpop.f32.mrf.mxu0
        %v521 = vadd.f32 %v413, %v520
        %522 = vdwg.mxu0
        %v523 = vmax.f32 %v477, 0.0
        %v524 = vmax.f32 %v491, 0.0
        %v525 = vmax.f32 %v505, 0.0
        %v526 = vmax.f32 %v519, 0.0
        %v527 = vmax.f32 %v479, 0.0
        %v528 = vmax.f32 %v493, 0.0
        %v529 = vmax.f32 %v507, 0.0
        %v530 = vmax.f32 %v521, 0.0
        %v531 = vpack.c.bf16 %v527, %v523
        %v532 = vpack.c.bf16 %v528, %v524
        %v533 = vpack.c.bf16 %v529, %v525
        %v534 = vpack.c.bf16 %v530, %v526
        %v535 = vld [vmem:[#allocation2] sm:$0xff]
        %v536 = vld [vmem:[#allocation2 + $0x8] sm:$0xff]
        %v537 = vld [vmem:[%s382] sm:$0xf]
        %v538 = vld [vmem:[%s382 + $0x4] sm:$0xf]
        %v539 = vld [vmem:[%s382 + $0x8] sm:$0xf]
        %v540 = vld [vmem:[%s382 + $0xc] sm:$0xf]
        %v541 = vld [vmem:[%s382 + $0x10] sm:$0xf]
        %v542 = vld [vmem:[%s382 + $0x14] sm:$0xf]
        %v543 = vld [vmem:[%s382 + $0x18] sm:$0xf]
        %v544 = vld [vmem:[%s382 + $0x1c] sm:$0xf]
        %v545 = vld [vmem:[%s382 + $0x20] sm:$0xf]
        %v546 = vld [vmem:[%s382 + $0x24] sm:$0xf]
        %v547 = vld [vmem:[%s382 + $0x28] sm:$0xf]
        %v548 = vld [vmem:[%s382 + $0x2c] sm:$0xf]
        %v549 = vld [vmem:[%s382 + $0x30] sm:$0xf]
        %v550 = vld [vmem:[%s382 + $0x34] sm:$0xf]
        %v551 = vld [vmem:[%s382 + $0x38] sm:$0xf]
        %v552 = vld [vmem:[%s382 + $0x3c] sm:$0xf]
        %v553 = vld [vmem:[%s382 + $0x40] sm:$0xf]
        %v554 = vld [vmem:[%s382 + $0x44] sm:$0xf]
        %v555 = vld [vmem:[%s382 + $0x48] sm:$0xf]
        %v556 = vld [vmem:[%s382 + $0x4c] sm:$0xf]
        %v557 = vld [vmem:[%s382 + $0x50] sm:$0xf]
        %v558 = vld [vmem:[%s382 + $0x54] sm:$0xf]
        %v559 = vld [vmem:[%s382 + $0x58] sm:$0xf]
        %v560 = vld [vmem:[%s382 + $0x5c] sm:$0xf]
        %v561 = vld [vmem:[%s382 + $0x60] sm:$0xf]
        %v562 = vld [vmem:[%s382 + $0x64] sm:$0xf]
        %v563 = vld [vmem:[%s382 + $0x68] sm:$0xf]
        %v564 = vld [vmem:[%s382 + $0x6c] sm:$0xf]
        %v565 = vld [vmem:[%s382 + $0x70] sm:$0xf]
        %v566 = vld [vmem:[%s382 + $0x74] sm:$0xf]
        %v567 = vld [vmem:[%s382 + $0x78] sm:$0xf]
        %v568 = vld [vmem:[%s382 + $0x7c] sm:$0xf]
        %v569 = vld [vmem:[%s382 + $0x80] sm:$0xf]
        %v570 = vld [vmem:[%s382 + $0x84] sm:$0xf]
        %v571 = vld [vmem:[%s382 + $0x88] sm:$0xf]
        %v572 = vld [vmem:[%s382 + $0x8c] sm:$0xf]
        %v573 = vld [vmem:[%s382 + $0x90] sm:$0xf]
        %v574 = vld [vmem:[%s382 + $0x94] sm:$0xf]
        %v575 = vld [vmem:[%s382 + $0x98] sm:$0xf]
        %v576 = vld [vmem:[%s382 + $0x9c] sm:$0xf]
        %v577 = vld [vmem:[%s382 + $0xa0] sm:$0xf]
        %v578 = vld [vmem:[%s382 + $0xa4] sm:$0xf]
        %v579 = vld [vmem:[%s382 + $0xa8] sm:$0xf]
        %v580 = vld [vmem:[%s382 + $0xac] sm:$0xf]
        %v581 = vld [vmem:[%s382 + $0xb0] sm:$0xf]
        %v582 = vld [vmem:[%s382 + $0xb4] sm:$0xf]
        %v583 = vld [vmem:[%s382 + $0xb8] sm:$0xf]
        %v584 = vld [vmem:[%s382 + $0xbc] sm:$0xf]
        %v585 = vld [vmem:[%s382 + $0xc0] sm:$0xf]
        %v586 = vld [vmem:[%s382 + $0xc4] sm:$0xf]
        %v587 = vld [vmem:[%s382 + $0xc8] sm:$0xf]
        %v588 = vld [vmem:[%s382 + $0xcc] sm:$0xf]
        %v589 = vld [vmem:[%s382 + $0xd0] sm:$0xf]
        %v590 = vld [vmem:[%s382 + $0xd4] sm:$0xf]
        %v591 = vld [vmem:[%s382 + $0xd8] sm:$0xf]
        %v592 = vld [vmem:[%s382 + $0xdc] sm:$0xf]
        %v593 = vld [vmem:[%s382 + $0xe0] sm:$0xf]
        %v594 = vld [vmem:[%s382 + $0xe4] sm:$0xf]
        %v595 = vld [vmem:[%s382 + $0xe8] sm:$0xf]
        %v596 = vld [vmem:[%s382 + $0xec] sm:$0xf]
        %v597 = vld [vmem:[%s382 + $0xf0] sm:$0xf]
        %v598 = vld [vmem:[%s382 + $0xf4] sm:$0xf]
        %v599 = vld [vmem:[%s382 + $0xf8] sm:$0xf]
        %v600 = vld [vmem:[%s382 + $0xfc] sm:$0xf]
        %v665 = vunpack.c.l.b16 %v537
        %v666 = vunpack.c.l.b16 %v538
        %v667 = vunpack.c.l.b16 %v539
        %v668 = vunpack.c.l.b16 %v540
        %v669 = vunpack.c.l.b16 %v541
        %v670 = vunpack.c.l.b16 %v542
        %v671 = vunpack.c.l.b16 %v543
        %v672 = vunpack.c.l.b16 %v544
        %v673 = vunpack.c.l.b16 %v545
        %v674 = vunpack.c.l.b16 %v546
        %v675 = vunpack.c.l.b16 %v547
        %v676 = vunpack.c.l.b16 %v548
        %v677 = vunpack.c.l.b16 %v549
        %v678 = vunpack.c.l.b16 %v550
        %v679 = vunpack.c.l.b16 %v551
        %v680 = vunpack.c.l.b16 %v552
        %v681 = vunpack.c.l.b16 %v553
        %v682 = vunpack.c.l.b16 %v554
        %v683 = vunpack.c.l.b16 %v555
        %v684 = vunpack.c.l.b16 %v556
        %v685 = vunpack.c.l.b16 %v557
        %v686 = vunpack.c.l.b16 %v558
        %v687 = vunpack.c.l.b16 %v559
        %v688 = vunpack.c.l.b16 %v560
        %v689 = vunpack.c.l.b16 %v561
        %v690 = vunpack.c.l.b16 %v562
        %v691 = vunpack.c.l.b16 %v563
        %v692 = vunpack.c.l.b16 %v564
        %v693 = vunpack.c.l.b16 %v565
        %v694 = vunpack.c.l.b16 %v566
        %v695 = vunpack.c.l.b16 %v567
        %v696 = vunpack.c.l.b16 %v568
        %v697 = vunpack.c.l.b16 %v569
        %v698 = vunpack.c.l.b16 %v570
        %v699 = vunpack.c.l.b16 %v571
        %v700 = vunpack.c.l.b16 %v572
        %v701 = vunpack.c.l.b16 %v573
        %v702 = vunpack.c.l.b16 %v574
        %v703 = vunpack.c.l.b16 %v575
        %v704 = vunpack.c.l.b16 %v576
        %v705 = vunpack.c.l.b16 %v577
        %v706 = vunpack.c.l.b16 %v578
        %v707 = vunpack.c.l.b16 %v579
        %v708 = vunpack.c.l.b16 %v580
        %v709 = vunpack.c.l.b16 %v581
        %v710 = vunpack.c.l.b16 %v582
        %v711 = vunpack.c.l.b16 %v583
        %v712 = vunpack.c.l.b16 %v584
        %v713 = vunpack.c.l.b16 %v585
        %v714 = vunpack.c.l.b16 %v586
        %v715 = vunpack.c.l.b16 %v587
        %v716 = vunpack.c.l.b16 %v588
        %v717 = vunpack.c.l.b16 %v589
        %v718 = vunpack.c.l.b16 %v590
        %v719 = vunpack.c.l.b16 %v591
        %v720 = vunpack.c.l.b16 %v592
        %v721 = vunpack.c.l.b16 %v593
        %v722 = vunpack.c.l.b16 %v594
        %v723 = vunpack.c.l.b16 %v595
        %v724 = vunpack.c.l.b16 %v596
        %v725 = vunpack.c.l.b16 %v597
        %v726 = vunpack.c.l.b16 %v598
        %v727 = vunpack.c.l.b16 %v599
        %v728 = vunpack.c.l.b16 %v600
        %v729 = vpack.c.b16 %v666, %v665
        %v730 = vpack.c.b16 %v668, %v667
        %v731 = vpack.c.b16 %v670, %v669
        %v732 = vpack.c.b16 %v672, %v671
        %v733 = vpack.c.b16 %v674, %v673
        %v734 = vpack.c.b16 %v676, %v675
        %v735 = vpack.c.b16 %v678, %v677
        %v736 = vpack.c.b16 %v680, %v679
        %v737 = vpack.c.b16 %v682, %v681
        %v738 = vpack.c.b16 %v684, %v683
        %v739 = vpack.c.b16 %v686, %v685
        %v740 = vpack.c.b16 %v688, %v687
        %v741 = vpack.c.b16 %v690, %v689
        %v742 = vpack.c.b16 %v692, %v691
        %v743 = vpack.c.b16 %v694, %v693
        %v744 = vpack.c.b16 %v696, %v695
        %v745 = vpack.c.b16 %v698, %v697
        %v746 = vpack.c.b16 %v700, %v699
        %v747 = vpack.c.b16 %v702, %v701
        %v748 = vpack.c.b16 %v704, %v703
        %v749 = vpack.c.b16 %v706, %v705
        %v750 = vpack.c.b16 %v708, %v707
        %v751 = vpack.c.b16 %v710, %v709
        %v752 = vpack.c.b16 %v712, %v711
        %v753 = vpack.c.b16 %v714, %v713
        %v754 = vpack.c.b16 %v716, %v715
        %v755 = vpack.c.b16 %v718, %v717
        %v756 = vpack.c.b16 %v720, %v719
        %v757 = vpack.c.b16 %v722, %v721
        %v758 = vpack.c.b16 %v724, %v723
        %v759 = vpack.c.b16 %v726, %v725
        %v760 = vpack.c.b16 %v728, %v727
        %793 = vmatpush.bf16.msra.mxu0 %v736
        %794 = vmatpush.bf16.msra.mxu0 %v735
        %795 = vmatpush.bf16.msra.mxu0 %v734
        %796 = vmatpush.bf16.msra.mxu0 %v733
        %797 = vmatpush.bf16.msra.mxu0 %v732
        %798 = vmatpush.bf16.msra.mxu0 %v731
        %799 = vmatpush.bf16.msra.mxu0 %v730
        %800 = vmatpush.bf16.msra.mxu0 %v729
        %801 = vmatmul.bf16.gmra.mxu0 %v531
        %v802 = vpop.f32.mrf.mxu0
        %v803 = vadd.f32 0.0, %v802
        %v804 = vpop.f32.mrf.mxu0
        %v805 = vadd.f32 0.0, %v804
        %806 = vdwg.mxu0
        %807 = vmatpush.bf16.msra.mxu0 %v744
        %808 = vmatpush.bf16.msra.mxu0 %v743
        %809 = vmatpush.bf16.msra.mxu0 %v742
        %810 = vmatpush.bf16.msra.mxu0 %v741
        %811 = vmatpush.bf16.msra.mxu0 %v740
        %812 = vmatpush.bf16.msra.mxu0 %v739
        %813 = vmatpush.bf16.msra.mxu0 %v738
        %814 = vmatpush.bf16.msra.mxu0 %v737
        %815 = vmatmul.bf16.gmra.mxu0 %v532
        %v816 = vpop.f32.mrf.mxu0
        %v817 = vadd.f32 %v803, %v816
        %v818 = vpop.f32.mrf.mxu0
        %v819 = vadd.f32 %v805, %v818
        %820 = vdwg.mxu0
        %821 = vmatpush.bf16.msra.mxu0 %v752
        %822 = vmatpush.bf16.msra.mxu0 %v751
        %823 = vmatpush.bf16.msra.mxu0 %v750
        %824 = vmatpush.bf16.msra.mxu0 %v749
        %825 = vmatpush.bf16.msra.mxu0 %v748
        %826 = vmatpush.bf16.msra.mxu0 %v747
        %827 = vmatpush.bf16.msra.mxu0 %v746
        %828 = vmatpush.bf16.msra.mxu0 %v745
        %829 = vmatmul.bf16.gmra.mxu0 %v533
        %v830 = vpop.f32.mrf.mxu0
        %v831 = vadd.f32 %v817, %v830
        %v832 = vpop.f32.mrf.mxu0
        %v833 = vadd.f32 %v819, %v832
        %834 = vdwg.mxu0
        %835 = vmatpush.bf16.msra.mxu0 %v760
        %836 = vmatpush.bf16.msra.mxu0 %v759
        %837 = vmatpush.bf16.msra.mxu0 %v758
        %838 = vmatpush.bf16.msra.mxu0 %v757
        %839 = vmatpush.bf16.msra.mxu0 %v756
        %840 = vmatpush.bf16.msra.mxu0 %v755
        %841 = vmatpush.bf16.msra.mxu0 %v754
        %842 = vmatpush.bf16.msra.mxu0 %v753
        %843 = vmatmul.bf16.gmra.mxu0 %v534
        %v844 = vpop.f32.mrf.mxu0
        %v845 = vadd.f32 %v831, %v844
        %v846 = vpop.f32.mrf.mxu0
        %v847 = vadd.f32 %v833, %v846
        %848 = vdwg.mxu0
        %v849 = vadd.f32 %v535, %v845
        %v850 = vadd.f32 %v536, %v847
        %851 = vst.msk [vmem:[#allocation2] sm:$0xff] %vm463, %v849
        %852 = vst.msk [vmem:[#allocation2 + $0x8] sm:$0xff] %vm463, %v850
        %p853 = scmp.eq.s32.totalorder %s23, 3
        // Predicated region
        $region76: #{seq2seq_transformer_forward.30} parent=66 // pred_check
          %p854 = pneg %p853
        $region77: #{seq2seq_transformer_forward.30} parent=66 // pred_check_branch
          %856 = sbr.rel (%p854) target = $region79
        $region78: #{seq2seq_transformer_forward.30} parent=66 // pred_region
          %v857 = vld [vmem:[#allocation2] sm:$0xff]
          %v858 = vld [vmem:[#allocation2 + $0x8] sm:$0xff]
          %v859 = vld [vmem:[%s4] sm:$0x1]
          %v861 = vperm.slane %v859, 0
          %v863 = vadd.f32 %v857, %v861
          %v864 = vadd.f32 %v858, %v861
          %v865 = vld [vmem:[%s370] sm:$0xf]
          %v866 = vld [vmem:[%s370 + $0x4] sm:$0xf]
          %v867 = vunpack.c.l.bf16 %v865
          %v868 = vunpack.c.l.bf16 %v866
          %v869 = vadd.f32 %v863, %v867
          %v870 = vadd.f32 %v864, %v868
          %v871 = vld [vmem:[%s5] sm:$0x1]
          %v872 = vld [vmem:[%s6] sm:$0x1]
          %v873 = vsel %vm463, %v869, 0.0
          %874 = vadd.xlane.f32.xlu0 %v873
          %v875 = vpop.xlane.xlu0 %874
          %v876 = vsel %vm463, %v870, 0.0
          %877 = vadd.xlane.f32.xlu0 %v876
          %v878 = vpop.xlane.xlu0 %877
          %v879 = vrcp.pop 32.0
          %v880 = vmul.f32 32.0, %v879
          %v881 = vsub.f32 1.0, %v880
          %v882 = vmul.f32 %v879, %v881
          %v883 = vadd.f32 %v879, %v882
          %vm884 = vweird.f32 %v879
          %v885 = vsel %vm884, %v879, %v883
          %v886 = vmul.f32 %v875, %v885
          %v887 = vmul.f32 %v878, %v885
          %v888 = vsub.f32 %v869, %v886
          %v889 = vsub.f32 %v870, %v887
          %v890 = vmul.f32 %v888, %v888
          %v891 = vmul.f32 %v889, %v889
          %v892 = vsel %vm463, %v890, 0.0
          %893 = vadd.xlane.f32.xlu0 %v892
          %v894 = vpop.xlane.xlu0 %893
          %v895 = vsel %vm463, %v891, 0.0
          %896 = vadd.xlane.f32.xlu0 %v895
          %v897 = vpop.xlane.xlu0 %896
          %v898 = vmul.f32 %v894, %v885
          %v899 = vmul.f32 %v897, %v885
          %v900 = vadd.f32 %v898, 1e-05
          %v901 = vadd.f32 %v899, 1e-05
          %v902 = vrsqrt.pop %v900
          %v903 = vmul.f32 %v902, %v900
          %v904 = vmul.f32 %v903, %v902
          %v905 = vmul.f32 0.5, %v904
          %v906 = vsub.f32 1.5, %v905
          %v907 = vmul.f32 %v902, %v906
          %vm908 = vweird.f32 %v900
          %vm909 = vweird.f32 %v902
          %vm910 = vmor %vm908, %vm909
          %v911 = vsel %vm910, %v902, %v907
          %v912 = vrsqrt.pop %v901
          %v913 = vmul.f32 %v912, %v901
          %v914 = vmul.f32 %v913, %v912
          %v915 = vmul.f32 0.5, %v914
          %v916 = vsub.f32 1.5, %v915
          %v917 = vmul.f32 %v912, %v916
          %vm918 = vweird.f32 %v901
          %vm919 = vweird.f32 %v912
          %vm920 = vmor %vm918, %vm919
          %v921 = vsel %vm920, %v912, %v917
          %v922 = vmul.f32 %v888, %v911
          %v923 = vmul.f32 %v889, %v921
          %v925 = vperm.slane %v871, 0
          %v927 = vmul.f32 %v922, %v925
          %v928 = vmul.f32 %v923, %v925
          %v930 = vperm.slane %v872, 0
          %v932 = vadd.f32 %v927, %v930
          %v933 = vadd.f32 %v928, %v930
          %v934 = vpack.c.bf16 %v932, %v932
          %v935 = vpack.c.bf16 %v933, %v933
          %vm936 = vcmask 257024
          %937 = vst.msk [vmem:[%s388] sm:$0xf] %vm936, %v934
          %938 = vst.msk [vmem:[%s388 + $0x4] sm:$0xf] %vm936, %v935
        $region79: #{seq2seq_transformer_forward.30} parent=66 // pred_fallthru
          _
        %s939 = smul.u32 2, %s22
        %p940 = scmp.lt.s32.totalorder %s939, 1
        %s941 = scalar_select %p940, %s939, 1
        %s942 = smul.addr %s941, 4
        %s943 = scalar_lea.vmem %s7, %s942
        // Predicated region
        $region80: #{seq2seq_transformer_forward.30} parent=66 // pred_check
          %p944 = pneg %p215
        $region81: #{seq2seq_transformer_forward.30} parent=66 // pred_check_branch
          %946 = sbr.rel (%p944) target = $region83
        $region82: #{seq2seq_transformer_forward.30} parent=66 // pred_region
          %s947 = smul.u32 2, %s22
        $region83: #{seq2seq_transformer_forward.30} parent=66 // pred_fallthru
          _
        // Predicated region
        $region84: #{seq2seq_transformer_forward.30} parent=66 // pred_check
          %p948 = pneg %p215
        $region85: #{seq2seq_transformer_forward.30} parent=66 // pred_check_branch
          %950 = sbr.rel (%p948) target = $region87
        $region86: #{seq2seq_transformer_forward.30} parent=66 // pred_region
          %s951 = smul.u32 2, %s22
          %p952 = scmp.lt.s32.totalorder %s951, 1
          %s953 = scalar_select %p952, %s951, 1
          %s954 = smul.addr %s953, 4
          %s955 = scalar_lea.vmem %s7, %s954
        $region87: #{seq2seq_transformer_forward.30} parent=66 // pred_fallthru
          _
      $region67: #{seq2seq_transformer_forward.30} parent=5 // pred_fallthru
        _
      %p956 = scmp.le.s32.totalorder 2, %s13
      // Predicated region
      $region88: #{seq2seq_transformer_forward.30} parent=5 // pred_check
        %p957 = pneg %p956
      $region89: #{seq2seq_transformer_forward.30} parent=5 // pred_check_branch
        %959 = sbr.rel (%p957) target = $region91
      $region90: #{seq2seq_transformer_forward.30} parent=5 // pred_region
        %s960 = ssub.s32 %s13, 2
      $region91: #{seq2seq_transformer_forward.30} parent=5 // pred_fallthru
        _
    $region6: #{seq2seq_transformer_forward.30} parent=1 // loop_footer
      %s17 = sadd.s32 1, %s13
    $region7: #{seq2seq_transformer_forward.30} parent=1 // loop_footer_branch
      %12 = sbr.rel target = $region3
    $region8: #{seq2seq_transformer_forward.30} parent=1 // loop_exit
      _

// kernel: seq2seq_transformer_forward.39
$region0: #{seq2seq_transformer_forward.39}
  #allocation0 [shape = 'u32[]', space=smem, size = 0x4, offset = 0x4, fixed_abs, tag = 'smem constant byte address 0x4 - core index']
  #allocation1 [shape = 'u32[72,128]{1,0:T(1,128)}', space=vmem, size = 0x9000, scoped, tag = 'internal scratch']
  #allocation2 [shape = 'f32[16,32]{1,0:T(8,128)}', space=vmem, size = 0x2000, scoped, tag = 'scratch operand']
  %s0 = inlined_call_operand.vmem [shape: bf16[16,32], index: 0, kind: input, shape index: {}]
  %s1 = inlined_call_operand.vmem [shape: bf16[32,32], index: 1, kind: input, shape index: {}]
  %s2 = inlined_call_operand.vmem [shape: f32[1,32], index: 2, kind: input, shape index: {}]
  %s3 = inlined_call_operand.vmem [shape: bf16[16,32], index: 3, kind: output, shape index: {}]
  %s4 = sld [smem:[#allocation0]]
  $region30: #{seq2seq_transformer_forward.39} parent=0
    _
  %s6 = ssub.s32 1, %s4
  %s7 = scalar_select 0, %s6, %s4
  // Predicated region
  $region2: #{seq2seq_transformer_forward.39} parent=0 // pred_check
    _
  $region3: #{seq2seq_transformer_forward.39} parent=0 // pred_check_branch
    %9 = sbr.rel (0) target = $region5
  $region4: #{seq2seq_transformer_forward.39} parent=0 // pred_region
    _
  $region5: #{seq2seq_transformer_forward.39} parent=0 // pred_fallthru
    _
  // Predicated region
  $region6: #{seq2seq_transformer_forward.39} parent=0 // pred_check
    _
  $region7: #{seq2seq_transformer_forward.39} parent=0 // pred_check_branch
    %11 = sbr.rel (0) target = $region9
  $region8: #{seq2seq_transformer_forward.39} parent=0 // pred_region
    _
  $region9: #{seq2seq_transformer_forward.39} parent=0 // pred_fallthru
    _
  // Predicated region
  $region10: #{seq2seq_transformer_forward.39} parent=0 // pred_check
    _
  $region11: #{seq2seq_transformer_forward.39} parent=0 // pred_check_branch
    %13 = sbr.rel (0) target = $region13
  $region12: #{seq2seq_transformer_forward.39} parent=0 // pred_region
    _
  $region13: #{seq2seq_transformer_forward.39} parent=0 // pred_fallthru
    _
  %p15 = scmp.eq.s32.totalorder 0, 0
  // Predicated region
  $region14: #{seq2seq_transformer_forward.39} parent=0 // pred_check
    %p16 = pneg %p15
  $region15: #{seq2seq_transformer_forward.39} parent=0 // pred_check_branch
    %18 = sbr.rel (%p16) target = $region17
  $region16: #{seq2seq_transformer_forward.39} parent=0 // pred_region
    %vm19 = vcmask 261120
    %20 = vst.msk [vmem:[#allocation2] sm:$0xff] %vm19, 0.0
    %21 = vst.msk [vmem:[#allocation2 + $0x8] sm:$0xff] %vm19, 0.0
  $region17: #{seq2seq_transformer_forward.39} parent=0 // pred_fallthru
    _
  %v22 = vld [vmem:[#allocation2] sm:$0xff]
  %v23 = vld [vmem:[#allocation2 + $0x8] sm:$0xff]
  %v24 = vld [vmem:[%s0] sm:$0xf]
  %v25 = vld [vmem:[%s0 + $0x4] sm:$0xf]
  %v26 = vld [vmem:[%s1] sm:$0xf]
  %v27 = vld [vmem:[%s1 + $0x4] sm:$0xf]
  %v28 = vld [vmem:[%s1 + $0x8] sm:$0xf]
  %v29 = vld [vmem:[%s1 + $0xc] sm:$0xf]
  %v32 = vunpack.c.l.b16 %v24
  %v33 = vunpack.c.l.b16 %v25
  %v34 = vpack.c.b16 %v33, %v32
  %v39 = vunpack.c.l.b16 %v26
  %v40 = vunpack.c.l.b16 %v27
  %v41 = vunpack.c.l.b16 %v28
  %v42 = vunpack.c.l.b16 %v29
  %v43 = vpack.c.b16 %v40, %v39
  %v44 = vpack.c.b16 %v42, %v41
  %vm47 = vcmask 261120
  %v49 = vsel %vm47, %v34, 0
  %51 = vmatpush.bf16.msra.mxu0 0
  %52 = vmatpush.bf16.msra.mxu0 0
  %53 = vmatpush.bf16.msra.mxu0 0
  %54 = vmatpush.bf16.msra.mxu0 0
  %55 = vmatpush.bf16.msra.mxu0 0
  %56 = vmatpush.bf16.msra.mxu0 0
  %57 = vmatpush.bf16.msra.mxu0 %v44
  %58 = vmatpush.bf16.msra.mxu0 %v43
  %59 = vmatmul.bf16.gmra.mxu0 %v49
  %v60 = vpop.f32.mrf.mxu0
  %v61 = vadd.f32 0.0, %v60
  %v62 = vpop.f32.mrf.mxu0
  %v63 = vadd.f32 0.0, %v62
  %64 = vdwg.mxu0
  %v65 = vadd.f32 %v22, %v61
  %v66 = vadd.f32 %v23, %v63
  %67 = vst.msk [vmem:[#allocation2] sm:$0xff] %vm47, %v65
  %68 = vst.msk [vmem:[#allocation2 + $0x8] sm:$0xff] %vm47, %v66
  // Predicated region
  $region18: #{seq2seq_transformer_forward.39} parent=0 // pred_check
    %p69 = pneg %p15
  $region19: #{seq2seq_transformer_forward.39} parent=0 // pred_check_branch
    %71 = sbr.rel (%p69) target = $region21
  $region20: #{seq2seq_transformer_forward.39} parent=0 // pred_region
    %v72 = vld [vmem:[#allocation2] sm:$0xff]
    %v73 = vld [vmem:[#allocation2 + $0x8] sm:$0xff]
    %v74 = vld [vmem:[%s2] sm:$0x1]
    %v76 = vperm.slane %v74, 0
    %v78 = vadd.f32 %v72, %v76
    %v79 = vadd.f32 %v73, %v76
    %v80 = vpack.c.bf16 %v78, %v78
    %v81 = vpack.c.bf16 %v79, %v79
    %vm82 = vcmask 257024
    %83 = vst.msk [vmem:[%s3] sm:$0xf] %vm82, %v80
    %84 = vst.msk [vmem:[%s3 + $0x4] sm:$0xf] %vm82, %v81
  $region21: #{seq2seq_transformer_forward.39} parent=0 // pred_fallthru
    _
  // Predicated region
  $region22: #{seq2seq_transformer_forward.39} parent=0 // pred_check
    _
  $region23: #{seq2seq_transformer_forward.39} parent=0 // pred_check_branch
    %86 = sbr.rel (0) target = $region25
  $region24: #{seq2seq_transformer_forward.39} parent=0 // pred_region
    _
  $region25: #{seq2seq_transformer_forward.39} parent=0 // pred_fallthru
    _
  // Predicated region
  $region26: #{seq2seq_transformer_forward.39} parent=0 // pred_check
    _
  $region27: #{seq2seq_transformer_forward.39} parent=0 // pred_check_branch
    %88 = sbr.rel (0) target = $region29
  $region28: #{seq2seq_transformer_forward.39} parent=0 // pred_region
    _
  $region29: #{seq2seq_transformer_forward.39} parent=0 // pred_fallthru
    _

// kernel: seq2seq_transformer_forward.53
$region0: #{seq2seq_transformer_forward.53}
  #allocation0 [shape = 'u32[]', space=smem, size = 0x4, offset = 0x4, fixed_abs, tag = 'smem constant byte address 0x4 - core index']
  #allocation1 [shape = 'u32[72,128]{1,0:T(1,128)}', space=vmem, size = 0x9000, scoped, tag = 'internal scratch']
  #allocation2 [shape = 'f32[16,60]{1,0:T(8,128)}', space=vmem, size = 0x2000, scoped, tag = 'scratch operand']
  %s0 = inlined_call_operand.vmem [shape: bf16[16,32], index: 0, kind: input, shape index: {}]
  %s1 = inlined_call_operand.vmem [shape: bf16[32,60], index: 1, kind: input, shape index: {}]
  %s2 = inlined_call_operand.vmem [shape: f32[1,60], index: 2, kind: input, shape index: {}]
  %s3 = inlined_call_operand.hbm [shape: f32[16,60], index: 3, kind: output, shape index: {}]
  %s4 = sld [smem:[#allocation0]]
  $region30: #{seq2seq_transformer_forward.53} parent=0
    _
  %s6 = ssub.s32 1, %s4
  %s7 = scalar_select 0, %s6, %s4
  $region1: #{seq2seq_transformer_forward.53} parent=0
    #allocation3 [shape = 'u8[8192]{0}', space=vmem, size = 0x2000, scoped, tag = 'output window, operand 0, single buffered']
    #allocation4 [shape = 's32[1]{0}', space=sflag, size = 0x4, scoped, tag = 'scoped memory for seq2seq_transformer_forward.53']
    %8 = vsyncpa [#allocation4], 0
    // Predicated region
    $region2: #{seq2seq_transformer_forward.53} parent=1 // pred_check
      _
    $region3: #{seq2seq_transformer_forward.53} parent=1 // pred_check_branch
      %10 = sbr.rel (0) target = $region5
    $region4: #{seq2seq_transformer_forward.53} parent=1 // pred_region
      _
    $region5: #{seq2seq_transformer_forward.53} parent=1 // pred_fallthru
      _
    // Predicated region
    $region6: #{seq2seq_transformer_forward.53} parent=1 // pred_check
      _
    $region7: #{seq2seq_transformer_forward.53} parent=1 // pred_check_branch
      %12 = sbr.rel (0) target = $region9
    $region8: #{seq2seq_transformer_forward.53} parent=1 // pred_region
      _
    $region9: #{seq2seq_transformer_forward.53} parent=1 // pred_fallthru
      _
    // Predicated region
    $region10: #{seq2seq_transformer_forward.53} parent=1 // pred_check
      _
    $region11: #{seq2seq_transformer_forward.53} parent=1 // pred_check_branch
      %14 = sbr.rel (0) target = $region13
    $region12: #{seq2seq_transformer_forward.53} parent=1 // pred_region
      _
    $region13: #{seq2seq_transformer_forward.53} parent=1 // pred_fallthru
      _
    %p16 = scmp.eq.s32.totalorder 0, 0
    // Predicated region
    $region14: #{seq2seq_transformer_forward.53} parent=1 // pred_check
      %p17 = pneg %p16
    $region15: #{seq2seq_transformer_forward.53} parent=1 // pred_check_branch
      %19 = sbr.rel (%p17) target = $region17
    $region16: #{seq2seq_transformer_forward.53} parent=1 // pred_region
      %vm20 = vcmask 490496
      %21 = vst.msk [vmem:[#allocation2] sm:$0xff] %vm20, 0.0
      %22 = vst.msk [vmem:[#allocation2 + $0x8] sm:$0xff] %vm20, 0.0
    $region17: #{seq2seq_transformer_forward.53} parent=1 // pred_fallthru
      _
    %v23 = vld [vmem:[#allocation2] sm:$0xff]
    %v24 = vld [vmem:[#allocation2 + $0x8] sm:$0xff]
    %v25 = vld [vmem:[%s0] sm:$0xf]
    %v26 = vld [vmem:[%s0 + $0x4] sm:$0xf]
    %v27 = vld [vmem:[%s1] sm:$0xf]
    %v28 = vld [vmem:[%s1 + $0x4] sm:$0xf]
    %v29 = vld [vmem:[%s1 + $0x8] sm:$0xf]
    %v30 = vld [vmem:[%s1 + $0xc] sm:$0xf]
    %v33 = vunpack.c.l.b16 %v25
    %v34 = vunpack.c.l.b16 %v26
    %v35 = vpack.c.b16 %v34, %v33
    %v40 = vunpack.c.l.b16 %v27
    %v41 = vunpack.c.l.b16 %v28
    %v42 = vunpack.c.l.b16 %v29
    %v43 = vunpack.c.l.b16 %v30
    %v44 = vpack.c.b16 %v41, %v40
    %v45 = vpack.c.b16 %v43, %v42
    %vm48 = vcmask 261120
    %v50 = vsel %vm48, %v35, 0
    %52 = vmatpush.bf16.msra.mxu0 0
    %53 = vmatpush.bf16.msra.mxu0 0
    %54 = vmatpush.bf16.msra.mxu0 0
    %55 = vmatpush.bf16.msra.mxu0 0
    %56 = vmatpush.bf16.msra.mxu0 0
    %57 = vmatpush.bf16.msra.mxu0 0
    %58 = vmatpush.bf16.msra.mxu0 %v45
    %59 = vmatpush.bf16.msra.mxu0 %v44
    %60 = vmatmul.bf16.gmra.mxu0 %v50
    %v61 = vpop.f32.mrf.mxu0
    %v62 = vadd.f32 0.0, %v61
    %v63 = vpop.f32.mrf.mxu0
    %v64 = vadd.f32 0.0, %v63
    %65 = vdwg.mxu0
    %v66 = vadd.f32 %v23, %v62
    %v67 = vadd.f32 %v24, %v64
    %vm68 = vcmask 490496
    %69 = vst.msk [vmem:[#allocation2] sm:$0xff] %vm68, %v66
    %70 = vst.msk [vmem:[#allocation2 + $0x8] sm:$0xff] %vm68, %v67
    // Predicated region
    $region18: #{seq2seq_transformer_forward.53} parent=1 // pred_check
      %p71 = pneg %p16
    $region19: #{seq2seq_transformer_forward.53} parent=1 // pred_check_branch
      %73 = sbr.rel (%p71) target = $region21
    $region20: #{seq2seq_transformer_forward.53} parent=1 // pred_region
      %v74 = vld [vmem:[#allocation2] sm:$0xff]
      %v75 = vld [vmem:[#allocation2 + $0x8] sm:$0xff]
      %v76 = vld [vmem:[%s2] sm:$0x1]
      %v78 = vperm.slane %v76, 0
      %v80 = vadd.f32 %v74, %v78
      %v81 = vadd.f32 %v75, %v78
      %82 = vst.msk [vmem:[#allocation3] sm:$0xff] %vm68, %v80
      %83 = vst.msk [vmem:[#allocation3 + $0x8] sm:$0xff] %vm68, %v81
    $region21: #{seq2seq_transformer_forward.53} parent=1 // pred_fallthru
      _
    // Predicated region
    $region22: #{seq2seq_transformer_forward.53} parent=1 // pred_check
      _
    $region23: #{seq2seq_transformer_forward.53} parent=1 // pred_check_branch
      %85 = sbr.rel (0) target = $region25
    $region24: #{seq2seq_transformer_forward.53} parent=1 // pred_region
      %87 = vsyncadd [#allocation4], 0
      %s88 = sshll.u32 [#allocation3], 4
      %s89 = int_to_ptr.vmem [resolvable:$true] %s88
      %s90 = sshll.u32 %s3, 4
      %s91 = int_to_ptr.hbm [resolvable:$true] %s90
      %96 = dma.vmem_to_hbm [thread:$0]  %s89, 256, %s91, [#allocation4], 128, 128, 8
    $region25: #{seq2seq_transformer_forward.53} parent=1 // pred_fallthru
      _
    // Predicated region
    $region26: #{seq2seq_transformer_forward.53} parent=1 // pred_check
      _
    $region27: #{seq2seq_transformer_forward.53} parent=1 // pred_check_branch
      %98 = sbr.rel (0) target = $region29
    $region28: #{seq2seq_transformer_forward.53} parent=1 // pred_region
      %100 = dma.done [#allocation4], 256
    $region29: #{seq2seq_transformer_forward.53} parent=1 // pred_fallthru
      _
    %101 = vsyncpa [#allocation4], 1

</llo_original>
